<compile_context>
chip_gen: v7x
topology: tpu7x:2x2x1
jax: 0.10.0
libtpu: 0.0.40
codegen_flags: <defaults>
</compile_context>

<pallas_src>
import math
from functools import partial

import jax
import jax.numpy as jnp
from jax import lax
from jax.experimental import pallas as pl
from jax.experimental.pallas import tpu as pltpu


def _cdiv(a, b):
    return -(-a // b)


def _round_up(x, m):
    return _cdiv(x, m) * m


def _detect_vmem_limit():
    # v5e/v6e have 128 MiB VMEM per TensorCore, v7x only 64 MiB.  Keep ~25%
    # headroom for Mosaic-internal scratch; fall back to a v7x-safe value.
    try:
        cap = int(pltpu.get_tpu_info().vmem_capacity_bytes)
    except Exception:
        cap = 64 * 1024 * 1024
    return max(32 * 1024 * 1024, min(100 * 1024 * 1024, (cap * 3) // 4))


_VMEM_LIMIT = _detect_vmem_limit()
_MM_VMEM_BUDGET = (_VMEM_LIMIT * 3) // 5


# -----------------------------------------------------------------------------
# Pallas matmul kernel (MXU hot path: convs / deconvs / LSTM proj / linears /
# separable bilinear resizes).
# -----------------------------------------------------------------------------
def _matmul_kernel(a_ref, b_ref, o_ref, acc_ref):
    @pl.when(pl.program_id(2) == 0)
    def _():
        acc_ref[...] = jnp.zeros_like(acc_ref)

    acc_ref[...] += jnp.dot(a_ref[...], b_ref[...],
                            preferred_element_type=jnp.float32)

    @pl.when(pl.program_id(2) == pl.num_programs(2) - 1)
    def _():
        o_ref[...] = acc_ref[...].astype(o_ref.dtype)


def _pick_tiles(M, K, N, ab, ob, budget):
    """Tile sizes for (M,K)x(K,N).  Returns (tm, tk, tn, Kp).  M and N are never
    padded (ragged boundary blocks are legal); K is padded only if no clean
    divisor-based split exists."""
    tk_cap = 2304
    if K <= tk_cap:
        tk, Kp = K, K
    else:
        tk = None
        if K % 128 == 0:
            units = K // 128
            for nk in range(_cdiv(K, tk_cap), units + 1):
                if units % nk == 0:
                    tk = (units // nk) * 128
                    break
        if tk is None:
            nk = _cdiv(K, tk_cap)
            tk = _round_up(_cdiv(K, nk), 128)
        Kp = _round_up(K, tk)

    if M <= 32:
        # Weight-streaming tail matmuls (LSTM input projection / linear layers):
        # keep the full K in one block (no accumulator revisits) and stream the
        # B operand in N tiles sized from the VMEM budget.
        tk, Kp = K, K
        tn = (max(budget // 3, 1 << 20) // max(K * ab, 1)) // 128 * 128
        tn = max(128, min(tn, 2048))
        if N <= tn:
            tn = N
        return M, tk, tn, Kp

    tn = N if N <= 512 else 512
    tm = min(1024, _round_up(M, 16))
    while tm > 16:
        use = 2 * tm * tk * ab + 2 * tk * tn * ab + tm * tn * 4 + 2 * tm * tn * ob
        if use <= budget:
            break
        tm = _round_up(tm // 2, 16)
    # Keep >=2 (M,N)-parallel grid blocks so both v7x TensorCores get work.
    if _cdiv(M, tm) * _cdiv(N, tn) == 1 and M >= 128:
        tm = _round_up(_cdiv(M, 2), 16)
    return tm, tk, tn, Kp


def pallas_matmul(a, b, out_dtype=jnp.float32, compute_dtype=jnp.bfloat16):
    """a (M,K) @ b (K,N) with f32 accumulation on the MXU.

    Only genuinely tiny operands (M<=32, N<16) and an occasional K remainder are
    zero-padded; everything else uses full-dim / ragged boundary blocks so no
    extra HBM pad copies of the big matrices are made."""
    M, K = a.shape
    K2, N = b.shape
    assert K == K2
    a = a.astype(compute_dtype)
    b = b.astype(compute_dtype)
    Mp = _round_up(M, 16) if M <= 32 else M
    Np = 128 if N < 16 else N
    ab = jnp.dtype(compute_dtype).itemsize
    ob = jnp.dtype(out_dtype).itemsize
    tm, tk, tn, Kp = _pick_tiles(Mp, K, Np, ab, ob, _MM_VMEM_BUDGET)
    if (Mp, Kp) != (M, K):
        a = jnp.pad(a, ((0, Mp - M), (0, Kp - K)))
    if (Kp, Np) != (K, N):
        b = jnp.pad(b, ((0, Kp - K), (0, Np - N)))

    out = pl.pallas_call(
        _matmul_kernel,
        out_shape=jax.ShapeDtypeStruct((Mp, Np), out_dtype),
        grid_spec=pltpu.PrefetchScalarGridSpec(
            num_scalar_prefetch=0,
            grid=(_cdiv(Mp, tm), _cdiv(Np, tn), Kp // tk),
            in_specs=[
                pl.BlockSpec((tm, tk), lambda i, j, k: (i, k)),
                pl.BlockSpec((tk, tn), lambda i, j, k: (k, j)),
            ],
            out_specs=pl.BlockSpec((tm, tn), lambda i, j, k: (i, j)),
            scratch_shapes=[pltpu.VMEM((tm, tn), jnp.float32)],
        ),
        compiler_params=pltpu.CompilerParams(
            dimension_semantics=("parallel", "parallel", "arbitrary"),
            vmem_limit_bytes=_VMEM_LIMIT),
    )(a, b)
    if (Mp, Np) != (M, N):
        out = out[:M, :N]
    return out


# -----------------------------------------------------------------------------
# Pallas elementwise epilogues: per-(frame, channel) affine (training-mode BN)
# + activation, optional residual add, optional fused conv4(1x1)+sigmoid.
# Inputs are bf16 (matmul output); outputs are bf16 activations.
# -----------------------------------------------------------------------------
def _bn_act_kernel(act, x_ref, s_ref, b_ref, o_ref):
    y = x_ref[...] * s_ref[...] + b_ref[...]
    if act == "relu":
        y = jnp.maximum(y, 0.0)
    elif act == "sigmoid":
        y = 0.5 * (jnp.tanh(0.5 * y) + 1.0)
    o_ref[...] = y.astype(o_ref.dtype)


def _bn_residual_relu_kernel(x_ref, s_ref, b_ref, r_ref, o_ref):
    y = x_ref[...] * s_ref[...] + b_ref[...] + r_ref[...].astype(jnp.float32)
    o_ref[...] = jnp.maximum(y, 0.0).astype(o_ref.dtype)


def _bn_relu_affine_sigmoid_kernel(x_ref, s_ref, b_ref, s2_ref, b2_ref, o_ref):
    y = jnp.maximum(x_ref[...] * s_ref[...] + b_ref[...], 0.0)   # BN + ReLU
    y = y * s2_ref[...] + b2_ref[...]                            # conv4 (1x1, bias)
    o_ref[...] = (0.5 * (jnp.tanh(0.5 * y) + 1.0)).astype(o_ref.dtype)


def pallas_bn_act(y3, scale, bias, act="relu", residual=None, post=None):
    """y3: (T, R, C); scale/bias: (T, C).  Returns (T, R, C) bf16."""
    T, R, C = y3.shape
    # Lane-dense stores: fold rows into the lane axis for narrow channel counts.
    fold = 1
    if C < 128 and 128 % C == 0 and R % (128 // C) == 0:
        fold = 128 // C
    if fold > 1:
        y3 = y3.reshape(T, R // fold, C * fold)
        scale = jnp.tile(scale, (1, fold))
        bias = jnp.tile(bias, (1, fold))
        if residual is not None:
            residual = residual.reshape(T, R // fold, C * fold)
        if post is not None:
            post = (jnp.tile(post[0], (1, fold)), jnp.tile(post[1], (1, fold)))
    Rr, Cc = y3.shape[1], y3.shape[2]

    eb = jnp.dtype(y3.dtype).itemsize
    tr = max(16, ((2 << 20) // max(Cc * eb, 1)) // 16 * 16)
    if tr >= Rr:
        tr = Rr

    s = scale.reshape(T, 1, Cc).astype(jnp.float32)
    b = bias.reshape(T, 1, Cc).astype(jnp.float32)

    x_spec = pl.BlockSpec((1, tr, Cc), lambda t, r: (t, r, 0))
    sb_spec = pl.BlockSpec((1, 1, Cc), lambda t, r: (t, 0, 0))
    grid = (T, _cdiv(Rr, tr))
    cparams = pltpu.CompilerParams(dimension_semantics=("parallel", "parallel"),
                                   vmem_limit_bytes=_VMEM_LIMIT)
    out_shape = jax.ShapeDtypeStruct((T, Rr, Cc), jnp.bfloat16)

    if residual is not None:
        out = pl.pallas_call(
            _bn_residual_relu_kernel, out_shape=out_shape,
            grid_spec=pltpu.PrefetchScalarGridSpec(
                num_scalar_prefetch=0, grid=grid,
                in_specs=[x_spec, sb_spec, sb_spec, x_spec],
                out_specs=x_spec),
            compiler_params=cparams,
        )(y3, s, b, residual)
    elif post is not None:
        s2 = post[0].reshape(T, 1, Cc).astype(jnp.float32)
        b2 = post[1].reshape(T, 1, Cc).astype(jnp.float32)
        out = pl.pallas_call(
            _bn_relu_affine_sigmoid_kernel, out_shape=out_shape,
            grid_spec=pltpu.PrefetchScalarGridSpec(
                num_scalar_prefetch=0, grid=grid,
                in_specs=[x_spec, sb_spec, sb_spec, sb_spec, sb_spec],
                out_specs=x_spec),
            compiler_params=cparams,
        )(y3, s, b, s2, b2)
    else:
        out = pl.pallas_call(
            partial(_bn_act_kernel, act), out_shape=out_shape,
            grid_spec=pltpu.PrefetchScalarGridSpec(
                num_scalar_prefetch=0, grid=grid,
                in_specs=[x_spec, sb_spec, sb_spec],
                out_specs=x_spec),
            compiler_params=cparams,
        )(y3, s, b)
    if fold > 1:
        out = out.reshape(T, R, C)
    return out


# -----------------------------------------------------------------------------
# Conv / deconv building blocks (NHWC end-to-end; per-conv_block jit so the
# im2col / BN-stat / reshape glue fuses around the Pallas calls).
# -----------------------------------------------------------------------------
def _im2col_nhwc(x, kh, kw, stride, padding):
    """Patch extraction for the conv matmul; K is ordered (ky, kx, cin)."""
    # TODO(synk): 3x3/7x7 patches are materialised via XLA slices (not an
    # implicit-GEMM index_map); 1x1 stride-1 convs take the zero-copy path.
    N, H, W, C = x.shape
    if kh == 1 and kw == 1 and stride == 1 and padding == 0:
        return x.reshape(N * H * W, C), H, W
    if padding > 0:
        x = jnp.pad(x, ((0, 0), (padding, padding), (padding, padding), (0, 0)))
    Hp, Wp = H + 2 * padding, W + 2 * padding
    Ho = (Hp - kh) // stride + 1
    Wo = (Wp - kw) // stride + 1
    cols = []
    for ky in range(kh):
        for kx in range(kw):
            cols.append(x[:, ky:ky + stride * (Ho - 1) + 1:stride,
                             kx:kx + stride * (Wo - 1) + 1:stride, :])
    p = jnp.stack(cols, axis=3)                   # (N, Ho, Wo, kh*kw, C)
    return p.reshape(N * Ho * Wo, kh * kw * C), Ho, Wo


@partial(jax.jit, static_argnames=("stride", "padding", "act", "frames"))
def conv_block(x, w, stride, padding, act, frames, residual=None, post_affine=None):
    """Conv2d (bias-free) + per-frame training-mode BatchNorm + activation.

    x: (frames*B, H, W, Cin) NHWC bf16; w: (Cout, Cin, kh, kw) f32.
    `residual`: NHWC tensor -> BN output + residual, then ReLU (bottleneck tail).
    `post_affine`: (w4, b4) scalars -> fused conv4(1x1)+sigmoid after BN+ReLU.
    Returns NHWC bf16."""
    N = x.shape[0]
    B = N // frames
    cout, cin, kh, kw = w.shape
    cols, Ho, Wo = _im2col_nhwc(x, kh, kw, stride, padding)
    wmat = jnp.transpose(w, (2, 3, 1, 0)).reshape(kh * kw * cin, cout)
    # bf16 conv output: written once, read once for BN stats + once by the epilogue.
    y = pallas_matmul(cols, wmat, out_dtype=jnp.bfloat16)       # (N*Ho*Wo, cout)

    if cout == 1:
        # Single-channel (deconv3) path: fold width onto the lane axis.
        y3 = y.reshape(frames, B * Ho, Wo)
        xf = y3.astype(jnp.float32)
        mean = jnp.mean(xf, axis=(1, 2))
        var = jnp.maximum(jnp.mean(xf * xf, axis=(1, 2)) - mean * mean, 0.0)
        sc = lax.rsqrt(var + 1e-5)                  # gamma == 1
        bi = -mean * sc                             # beta == 0
        s = jnp.broadcast_to(sc[:, None], (frames, Wo))
        b = jnp.broadcast_to(bi[:, None], (frames, Wo))
        if post_affine is not None:
            w4, b4 = post_affine
            s2 = jnp.broadcast_to(w4.reshape(1, 1), (frames, Wo))
            b2 = jnp.broadcast_to(b4.reshape(1, 1), (frames, Wo))
            out = pallas_bn_act(y3, s, b, act="relu", post=(s2, b2))
        else:
            out = pallas_bn_act(y3, s, b, act=act)
        return out.reshape(N, Ho, Wo, 1)

    R = B * Ho * Wo
    y3 = y.reshape(frames, R, cout)
    # TODO(synk): per-frame BN statistic reductions are XLA glue (fused under the
    # conv_block jit into one pass over the bf16 conv output).
    xf = y3.astype(jnp.float32)
    mean = jnp.mean(xf, axis=1)
    var = jnp.maximum(jnp.mean(xf * xf, axis=1) - mean * mean, 0.0)   # biased var
    scale = lax.rsqrt(var + 1e-5)
    bias = -mean * scale
    res3 = residual.reshape(frames, R, cout) if residual is not None else None
    out = pallas_bn_act(y3, scale, bias, act=act, residual=res3)
    return out.reshape(N, Ho, Wo, cout)


def deconv_block(x, w, stride, frames, post_affine=None):
    """ConvTranspose2d(k=3, stride) + BN + ReLU via input dilation + conv.

    The transposed-conv bias is dropped: a per-channel constant shift is exactly
    cancelled by the following training-mode BatchNorm."""
    # TODO(synk): phase-split (sub-pixel) deconv would avoid the 75%-zero dilated
    # input; kept as dilation+conv since these layers are small.
    cin, cout, kh, kw = w.shape
    xd = lax.pad(x, jnp.array(0, x.dtype),
                 ((0, 0, 0), (0, 0, stride - 1), (0, 0, stride - 1), (0, 0, 0)))
    w2 = jnp.flip(w, axis=(2, 3)).transpose(1, 0, 2, 3)    # (Cout, Cin, kh, kw)
    return conv_block(xd, w2, stride=1, padding=kh - 1, act="relu",
                      frames=frames, post_affine=post_affine)


def bottleneck_forward(x, blk, stride, frames):
    if "wd" in blk:
        residual = conv_block(x, blk["wd"], stride=stride, padding=0,
                              act="none", frames=frames)
    else:
        residual = x
    out = conv_block(x, blk["w1"], stride=1, padding=0, act="relu", frames=frames)
    out = conv_block(out, blk["w2"], stride=stride, padding=1, act="relu",
                     frames=frames)
    out = conv_block(out, blk["w3"], stride=1, padding=0, act="relu",
                     frames=frames, residual=residual)
    return out


def maxpool_3x3_s2_p1_nhwc(x):
    # TODO(synk): max-pool uses lax.reduce_window glue rather than a Pallas kernel.
    return lax.reduce_window(x, jnp.array(-jnp.inf, x.dtype), lax.max,
                             (1, 3, 3, 1), (1, 2, 2, 1),
                             [(0, 0), (1, 1), (1, 1), (0, 0)])


def _interp_matrix(out_size, in_size):
    """Dense bilinear interpolation matrix, align_corners=False (F.interpolate)."""
    c = (jnp.arange(out_size, dtype=jnp.float32) + 0.5) * (in_size / out_size) - 0.5
    c = jnp.clip(c, 0.0, float(in_size - 1))
    i0 = jnp.floor(c).astype(jnp.int32)
    i1 = jnp.minimum(i0 + 1, in_size - 1)
    w = c - i0.astype(jnp.float32)
    cols = jnp.arange(in_size, dtype=jnp.int32)[None, :]
    return ((cols == i0[:, None]).astype(jnp.float32) * (1.0 - w)[:, None]
            + (cols == i1[:, None]).astype(jnp.float32) * w[:, None])


def bilinear_resize_nhwc(x, out_h, out_w):
    """Separable bilinear resize as two Pallas matmuls (no gathers)."""
    N, H, W, C = x.shape
    mh = _interp_matrix(out_h, H)
    mw = _interp_matrix(out_w, W)
    t = pallas_matmul(mh, x.transpose(1, 0, 2, 3).reshape(H, N * W * C),
                      compute_dtype=jnp.float32)
    t = t.reshape(out_h, N, W, C).transpose(1, 0, 2, 3)            # (N, out_h, W, C)
    u = pallas_matmul(mw, t.transpose(2, 0, 1, 3).reshape(W, N * out_h * C),
                      compute_dtype=jnp.float32)
    return u.reshape(out_w, N, out_h, C).transpose(1, 2, 0, 3)     # (N, out_h, out_w, C)


# -----------------------------------------------------------------------------
# Fused LSTM recurrence: W_hh stays resident in VMEM across all timesteps.
# -----------------------------------------------------------------------------
def _stable_sigmoid(x):
    return 0.5 * (jnp.tanh(0.5 * x) + 1.0)


def _lstm_kernel(xp_ref, whh_ref, h_ref):
    T = xp_ref.shape[0]
    Bp, Hn = h_ref.shape
    whh = whh_ref[...]                                     # (Hn, 4*Hn) bf16 in VMEM

    def step(t, carry):
        h, c = carry
        gates = xp_ref[t] + jnp.dot(h.astype(whh.dtype), whh,
                                    preferred_element_type=jnp.float32)
        i = _stable_sigmoid(gates[:, 0 * Hn:1 * Hn])       # PyTorch gate order i,f,g,o
        f = _stable_sigmoid(gates[:, 1 * Hn:2 * Hn])
        g = jnp.tanh(gates[:, 2 * Hn:3 * Hn])
        o = _stable_sigmoid(gates[:, 3 * Hn:4 * Hn])
        c = f * c + i * g
        h = o * jnp.tanh(c)
        return h, c

    init = (jnp.zeros((Bp, Hn), jnp.float32), jnp.zeros((Bp, Hn), jnp.float32))
    h, _ = lax.fori_loop(0, T, step, init)
    h_ref[...] = h


def pallas_lstm_last_hidden(xp, w_hh):
    """xp: (T, Bp, 4H) f32 pre-projected inputs (x@W_ih + b_ih + b_hh);
    w_hh: (H, 4H).  Returns the final hidden state (Bp, H) f32."""
    T, Bp, G = xp.shape
    Hn = G // 4
    return pl.pallas_call(
        _lstm_kernel,
        out_shape=jax.ShapeDtypeStruct((Bp, Hn), jnp.float32),
        grid_spec=pltpu.PrefetchScalarGridSpec(
            num_scalar_prefetch=0,
            grid=(1,),
            in_specs=[pl.BlockSpec((T, Bp, G), lambda i: (0, 0, 0)),
                      pl.BlockSpec((Hn, G), lambda i: (0, 0))],
            out_specs=pl.BlockSpec((Bp, Hn), lambda i: (0, 0)),
        ),
        compiler_params=pltpu.CompilerParams(
            dimension_semantics=("arbitrary",),
            vmem_limit_bytes=_VMEM_LIMIT),
    )(xp, w_hh.astype(jnp.bfloat16))


# -----------------------------------------------------------------------------
# Jitted preprocess / head wrappers + full ModelSpatial forward.
# -----------------------------------------------------------------------------
@jax.jit
def _preprocess(inputs):
    B, T, C, H, W = inputs.shape
    x = inputs.transpose(1, 0, 2, 3, 4).reshape(T * B, C, H, W)   # frame-major
    x = x.transpose(0, 2, 3, 1)                                   # NHWC
    x = bilinear_resize_nhwc(x, 224, 448)
    return x.astype(jnp.bfloat16)


@partial(jax.jit, static_argnames=("frames",))
def _lstm_head(xd, w_ih, b_ih, b_hh, w_hh, lin1_w, lin1_b, lin2_w, lin2_b, frames):
    T = frames
    B = xd.shape[0] // T
    D = xd.shape[1] * xd.shape[2]                     # 63*119 = 7497
    feat = xd.reshape(T * B, D)                       # time-major rows (t, b)
    # Input projection for all timesteps at once (single weight-streaming matmul).
    xproj = pallas_matmul(feat, w_ih, out_dtype=jnp.float32)
    xproj = xproj + b_ih[None, :] + b_hh[None, :]
    Bp = max(8, _round_up(B, 8))
    xp = xproj.reshape(T, B, -1)
    if Bp != B:
        xp = jnp.pad(xp, ((0, 0), (0, Bp - B), (0, 0)))
    h = pallas_lstm_last_hidden(xp, w_hh)[:B]         # (B, 1024) final hidden

    y = pallas_matmul(h, lin1_w, out_dtype=jnp.float32) + lin1_b[None, :]
    y = pallas_matmul(y, lin2_w, out_dtype=jnp.float32) + lin2_b[None, :]
    y = jax.nn.sigmoid(y).reshape(B, 100, 200, 1)
    out = bilinear_resize_nhwc(y, 320, 640)           # (B, 320, 640, 1)
    return out.transpose(0, 3, 1, 2)                  # (B, 1, 320, 640)


_LAYERS = (("layer1", 1), ("layer2", 2), ("layer3", 2), ("layer4", 2), ("layer5", 1))


def model_forward(params, inputs):
    B, T = inputs.shape[0], inputs.shape[1]

    x = _preprocess(inputs)

    im = conv_block(x, params["conv1_scene"], stride=2, padding=3,
                    act="relu", frames=T)
    im = maxpool_3x3_s2_p1_nhwc(im)
    for name, layer_stride in _LAYERS:
        for bidx, blk in enumerate(params[name]):
            s = layer_stride if bidx == 0 else 1
            im = bottleneck_forward(im, blk, s, T)

    enc = conv_block(im, params["compress_w1"], stride=1, padding=0,
                     act="relu", frames=T)
    enc = conv_block(enc, params["compress_w2"], stride=1, padding=0,
                     act="relu", frames=T)

    xd = deconv_block(enc, params["deconv1_w"], 2, T)
    xd = deconv_block(xd, params["deconv2_w"], 2, T)
    # deconv3 + BN + ReLU + conv4(1x1, bias) + sigmoid fused in one epilogue.
    xd = deconv_block(xd, params["deconv3_w"], 2, T,
                      post_affine=(params["conv4_w"].reshape(()),
                                   params["conv4_b"].reshape(())))

    return _lstm_head(xd, params["lstm_w_ih"], params["lstm_b_ih"],
                      params["lstm_b_hh"], params["lstm_w_hh"],
                      params["lin1_w"], params["lin1_b"],
                      params["lin2_w"], params["lin2_b"], frames=T)


# -----------------------------------------------------------------------------
# Deterministic parameter init (shapes per ModelSpatial.__init__)
# -----------------------------------------------------------------------------
def init_params(key):
    keys = iter(jax.random.split(key, 128))
    nk = lambda: next(keys)

    def conv_w(cout, cin, kh, kw):
        n = kh * kw * cout
        return jax.random.normal(nk(), (cout, cin, kh, kw), jnp.float32) * math.sqrt(2.0 / n)

    def deconv_w(cin, cout, kh, kw):
        n = kh * kw * cout
        return jax.random.normal(nk(), (cin, cout, kh, kw), jnp.float32) * math.sqrt(2.0 / n)

    def unif(shape, bound, dtype=jnp.float32):
        return jax.random.uniform(nk(), shape, jnp.float32, -bound, bound).astype(dtype)

    p = {}
    p["conv1_scene"] = conv_w(64, 3, 7, 7)

    inplanes = 64

    def make_layer(planes, blocks, stride):
        nonlocal inplanes
        layer = []
        for bidx in range(blocks):
            needs_ds = (bidx == 0) and (stride != 1 or inplanes != planes * 4)
            blk = {
                "w1": conv_w(planes, inplanes, 1, 1),
                "w2": conv_w(planes, planes, 3, 3),
                "w3": conv_w(planes * 4, planes, 1, 1),
            }
            if needs_ds:
                blk["wd"] = conv_w(planes * 4, inplanes, 1, 1)
            layer.append(blk)
            inplanes = planes * 4
        return layer

    p["layer1"] = make_layer(64, 3, 1)
    p["layer2"] = make_layer(128, 4, 2)
    p["layer3"] = make_layer(256, 6, 2)
    p["layer4"] = make_layer(512, 3, 2)
    p["layer5"] = make_layer(256, 2, 1)

    p["compress_w1"] = conv_w(1024, 1024, 1, 1)
    p["compress_w2"] = conv_w(512, 1024, 1, 1)

    # Transposed-conv biases are omitted: exactly cancelled by training-mode BN.
    p["deconv1_w"] = deconv_w(512, 256, 3, 3)
    p["deconv2_w"] = deconv_w(256, 128, 3, 3)
    p["deconv3_w"] = deconv_w(128, 1, 3, 3)

    p["conv4_w"] = conv_w(1, 1, 1, 1)
    p["conv4_b"] = unif((1,), 1.0)

    kb = 1.0 / math.sqrt(1024.0)
    # LSTM weights stored pre-transposed as (in_features, 4*hidden); gate order i,f,g,o.
    # Big weight streams kept in bf16 (matmul operands are bf16 anyway).
    p["lstm_w_ih"] = unif((7497, 4096), kb, jnp.bfloat16)
    p["lstm_w_hh"] = unif((1024, 4096), kb, jnp.bfloat16)
    p["lstm_b_ih"] = unif((4096,), kb)
    p["lstm_b_hh"] = unif((4096,), kb)
    # Linear weights stored pre-transposed as (in_features, out_features).
    p["lin1_w"] = unif((1024, 8192), kb, jnp.bfloat16)
    p["lin1_b"] = unif((8192,), kb)
    kb2 = 1.0 / math.sqrt(8192.0)
    p["lin2_w"] = unif((8192, 20000), kb2, jnp.bfloat16)
    p["lin2_b"] = unif((20000,), kb2)
    return p


if __name__ == "__main__":
    key = jax.random.PRNGKey(0)
    params = init_params(key)
    # Small input: batch=1, seq=2, in_ch=3, 16x16 frames (the model itself
    # resizes every frame to 224x448 internally).
    inputs = jax.random.uniform(jax.random.fold_in(key, 999),
                                (1, 2, 3, 16, 16), jnp.float32)
    out = model_forward(params, inputs)
    out = jax.block_until_ready(out)
    assert out.shape == (1, 1, 320, 640), out.shape
    assert bool(jnp.all(jnp.isfinite(out)))
    print("KERNEL_OK")
</pallas_src>

<mosaic_0001>
module attributes {stable_mosaic.version = 11 : i64} {
  func.func @_matmul_kernel(%arg0: i32, %arg1: i32, %arg2: i32, %arg3: memref<112x16xf32, #tpu.memory_space<vmem>>, %arg4: memref<16x96xf32, #tpu.memory_space<vmem>>, %arg5: memref<112x96xf32, #tpu.memory_space<vmem>>, %arg6: memref<112x96xf32, #tpu.memory_space<vmem>>) attributes {dimension_semantics = [#tpu.dimension_semantics<parallel>, #tpu.dimension_semantics<parallel>, #tpu.dimension_semantics<arbitrary>], iteration_bounds = array<i64: 2, 1, 1>, scalar_prefetch = 0 : i64, scratch_operands = 1 : i64, tpu.core_type = #tpu.core_type<tc>, window_params = [{transform_indices = @transform_0, window_bounds = array<i64: 112, 16>}, {transform_indices = @transform_1, window_bounds = array<i64: 16, 96>}, {transform_indices = @transform_2, window_bounds = array<i64: 112, 96>}]} {
    %c0_i32 = arith.constant 0 : i32
    %0 = arith.cmpi eq, %arg2, %c0_i32 : i32
    %1 = arith.extui %0 : i1 to i32
    %c0_i32_0 = arith.constant 0 : i32
    %2 = arith.cmpi ne, %1, %c0_i32_0 : i32
    scf.if %2 {
      %cst_10 = arith.constant 0.000000e+00 : f32
      %12 = vector.broadcast %cst_10 : f32 to vector<112x96xf32>
      %c0_11 = arith.constant 0 : index
      %c0_12 = arith.constant 0 : index
      %13 = vector.load %arg6[%c0_11, %c0_12] : memref<112x96xf32, #tpu.memory_space<vmem>>, vector<112x96xf32>
      tpu.vector_store %arg6[%c0_11, %c0_12], %12 {strides = array<i32>} : memref<112x96xf32, #tpu.memory_space<vmem>>, vector<112x96xf32>,
    } else {
    }
    %c0 = arith.constant 0 : index
    %c0_1 = arith.constant 0 : index
    %3 = vector.load %arg6[%c0, %c0_1] : memref<112x96xf32, #tpu.memory_space<vmem>>, vector<112x96xf32>
    %c0_2 = arith.constant 0 : index
    %c0_3 = arith.constant 0 : index
    %4 = vector.load %arg3[%c0_2, %c0_3] : memref<112x16xf32, #tpu.memory_space<vmem>>, vector<112x16xf32>
    %c0_4 = arith.constant 0 : index
    %c0_5 = arith.constant 0 : index
    %5 = vector.load %arg4[%c0_4, %c0_5] : memref<16x96xf32, #tpu.memory_space<vmem>>, vector<16x96xf32>
    %cst = arith.constant dense<0.000000e+00> : vector<112x96xf32>
    %6 = tpu.matmul %4, %5, %cst {dimension_numbers = #tpu.dot_dimension_numbers<[1], [0], [0], [1], [0, 0, 1, 1], [], []>} : vector<112x16xf32>, vector<16x96xf32>, vector<112x96xf32> -> vector<112x96xf32>
    %7 = arith.addf %3, %6 : vector<112x96xf32>
    %c0_6 = arith.constant 0 : index
    %c0_7 = arith.constant 0 : index
    %8 = vector.load %arg6[%c0_6, %c0_7] : memref<112x96xf32, #tpu.memory_space<vmem>>, vector<112x96xf32>
    tpu.vector_store %arg6[%c0_6, %c0_7], %7 {strides = array<i32>} : memref<112x96xf32, #tpu.memory_space<vmem>>, vector<112x96xf32>,
    %c0_i32_8 = arith.constant 0 : i32
    %9 = arith.cmpi eq, %arg2, %c0_i32_8 : i32
    %10 = arith.extui %9 : i1 to i32
    %c0_i32_9 = arith.constant 0 : i32
    %11 = arith.cmpi ne, %10, %c0_i32_9 : i32
    scf.if %11 {
      %c0_10 = arith.constant 0 : index
      %c0_11 = arith.constant 0 : index
      %12 = vector.load %arg6[%c0_10, %c0_11] : memref<112x96xf32, #tpu.memory_space<vmem>>, vector<112x96xf32>
      %c0_12 = arith.constant 0 : index
      %c0_13 = arith.constant 0 : index
      %13 = vector.load %arg5[%c0_12, %c0_13] : memref<112x96xf32, #tpu.memory_space<vmem>>, vector<112x96xf32>
      tpu.vector_store %arg5[%c0_12, %c0_13], %12 {strides = array<i32>} : memref<112x96xf32, #tpu.memory_space<vmem>>, vector<112x96xf32>,
    } else {
    }
    return
  }
  func.func @transform_0(%arg0: i32, %arg1: i32, %arg2: i32) -> (i32, i32) {
    %c0_i32 = arith.constant 0 : i32
    return %arg0, %arg2 : i32, i32
  }
  func.func @transform_1(%arg0: i32, %arg1: i32, %arg2: i32) -> (i32, i32) {
    %c0_i32 = arith.constant 0 : i32
    return %arg2, %arg1 : i32, i32
  }
  func.func @transform_2(%arg0: i32, %arg1: i32, %arg2: i32) -> (i32, i32) {
    %c0_i32 = arith.constant 0 : i32
    return %arg0, %arg1 : i32, i32
  }
}

module attributes {stable_mosaic.version = 11 : i64} {
  func.func @_matmul_kernel(%arg0: i32, %arg1: i32, %arg2: i32, %arg3: memref<448x16xf32, #tpu.memory_space<vmem>>, %arg4: memref<16x512xf32, #tpu.memory_space<vmem>>, %arg5: memref<448x512xf32, #tpu.memory_space<vmem>>, %arg6: memref<448x512xf32, #tpu.memory_space<vmem>>) attributes {dimension_semantics = [#tpu.dimension_semantics<parallel>, #tpu.dimension_semantics<parallel>, #tpu.dimension_semantics<arbitrary>], iteration_bounds = array<i64: 1, 3, 1>, scalar_prefetch = 0 : i64, scratch_operands = 1 : i64, tpu.core_type = #tpu.core_type<tc>, window_params = [{transform_indices = @transform_0, window_bounds = array<i64: 448, 16>}, {transform_indices = @transform_1, window_bounds = array<i64: 16, 512>}, {transform_indices = @transform_2, window_bounds = array<i64: 448, 512>}]} {
    %c0_i32 = arith.constant 0 : i32
    %0 = arith.cmpi eq, %arg2, %c0_i32 : i32
    %1 = arith.extui %0 : i1 to i32
    %c0_i32_0 = arith.constant 0 : i32
    %2 = arith.cmpi ne, %1, %c0_i32_0 : i32
    scf.if %2 {
      %cst_10 = arith.constant 0.000000e+00 : f32
      %12 = vector.broadcast %cst_10 : f32 to vector<448x512xf32>
      %c0_11 = arith.constant 0 : index
      %c0_12 = arith.constant 0 : index
      %13 = vector.load %arg6[%c0_11, %c0_12] : memref<448x512xf32, #tpu.memory_space<vmem>>, vector<448x512xf32>
      tpu.vector_store %arg6[%c0_11, %c0_12], %12 {strides = array<i32>} : memref<448x512xf32, #tpu.memory_space<vmem>>, vector<448x512xf32>,
    } else {
    }
    %c0 = arith.constant 0 : index
    %c0_1 = arith.constant 0 : index
    %3 = vector.load %arg6[%c0, %c0_1] : memref<448x512xf32, #tpu.memory_space<vmem>>, vector<448x512xf32>
    %c0_2 = arith.constant 0 : index
    %c0_3 = arith.constant 0 : index
    %4 = vector.load %arg3[%c0_2, %c0_3] : memref<448x16xf32, #tpu.memory_space<vmem>>, vector<448x16xf32>
    %c0_4 = arith.constant 0 : index
    %c0_5 = arith.constant 0 : index
    %5 = vector.load %arg4[%c0_4, %c0_5] : memref<16x512xf32, #tpu.memory_space<vmem>>, vector<16x512xf32>
    %cst = arith.constant dense<0.000000e+00> : vector<448x512xf32>
    %6 = tpu.matmul %4, %5, %cst {dimension_numbers = #tpu.dot_dimension_numbers<[1], [0], [0], [1], [0, 0, 1, 1], [], []>} : vector<448x16xf32>, vector<16x512xf32>, vector<448x512xf32> -> vector<448x512xf32>
    %7 = arith.addf %3, %6 : vector<448x512xf32>
    %c0_6 = arith.constant 0 : index
    %c0_7 = arith.constant 0 : index
    %8 = vector.load %arg6[%c0_6, %c0_7] : memref<448x512xf32, #tpu.memory_space<vmem>>, vector<448x512xf32>
    tpu.vector_store %arg6[%c0_6, %c0_7], %7 {strides = array<i32>} : memref<448x512xf32, #tpu.memory_space<vmem>>, vector<448x512xf32>,
    %c0_i32_8 = arith.constant 0 : i32
    %9 = arith.cmpi eq, %arg2, %c0_i32_8 : i32
    %10 = arith.extui %9 : i1 to i32
    %c0_i32_9 = arith.constant 0 : i32
    %11 = arith.cmpi ne, %10, %c0_i32_9 : i32
    scf.if %11 {
      %c0_10 = arith.constant 0 : index
      %c0_11 = arith.constant 0 : index
      %12 = vector.load %arg6[%c0_10, %c0_11] : memref<448x512xf32, #tpu.memory_space<vmem>>, vector<448x512xf32>
      %c0_12 = arith.constant 0 : index
      %c0_13 = arith.constant 0 : index
      %13 = vector.load %arg5[%c0_12, %c0_13] : memref<448x512xf32, #tpu.memory_space<vmem>>, vector<448x512xf32>
      tpu.vector_store %arg5[%c0_12, %c0_13], %12 {strides = array<i32>} : memref<448x512xf32, #tpu.memory_space<vmem>>, vector<448x512xf32>,
    } else {
    }
    return
  }
  func.func @transform_0(%arg0: i32, %arg1: i32, %arg2: i32) -> (i32, i32) {
    %c0_i32 = arith.constant 0 : i32
    return %arg0, %arg2 : i32, i32
  }
  func.func @transform_1(%arg0: i32, %arg1: i32, %arg2: i32) -> (i32, i32) {
    %c0_i32 = arith.constant 0 : i32
    return %arg2, %arg1 : i32, i32
  }
  func.func @transform_2(%arg0: i32, %arg1: i32, %arg2: i32) -> (i32, i32) {
    %c0_i32 = arith.constant 0 : i32
    return %arg0, %arg1 : i32, i32
  }
}

</mosaic_0001>

<llo_original>
// kernel: _preprocess.2
$region0: #{_preprocess.2}
  #allocation0 [shape = 'u32[]', space=smem, size = 0x4, offset = 0x4, fixed_abs, tag = 'smem constant byte address 0x4 - core index']
  #allocation1 [shape = 'u32[144,128]{1,0:T(1,128)}', space=vmem, size = 0x12000, scoped, tag = 'internal scratch']
  #allocation2 [shape = 'f32[112,96]{1,0:T(8,128)}', space=vmem, size = 0xe000, scoped, tag = 'scratch operand']
  %s0 = inlined_call_operand.vmem [shape: f32[224,16], index: 0, kind: input, shape index: {}]
  %s1 = inlined_call_operand.vmem [shape: f32[16,96], index: 1, kind: input, shape index: {}]
  %s2 = inlined_call_operand.vmem [shape: f32[224,96], index: 2, kind: output, shape index: {}]
  %s3 = sld [smem:[#allocation0]]
  $region49: #{_preprocess.2} parent=0
    _
  %s5 = ssub.s32 1, %s3
  %s6 = scalar_select 0, %s5, %s3
  loop: start=0, step=1, limit=4
  $region2: #{_preprocess.2} parent=0 // loop_pre_header
    _
  $region3: #{_preprocess.2} parent=0 // loop_header
    %s8 = sphi 0, %s12
    %p9 = scmp.ge.s32.totalorder %s8, 4
    %s15 = sphi 0, %s34
    %s16 = sphi 0, %s30
    %s17 = sphi 0, %s26
    %s18 = sphi 0, %s15
    %s19 = sphi 0, %s16
    %s20 = sphi 0, %s17
    %s21 = sphi 0, %s18
    %s22 = sphi 0, %s19
    %s23 = sphi 0, %s20
    %s39 = sphi 0, %s41
    %s42 = sphi 0, %s39
    %s43 = sphi 0, %s42
    %s59 = sphi 0, %s43
    %s67 = sphi 0, %s69
    %s70 = sphi 0, %s67
    %s71 = sphi 0, %s70
    %s87 = sphi 0, %s71
    %s95 = sphi 0, %s97
    %s98 = sphi 0, %s95
    %s99 = sphi 0, %s98
    %s115 = sphi 0, %s99
  $region4: #{_preprocess.2} parent=0 // loop_header_branch
    %11 = sbr.rel (%p9) target = $region8
  $region5: #{_preprocess.2} parent=0 // loop_body
    %s13 = ssub.s32 %s8, 1
    %s14 = ssub.s32 %s8, 2
    %s24 = sadd.s32 1, %s17
    %p25 = scmp.ge.s32.totalorder %s24, 1
    %s26 = scalar_select %p25, 0, %s24
    %s27 = sadd.s32 1, %s16
    %s28 = scalar_select %p25, %s27, %s16
    %p29 = scmp.ge.s32.totalorder %s28, 1
    %s30 = scalar_select %p29, 0, %s28
    %s31 = sadd.s32 1, %s15
    %s32 = scalar_select %p29, %s31, %s15
    %p33 = scmp.ge.s32.totalorder %s32, 2
    %s34 = scalar_select %p33, 0, %s32
    %s35 = ssub.s32 %s15, %s34
    %s36 = ssub.s32 %s17, %s26
    %s37 = sor.u32 %s35, %s36
    %p38 = scmp.eq.s32.totalorder %s37, 0
    %s40 = sadd.s32 %s39, 1
    %s41 = scalar_select %p38, %s39, %s40
    %p44 = pneg %p38
    %p45 = scmp.eq.s32.totalorder %s8, 1
    %p46 = por %p44, %p45
    %p47 = scmp.ne.s32.totalorder %s39, %s42
    %p48 = scmp.eq.s32.totalorder %s8, 0
    %p49 = por %p47, %p48
    %p50 = scmp.ne.s32.totalorder %s39, %s42
    %p51 = scmp.eq.s32.totalorder %s13, 1
    %p52 = por %p50, %p51
    %p53 = scmp.ne.s32.totalorder %s42, %s43
    %p54 = scmp.eq.s32.totalorder %s13, 0
    %p55 = por %p53, %p54
    %p56 = scmp.ne.s32.totalorder %s42, %s43
    %p57 = scmp.eq.s32.totalorder %s14, 1
    %p58 = por %p56, %p57
    %p60 = scmp.ne.s32.totalorder %s43, %s59
    %p61 = scmp.eq.s32.totalorder %s14, 0
    %p62 = por %p60, %p61
    %s63 = ssub.s32 %s17, %s26
    %s64 = ssub.s32 %s16, %s30
    %s65 = sor.u32 %s63, %s64
    %p66 = scmp.eq.s32.totalorder %s65, 0
    %s68 = sadd.s32 %s67, 1
    %s69 = scalar_select %p66, %s67, %s68
    %p72 = pneg %p66
    %p73 = scmp.eq.s32.totalorder %s8, 1
    %p74 = por %p72, %p73
    %p75 = scmp.ne.s32.totalorder %s67, %s70
    %p76 = scmp.eq.s32.totalorder %s8, 0
    %p77 = por %p75, %p76
    %p78 = scmp.ne.s32.totalorder %s67, %s70
    %p79 = scmp.eq.s32.totalorder %s13, 1
    %p80 = por %p78, %p79
    %p81 = scmp.ne.s32.totalorder %s70, %s71
    %p82 = scmp.eq.s32.totalorder %s13, 0
    %p83 = por %p81, %p82
    %p84 = scmp.ne.s32.totalorder %s70, %s71
    %p85 = scmp.eq.s32.totalorder %s14, 1
    %p86 = por %p84, %p85
    %p88 = scmp.ne.s32.totalorder %s71, %s87
    %p89 = scmp.eq.s32.totalorder %s14, 0
    %p90 = por %p88, %p89
    %s91 = ssub.s32 %s15, %s34
    %s92 = ssub.s32 %s16, %s30
    %s93 = sor.u32 %s91, %s92
    %p94 = scmp.eq.s32.totalorder %s93, 0
    %s96 = sadd.s32 %s95, 1
    %s97 = scalar_select %p94, %s95, %s96
    %p100 = pneg %p94
    %p101 = scmp.eq.s32.totalorder %s8, 1
    %p102 = por %p100, %p101
    %p103 = scmp.ne.s32.totalorder %s95, %s98
    %p104 = scmp.eq.s32.totalorder %s8, 0
    %p105 = por %p103, %p104
    %p106 = scmp.ne.s32.totalorder %s95, %s98
    %p107 = scmp.eq.s32.totalorder %s13, 1
    %p108 = por %p106, %p107
    %p109 = scmp.ne.s32.totalorder %s98, %s99
    %p110 = scmp.eq.s32.totalorder %s13, 0
    %p111 = por %p109, %p110
    %p112 = scmp.ne.s32.totalorder %s98, %s99
    %p113 = scmp.eq.s32.totalorder %s14, 1
    %p114 = por %p112, %p113
    %p116 = scmp.ne.s32.totalorder %s99, %s115
    %p117 = scmp.eq.s32.totalorder %s14, 0
    %p118 = por %p116, %p117
    %p119 = scmp.le.s32.totalorder 1, %s8
    %p120 = scmp.lt.s32.totalorder %s8, 3
    %p121 = pnand %p119, %p120
    %p122 = pneg %p121
    // Predicated region
    $region9: #{_preprocess.2} parent=5 // pred_check
      _
    $region10: #{_preprocess.2} parent=5 // pred_check_branch
      %124 = sbr.rel (%p121) target = $region12
    $region11: #{_preprocess.2} parent=5 // pred_region
      %s125 = ssub.s32 %s8, 1
      // Predicated region
      $region13: #{_preprocess.2} parent=11 // pred_check
        %p126 = pneg %p83
      $region14: #{_preprocess.2} parent=11 // pred_check_branch
        %128 = sbr.rel (%p126) target = $region16
      $region15: #{_preprocess.2} parent=11 // pred_region
        %s129 = smul.u32 2, %s20
        %p130 = scmp.lt.s32.totalorder %s129, 1
        %s131 = scalar_select %p130, %s129, 1
        %p132 = scmp.lt.s32.totalorder %s19, 0
        %s133 = scalar_select %p132, %s19, 0
        %s134 = sadd.s32 %s133, %s131
        %s135 = smul.addr %s134, 8
        %s136 = scalar_lea.vmem %s1, %s135
        %s137 = smul.u32 2, %s20
      $region16: #{_preprocess.2} parent=11 // pred_fallthru
        _
    $region12: #{_preprocess.2} parent=5 // pred_fallthru
      _
    %p138 = scmp.lt.s32.totalorder %s8, 2
    // Predicated region
    $region17: #{_preprocess.2} parent=5 // pred_check
      %p139 = pneg %p138
    $region18: #{_preprocess.2} parent=5 // pred_check_branch
      %141 = sbr.rel (%p139) target = $region20
    $region19: #{_preprocess.2} parent=5 // pred_region
      // Predicated region
      $region21: #{_preprocess.2} parent=19 // pred_check
        %p142 = pneg %p49
      $region22: #{_preprocess.2} parent=19 // pred_check_branch
        %144 = sbr.rel (%p142) target = $region24
      $region23: #{_preprocess.2} parent=19 // pred_region
        %s145 = smul.u32 14, %s15
        %p146 = scmp.lt.s32.totalorder %s145, 27
        %s147 = scalar_select %p146, %s145, 27
        %p148 = scmp.lt.s32.totalorder %s17, 0
        %s149 = scalar_select %p148, %s17, 0
        %s150 = sadd.s32 %s149, %s147
        %s151 = smul.addr %s150, 8
        %s152 = scalar_lea.vmem %s0, %s151
        %s153 = smul.u32 14, %s15
      $region24: #{_preprocess.2} parent=19 // pred_fallthru
        _
    $region20: #{_preprocess.2} parent=5 // pred_fallthru
      _
    %p154 = scmp.le.s32.totalorder 1, %s8
    %p155 = scmp.lt.s32.totalorder %s8, 3
    %p156 = pnand %p154, %p155
    %p157 = pneg %p156
    // Predicated region
    $region25: #{_preprocess.2} parent=5 // pred_check
      _
    $region26: #{_preprocess.2} parent=5 // pred_check_branch
      %159 = sbr.rel (%p156) target = $region28
    $region27: #{_preprocess.2} parent=5 // pred_region
      %s160 = ssub.s32 %s8, 1
      %s161 = smul.u32 14, %s18
      %p162 = scmp.lt.s32.totalorder %s161, 27
      %s163 = scalar_select %p162, %s161, 27
      %p164 = scmp.lt.s32.totalorder %s20, 0
      %s165 = scalar_select %p164, %s20, 0
      %s166 = sadd.s32 %s165, %s163
      %s167 = smul.addr %s166, 8
      %s168 = scalar_lea.vmem %s0, %s167
      %p169 = pneg %p55
      %p170 = pneg %p52
      %s171 = smul.u32 2, %s20
      %p172 = scmp.lt.s32.totalorder %s171, 1
      %s173 = scalar_select %p172, %s171, 1
      %p174 = scmp.lt.s32.totalorder %s19, 0
      %s175 = scalar_select %p174, %s19, 0
      %s176 = sadd.s32 %s175, %s173
      %s177 = smul.addr %s176, 8
      %s178 = scalar_lea.vmem %s1, %s177
      %p179 = pneg %p83
      %p180 = pneg %p80
      %p181 = pneg %p111
      %p182 = pneg %p108
      %s183 = smul.u32 14, %s18
      %p184 = scmp.lt.s32.totalorder %s183, 27
      %s185 = scalar_select %p184, %s183, 27
      %p186 = scmp.lt.s32.totalorder %s19, 0
      %s187 = scalar_select %p186, %s19, 0
      %s188 = sadd.s32 %s187, %s185
      %s189 = smul.addr %s188, 8
      %s190 = scalar_lea.vmem %s2, %s189
      %s191 = smul.u32 14, %s18
      %p192 = scmp.lt.s32.totalorder %s191, 27
      %s193 = scalar_select %p192, %s191, 27
      %p194 = scmp.lt.s32.totalorder %s20, 0
      %s195 = scalar_select %p194, %s20, 0
      %s196 = sadd.s32 %s195, %s193
      %s197 = smul.addr %s196, 8
      %s198 = scalar_lea.vmem %s0, %s197
      %s199 = smul.u32 14, %s18
      %s200 = smul.u32 2, %s20
      %p201 = scmp.lt.s32.totalorder %s200, 1
      %s202 = scalar_select %p201, %s200, 1
      %p203 = scmp.lt.s32.totalorder %s19, 0
      %s204 = scalar_select %p203, %s19, 0
      %s205 = sadd.s32 %s204, %s202
      %s206 = smul.addr %s205, 8
      %s207 = scalar_lea.vmem %s1, %s206
      %s208 = smul.u32 2, %s20
      %s209 = smul.u32 14, %s18
      %p210 = scmp.lt.s32.totalorder %s209, 27
      %s211 = scalar_select %p210, %s209, 27
      %p212 = scmp.lt.s32.totalorder %s19, 0
      %s213 = scalar_select %p212, %s19, 0
      %s214 = sadd.s32 %s213, %s211
      %s215 = smul.addr %s214, 8
      %s216 = scalar_lea.vmem %s2, %s215
      %s217 = smul.u32 14, %s18
      %p218 = scmp.eq.s32.totalorder %s20, 0
      // Predicated region
      $region29: #{_preprocess.2} parent=27 // pred_check
        %p219 = pneg %p218
      $region30: #{_preprocess.2} parent=27 // pred_check_branch
        %221 = sbr.rel (%p219) target = $region32
      $region31: #{_preprocess.2} parent=27 // pred_region
        %vm222 = vcmask 785408
        %223 = vst.msk [vmem:[#allocation2] sm:$0xff] %vm222, 0.0
        %224 = vst.msk [vmem:[#allocation2 + $0x8] sm:$0xff] %vm222, 0.0
        %225 = vst.msk [vmem:[#allocation2 + $0x10] sm:$0xff] %vm222, 0.0
        %226 = vst.msk [vmem:[#allocation2 + $0x18] sm:$0xff] %vm222, 0.0
        %227 = vst.msk [vmem:[#allocation2 + $0x20] sm:$0xff] %vm222, 0.0
        %228 = vst.msk [vmem:[#allocation2 + $0x28] sm:$0xff] %vm222, 0.0
        %229 = vst.msk [vmem:[#allocation2 + $0x30] sm:$0xff] %vm222, 0.0
        %230 = vst.msk [vmem:[#allocation2 + $0x38] sm:$0xff] %vm222, 0.0
        %231 = vst.msk [vmem:[#allocation2 + $0x40] sm:$0xff] %vm222, 0.0
        %232 = vst.msk [vmem:[#allocation2 + $0x48] sm:$0xff] %vm222, 0.0
        %233 = vst.msk [vmem:[#allocation2 + $0x50] sm:$0xff] %vm222, 0.0
        %234 = vst.msk [vmem:[#allocation2 + $0x58] sm:$0xff] %vm222, 0.0
        %235 = vst.msk [vmem:[#allocation2 + $0x60] sm:$0xff] %vm222, 0.0
        %236 = vst.msk [vmem:[#allocation2 + $0x68] sm:$0xff] %vm222, 0.0
      $region32: #{_preprocess.2} parent=27 // pred_fallthru
        _
      %v237 = vld [vmem:[#allocation2] sm:$0xff]
      %v238 = vld [vmem:[#allocation2 + $0x8] sm:$0xff]
      %v239 = vld [vmem:[#allocation2 + $0x10] sm:$0xff]
      %v240 = vld [vmem:[#allocation2 + $0x18] sm:$0xff]
      %v241 = vld [vmem:[#allocation2 + $0x20] sm:$0xff]
      %v242 = vld [vmem:[#allocation2 + $0x28] sm:$0xff]
      %v243 = vld [vmem:[#allocation2 + $0x30] sm:$0xff]
      %v244 = vld [vmem:[#allocation2 + $0x38] sm:$0xff]
      %v245 = vld [vmem:[#allocation2 + $0x40] sm:$0xff]
      %v246 = vld [vmem:[#allocation2 + $0x48] sm:$0xff]
      %v247 = vld [vmem:[#allocation2 + $0x50] sm:$0xff]
      %v248 = vld [vmem:[#allocation2 + $0x58] sm:$0xff]
      %v249 = vld [vmem:[#allocation2 + $0x60] sm:$0xff]
      %v250 = vld [vmem:[#allocation2 + $0x68] sm:$0xff]
      %v251 = vld [vmem:[%s198] sm:$0xff]
      %v252 = vld [vmem:[%s198 + $0x8] sm:$0xff]
      %v253 = vld [vmem:[%s198 + $0x10] sm:$0xff]
      %v254 = vld [vmem:[%s198 + $0x18] sm:$0xff]
      %v255 = vld [vmem:[%s198 + $0x20] sm:$0xff]
      %v256 = vld [vmem:[%s198 + $0x28] sm:$0xff]
      %v257 = vld [vmem:[%s198 + $0x30] sm:$0xff]
      %v258 = vld [vmem:[%s198 + $0x38] sm:$0xff]
      %v259 = vld [vmem:[%s198 + $0x40] sm:$0xff]
      %v260 = vld [vmem:[%s198 + $0x48] sm:$0xff]
      %v261 = vld [vmem:[%s198 + $0x50] sm:$0xff]
      %v262 = vld [vmem:[%s198 + $0x58] sm:$0xff]
      %v263 = vld [vmem:[%s198 + $0x60] sm:$0xff]
      %v264 = vld [vmem:[%s198 + $0x68] sm:$0xff]
      %v265 = vld [vmem:[%s207] sm:$0xff]
      %v266 = vld [vmem:[%s207 + $0x8] sm:$0xff]
      %vm267 = vcmask 130048
      %v269 = vsel %vm267, %v251, 0
      %v272 = vsel %vm267, %v252, 0
      %v275 = vsel %vm267, %v253, 0
      %v278 = vsel %vm267, %v254, 0
      %v281 = vsel %vm267, %v255, 0
      %v284 = vsel %vm267, %v256, 0
      %v287 = vsel %vm267, %v257, 0
      %v290 = vsel %vm267, %v258, 0
      %v293 = vsel %vm267, %v259, 0
      %v296 = vsel %vm267, %v260, 0
      %v299 = vsel %vm267, %v261, 0
      %v302 = vsel %vm267, %v262, 0
      %v305 = vsel %vm267, %v263, 0
      %v308 = vsel %vm267, %v264, 0
      %310 = vmatprep.subr.mxu0 0.0
      %311 = vmatpush1.msra.mxu0 %v265
      %312 = vmatprep.subr.mxu0 0.0
      %313 = vmatpush1.msra.mxu0 %v266
      %314 = vmatprep.subr.mxu0 0.0
      %315 = vmatpush1.msra.mxu0 0.0
      %316 = vmatprep.subr.mxu0 0.0
      %317 = vmatpush1.msra.mxu0 0.0
      %318 = vmatprep.subr.mxu0 0.0
      %319 = vmatpush1.msra.mxu0 0.0
      %320 = vmatprep.subr.mxu0 0.0
      %321 = vmatpush1.msra.mxu0 0.0
      %322 = vmatprep.subr.mxu0 0.0
      %323 = vmatpush1.msra.mxu0 0.0
      %324 = vmatprep.subr.mxu0 0.0
      %325 = vmatpush1.msra.mxu0 0.0
      %326 = vmatprep.subr.mxu0 0.0
      %327 = vmatpush1.msra.mxu0 0.0
      %328 = vmatprep.subr.mxu0 0.0
      %329 = vmatpush1.msra.mxu0 0.0
      %330 = vmatprep.subr.mxu0 0.0
      %331 = vmatpush1.msra.mxu0 0.0
      %332 = vmatprep.subr.mxu0 0.0
      %333 = vmatpush1.msra.mxu0 0.0
      %334 = vmatprep.subr.mxu0 0.0
      %335 = vmatpush1.msra.mxu0 0.0
      %336 = vmatprep.subr.mxu0 0.0
      %337 = vmatpush1.msra.mxu0 0.0
      %338 = vmatprep.subr.mxu0 0.0
      %339 = vmatpush1.msra.mxu0 0.0
      %340 = vmatprep.subr.mxu0 0.0
      %341 = vmatpush1.msra.mxu0 0.0
      %342 = vmatprep.subr.mxu0 0.0
      %343 = vmatpush1.msra.mxu0 0.0
      %344 = vmatprep.subr.mxu0 0.0
      %345 = vmatpush1.msra.mxu0 0.0
      %346 = vmatprep.subr.mxu0 0.0
      %347 = vmatpush1.msra.mxu0 0.0
      %348 = vmatprep.subr.mxu0 0.0
      %349 = vmatpush1.msra.mxu0 0.0
      %350 = vmatprep.subr.mxu0 0.0
      %351 = vmatpush1.msra.mxu0 0.0
      %352 = vmatprep.subr.mxu0 0.0
      %353 = vmatpush1.msra.mxu0 0.0
      %354 = vmatprep.subr.mxu0 0.0
      %355 = vmatpush1.msra.mxu0 0.0
      %356 = vmatprep.subr.mxu0 0.0
      %357 = vmatpush1.msra.mxu0 0.0
      %358 = vmatprep.subr.mxu0 0.0
      %359 = vmatpush1.msra.mxu0 0.0
      %360 = vmatprep.subr.mxu0 0.0
      %361 = vmatpush1.msra.mxu0 0.0
      %362 = vmatprep.subr.mxu0 0.0
      %363 = vmatpush1.msra.mxu0 0.0
      %364 = vmatprep.subr.mxu0 0.0
      %365 = vmatpush1.msra.mxu0 0.0
      %366 = vmatprep.subr.mxu0 0.0
      %367 = vmatpush1.msra.mxu0 0.0
      %368 = vmatprep.subr.mxu0 0.0
      %369 = vmatpush1.msra.mxu0 0.0
      %370 = vmatprep.subr.mxu0 0.0
      %371 = vmatpush1.msra.mxu0 0.0
      %372 = vmatprep.subr.mxu0 0.0
      %373 = vmatpush1.msra.mxu0 0.0
      %374 = vmatprep.mubr.f32.mxu0 0.0
      %375 = vmatmul.mubr.f32.gmra.mrb[0].mxu0 %v269
      %v376 = vpop.f32.mrb[0].mxu0
      %v377 = vadd.f32 0.0, %v376
      %v378 = vpop.f32.mrb[0].mxu0
      %379 = vmatprep.mubr.f32.mxu0 0.0
      %380 = vmatmul.mubr.f32.gmra.mrb[0].mxu0 %v272
      %v381 = vpop.f32.mrb[0].mxu0
      %v382 = vadd.f32 0.0, %v381
      %v383 = vpop.f32.mrb[0].mxu0
      %384 = vmatprep.mubr.f32.mxu0 0.0
      %385 = vmatmul.mubr.f32.gmra.mrb[0].mxu0 %v275
      %v386 = vpop.f32.mrb[0].mxu0
      %v387 = vadd.f32 0.0, %v386
      %v388 = vpop.f32.mrb[0].mxu0
      %389 = vmatprep.mubr.f32.mxu0 0.0
      %390 = vmatmul.mubr.f32.gmra.mrb[0].mxu0 %v278
      %v391 = vpop.f32.mrb[0].mxu0
      %v392 = vadd.f32 0.0, %v391
      %v393 = vpop.f32.mrb[0].mxu0
      %394 = vmatprep.mubr.f32.mxu0 0.0
      %395 = vmatmul.mubr.f32.gmra.mrb[0].mxu0 %v281
      %v396 = vpop.f32.mrb[0].mxu0
      %v397 = vadd.f32 0.0, %v396
      %v398 = vpop.f32.mrb[0].mxu0
      %399 = vmatprep.mubr.f32.mxu0 0.0
      %400 = vmatmul.mubr.f32.gmra.mrb[0].mxu0 %v284
      %v401 = vpop.f32.mrb[0].mxu0
      %v402 = vadd.f32 0.0, %v401
      %v403 = vpop.f32.mrb[0].mxu0
      %404 = vmatprep.mubr.f32.mxu0 0.0
      %405 = vmatmul.mubr.f32.gmra.mrb[0].mxu0 %v287
      %v406 = vpop.f32.mrb[0].mxu0
      %v407 = vadd.f32 0.0, %v406
      %v408 = vpop.f32.mrb[0].mxu0
      %409 = vmatprep.mubr.f32.mxu0 0.0
      %410 = vmatmul.mubr.f32.gmra.mrb[0].mxu0 %v290
      %v411 = vpop.f32.mrb[0].mxu0
      %v412 = vadd.f32 0.0, %v411
      %v413 = vpop.f32.mrb[0].mxu0
      %414 = vmatprep.mubr.f32.mxu0 0.0
      %415 = vmatmul.mubr.f32.gmra.mrb[0].mxu0 %v293
      %v416 = vpop.f32.mrb[0].mxu0
      %v417 = vadd.f32 0.0, %v416
      %v418 = vpop.f32.mrb[0].mxu0
      %419 = vmatprep.mubr.f32.mxu0 0.0
      %420 = vmatmul.mubr.f32.gmra.mrb[0].mxu0 %v296
      %v421 = vpop.f32.mrb[0].mxu0
      %v422 = vadd.f32 0.0, %v421
      %v423 = vpop.f32.mrb[0].mxu0
      %424 = vmatprep.mubr.f32.mxu0 0.0
      %425 = vmatmul.mubr.f32.gmra.mrb[0].mxu0 %v299
      %v426 = vpop.f32.mrb[0].mxu0
      %v427 = vadd.f32 0.0, %v426
      %v428 = vpop.f32.mrb[0].mxu0
      %429 = vmatprep.mubr.f32.mxu0 0.0
      %430 = vmatmul.mubr.f32.gmra.mrb[0].mxu0 %v302
      %v431 = vpop.f32.mrb[0].mxu0
      %v432 = vadd.f32 0.0, %v431
      %v433 = vpop.f32.mrb[0].mxu0
      %434 = vmatprep.mubr.f32.mxu0 0.0
      %435 = vmatmul.mubr.f32.gmra.mrb[0].mxu0 %v305
      %v436 = vpop.f32.mrb[0].mxu0
      %v437 = vadd.f32 0.0, %v436
      %v438 = vpop.f32.mrb[0].mxu0
      %439 = vmatprep.mubr.f32.mxu0 0.0
      %440 = vmatmul.mubr.f32.gmra.mrb[0].mxu0 %v308
      %v441 = vpop.f32.mrb[0].mxu0
      %v442 = vadd.f32 0.0, %v441
      %v443 = vpop.f32.mrb[0].mxu0
      %444 = vdwg.mxu0
      %v445 = vadd.f32 %v237, %v377
      %v446 = vadd.f32 %v238, %v382
      %v447 = vadd.f32 %v239, %v387
      %v448 = vadd.f32 %v240, %v392
      %v449 = vadd.f32 %v241, %v397
      %v450 = vadd.f32 %v242, %v402
      %v451 = vadd.f32 %v243, %v407
      %v452 = vadd.f32 %v244, %v412
      %v453 = vadd.f32 %v245, %v417
      %v454 = vadd.f32 %v246, %v422
      %v455 = vadd.f32 %v247, %v427
      %v456 = vadd.f32 %v248, %v432
      %v457 = vadd.f32 %v249, %v437
      %v458 = vadd.f32 %v250, %v442
      %vm459 = vcmask 785408
      %460 = vst.msk [vmem:[#allocation2] sm:$0xff] %vm459, %v445
      %461 = vst.msk [vmem:[#allocation2 + $0x8] sm:$0xff] %vm459, %v446
      %462 = vst.msk [vmem:[#allocation2 + $0x10] sm:$0xff] %vm459, %v447
      %463 = vst.msk [vmem:[#allocation2 + $0x18] sm:$0xff] %vm459, %v448
      %464 = vst.msk [vmem:[#allocation2 + $0x20] sm:$0xff] %vm459, %v449
      %465 = vst.msk [vmem:[#allocation2 + $0x28] sm:$0xff] %vm459, %v450
      %466 = vst.msk [vmem:[#allocation2 + $0x30] sm:$0xff] %vm459, %v451
      %467 = vst.msk [vmem:[#allocation2 + $0x38] sm:$0xff] %vm459, %v452
      %468 = vst.msk [vmem:[#allocation2 + $0x40] sm:$0xff] %vm459, %v453
      %469 = vst.msk [vmem:[#allocation2 + $0x48] sm:$0xff] %vm459, %v454
      %470 = vst.msk [vmem:[#allocation2 + $0x50] sm:$0xff] %vm459, %v455
      %471 = vst.msk [vmem:[#allocation2 + $0x58] sm:$0xff] %vm459, %v456
      %472 = vst.msk [vmem:[#allocation2 + $0x60] sm:$0xff] %vm459, %v457
      %473 = vst.msk [vmem:[#allocation2 + $0x68] sm:$0xff] %vm459, %v458
      // Predicated region
      $region33: #{_preprocess.2} parent=27 // pred_check
        %p474 = pneg %p218
      $region34: #{_preprocess.2} parent=27 // pred_check_branch
        %476 = sbr.rel (%p474) target = $region36
      $region35: #{_preprocess.2} parent=27 // pred_region
        %v477 = vld [vmem:[#allocation2] sm:$0xff]
        %v478 = vld [vmem:[#allocation2 + $0x8] sm:$0xff]
        %v479 = vld [vmem:[#allocation2 + $0x10] sm:$0xff]
        %v480 = vld [vmem:[#allocation2 + $0x18] sm:$0xff]
        %v481 = vld [vmem:[#allocation2 + $0x20] sm:$0xff]
        %v482 = vld [vmem:[#allocation2 + $0x28] sm:$0xff]
        %v483 = vld [vmem:[#allocation2 + $0x30] sm:$0xff]
        %v484 = vld [vmem:[#allocation2 + $0x38] sm:$0xff]
        %v485 = vld [vmem:[#allocation2 + $0x40] sm:$0xff]
        %v486 = vld [vmem:[#allocation2 + $0x48] sm:$0xff]
        %v487 = vld [vmem:[#allocation2 + $0x50] sm:$0xff]
        %v488 = vld [vmem:[#allocation2 + $0x58] sm:$0xff]
        %v489 = vld [vmem:[#allocation2 + $0x60] sm:$0xff]
        %v490 = vld [vmem:[#allocation2 + $0x68] sm:$0xff]
        %491 = vst.msk [vmem:[%s216] sm:$0xff] %vm459, %v477
        %492 = vst.msk [vmem:[%s216 + $0x8] sm:$0xff] %vm459, %v478
        %493 = vst.msk [vmem:[%s216 + $0x10] sm:$0xff] %vm459, %v479
        %494 = vst.msk [vmem:[%s216 + $0x18] sm:$0xff] %vm459, %v480
        %495 = vst.msk [vmem:[%s216 + $0x20] sm:$0xff] %vm459, %v481
        %496 = vst.msk [vmem:[%s216 + $0x28] sm:$0xff] %vm459, %v482
        %497 = vst.msk [vmem:[%s216 + $0x30] sm:$0xff] %vm459, %v483
        %498 = vst.msk [vmem:[%s216 + $0x38] sm:$0xff] %vm459, %v484
        %499 = vst.msk [vmem:[%s216 + $0x40] sm:$0xff] %vm459, %v485
        %500 = vst.msk [vmem:[%s216 + $0x48] sm:$0xff] %vm459, %v486
        %501 = vst.msk [vmem:[%s216 + $0x50] sm:$0xff] %vm459, %v487
        %502 = vst.msk [vmem:[%s216 + $0x58] sm:$0xff] %vm459, %v488
        %503 = vst.msk [vmem:[%s216 + $0x60] sm:$0xff] %vm459, %v489
        %504 = vst.msk [vmem:[%s216 + $0x68] sm:$0xff] %vm459, %v490
      $region36: #{_preprocess.2} parent=27 // pred_fallthru
        _
      %s505 = smul.u32 14, %s18
      %p506 = scmp.lt.s32.totalorder %s505, 27
      %s507 = scalar_select %p506, %s505, 27
      %p508 = scmp.lt.s32.totalorder %s19, 0
      %s509 = scalar_select %p508, %s19, 0
      %s510 = sadd.s32 %s509, %s507
      %s511 = smul.addr %s510, 8
      %s512 = scalar_lea.vmem %s2, %s511
      // Predicated region
      $region37: #{_preprocess.2} parent=27 // pred_check
        %p513 = pneg %p108
      $region38: #{_preprocess.2} parent=27 // pred_check_branch
        %515 = sbr.rel (%p513) target = $region40
      $region39: #{_preprocess.2} parent=27 // pred_region
        %s516 = smul.u32 14, %s18
      $region40: #{_preprocess.2} parent=27 // pred_fallthru
        _
    $region28: #{_preprocess.2} parent=5 // pred_fallthru
      _
    %p517 = scmp.le.s32.totalorder 2, %s8
    // Predicated region
    $region41: #{_preprocess.2} parent=5 // pred_check
      %p518 = pneg %p517
    $region42: #{_preprocess.2} parent=5 // pred_check_branch
      %520 = sbr.rel (%p518) target = $region44
    $region43: #{_preprocess.2} parent=5 // pred_region
      %s521 = ssub.s32 %s8, 2
      // Predicated region
      $region45: #{_preprocess.2} parent=43 // pred_check
        %p522 = pneg %p114
      $region46: #{_preprocess.2} parent=43 // pred_check_branch
        %524 = sbr.rel (%p522) target = $region48
      $region47: #{_preprocess.2} parent=43 // pred_region
        %s525 = smul.u32 14, %s21
        %p526 = scmp.lt.s32.totalorder %s525, 27
        %s527 = scalar_select %p526, %s525, 27
        %p528 = scmp.lt.s32.totalorder %s22, 0
        %s529 = scalar_select %p528, %s22, 0
        %s530 = sadd.s32 %s529, %s527
        %s531 = smul.addr %s530, 8
        %s532 = scalar_lea.vmem %s2, %s531
      $region48: #{_preprocess.2} parent=43 // pred_fallthru
        _
    $region44: #{_preprocess.2} parent=5 // pred_fallthru
      _
  $region6: #{_preprocess.2} parent=0 // loop_footer
    %s12 = sadd.s32 1, %s8
  $region7: #{_preprocess.2} parent=0 // loop_footer_branch
    %7 = sbr.rel target = $region3
  $region8: #{_preprocess.2} parent=0 // loop_exit
    _

// kernel: _preprocess.3
$region0: #{_preprocess.3}
  #allocation0 [shape = 'u32[]', space=smem, size = 0x4, offset = 0x4, fixed_abs, tag = 'smem constant byte address 0x4 - core index']
  #allocation1 [shape = 'u32[144,128]{1,0:T(1,128)}', space=vmem, size = 0x12000, scoped, tag = 'internal scratch']
  #allocation2 [shape = 'f32[448,512]{1,0:T(8,128)}', space=vmem, size = 0xe0000, scoped, tag = 'scratch operand']
  %s0 = inlined_call_operand.vmem [shape: f32[448,16], index: 0, kind: input, shape index: {}]
  %s1 = inlined_call_operand.vmem [shape: f32[16,1344], index: 1, kind: input, shape index: {}]
  %s2 = inlined_call_operand.vmem [shape: f32[448,1344], index: 2, kind: output, shape index: {}]
  %s3 = sld [smem:[#allocation0]]
  $region177: #{_preprocess.3} parent=0
    _
  %s5 = ssub.s32 1, %s3
  %s6 = scalar_select 0, %s5, %s3
  $region1: #{_preprocess.3} parent=0
    #allocation3 [shape = 'u8[65536]{0}', space=vmem, size = 0x10000, scoped, tag = 'input window, operand 1']
    #allocation4 [shape = 'u8[1835008]{0}', space=vmem, size = 0x1c0000, scoped, tag = 'output window, operand 0']
    loop: start=0, step=1, limit=5
    $region2: #{_preprocess.3} parent=1 // loop_pre_header
      _
    $region3: #{_preprocess.3} parent=1 // loop_header
      %s8 = sphi 0, %s12
      %p9 = scmp.ge.s32.totalorder %s8, 5
      %s15 = sphi 0, %s34
      %s16 = sphi 0, %s30
      %s17 = sphi 0, %s26
      %s18 = sphi 0, %s15
      %s19 = sphi 0, %s16
      %s20 = sphi 0, %s17
      %s21 = sphi 0, %s18
      %s22 = sphi 0, %s19
      %s23 = sphi 0, %s20
      %s39 = sphi 0, %s41
      %s42 = sphi 0, %s39
      %s43 = sphi 0, %s42
      %s59 = sphi 0, %s43
      %s67 = sphi 0, %s69
      %s70 = sphi 0, %s67
      %s71 = sphi 0, %s70
      %s87 = sphi 0, %s71
      %s95 = sphi 0, %s97
      %s98 = sphi 0, %s95
      %s99 = sphi 0, %s98
      %s115 = sphi 0, %s99
    $region4: #{_preprocess.3} parent=1 // loop_header_branch
      %11 = sbr.rel (%p9) target = $region8
    $region5: #{_preprocess.3} parent=1 // loop_body
      %s13 = ssub.s32 %s8, 1
      %s14 = ssub.s32 %s8, 2
      %s24 = sadd.s32 1, %s17
      %p25 = scmp.ge.s32.totalorder %s24, 1
      %s26 = scalar_select %p25, 0, %s24
      %s27 = sadd.s32 1, %s16
      %s28 = scalar_select %p25, %s27, %s16
      %p29 = scmp.ge.s32.totalorder %s28, 3
      %s30 = scalar_select %p29, 0, %s28
      %s31 = sadd.s32 1, %s15
      %s32 = scalar_select %p29, %s31, %s15
      %p33 = scmp.ge.s32.totalorder %s32, 1
      %s34 = scalar_select %p33, 0, %s32
      %s35 = ssub.s32 %s15, %s34
      %s36 = ssub.s32 %s17, %s26
      %s37 = sor.u32 %s35, %s36
      %p38 = scmp.eq.s32.totalorder %s37, 0
      %s40 = sadd.s32 %s39, 1
      %s41 = scalar_select %p38, %s39, %s40
      %p44 = pneg %p38
      %p45 = scmp.eq.s32.totalorder %s8, 2
      %p46 = por %p44, %p45
      %p47 = scmp.ne.s32.totalorder %s39, %s42
      %p48 = scmp.eq.s32.totalorder %s8, 0
      %p49 = por %p47, %p48
      %p50 = scmp.ne.s32.totalorder %s39, %s42
      %p51 = scmp.eq.s32.totalorder %s13, 2
      %p52 = por %p50, %p51
      %p53 = scmp.ne.s32.totalorder %s42, %s43
      %p54 = scmp.eq.s32.totalorder %s13, 0
      %p55 = por %p53, %p54
      %p56 = scmp.ne.s32.totalorder %s42, %s43
      %p57 = scmp.eq.s32.totalorder %s14, 2
      %p58 = por %p56, %p57
      %p60 = scmp.ne.s32.totalorder %s43, %s59
      %p61 = scmp.eq.s32.totalorder %s14, 0
      %p62 = por %p60, %p61
      %s63 = ssub.s32 %s17, %s26
      %s64 = ssub.s32 %s16, %s30
      %s65 = sor.u32 %s63, %s64
      %p66 = scmp.eq.s32.totalorder %s65, 0
      %s68 = sadd.s32 %s67, 1
      %s69 = scalar_select %p66, %s67, %s68
      %p72 = pneg %p66
      %p73 = scmp.eq.s32.totalorder %s8, 2
      %p74 = por %p72, %p73
      %p75 = scmp.ne.s32.totalorder %s67, %s70
      %p76 = scmp.eq.s32.totalorder %s8, 0
      %p77 = por %p75, %p76
      %p78 = scmp.ne.s32.totalorder %s67, %s70
      %p79 = scmp.eq.s32.totalorder %s13, 2
      %p80 = por %p78, %p79
      %p81 = scmp.ne.s32.totalorder %s70, %s71
      %p82 = scmp.eq.s32.totalorder %s13, 0
      %p83 = por %p81, %p82
      %p84 = scmp.ne.s32.totalorder %s70, %s71
      %p85 = scmp.eq.s32.totalorder %s14, 2
      %p86 = por %p84, %p85
      %p88 = scmp.ne.s32.totalorder %s71, %s87
      %p89 = scmp.eq.s32.totalorder %s14, 0
      %p90 = por %p88, %p89
      %s91 = ssub.s32 %s15, %s34
      %s92 = ssub.s32 %s16, %s30
      %s93 = sor.u32 %s91, %s92
      %p94 = scmp.eq.s32.totalorder %s93, 0
      %s96 = sadd.s32 %s95, 1
      %s97 = scalar_select %p94, %s95, %s96
      %p100 = pneg %p94
      %p101 = scmp.eq.s32.totalorder %s8, 2
      %p102 = por %p100, %p101
      %p103 = scmp.ne.s32.totalorder %s95, %s98
      %p104 = scmp.eq.s32.totalorder %s8, 0
      %p105 = por %p103, %p104
      %p106 = scmp.ne.s32.totalorder %s95, %s98
      %p107 = scmp.eq.s32.totalorder %s13, 2
      %p108 = por %p106, %p107
      %p109 = scmp.ne.s32.totalorder %s98, %s99
      %p110 = scmp.eq.s32.totalorder %s13, 0
      %p111 = por %p109, %p110
      %p112 = scmp.ne.s32.totalorder %s98, %s99
      %p113 = scmp.eq.s32.totalorder %s14, 2
      %p114 = por %p112, %p113
      %p116 = scmp.ne.s32.totalorder %s99, %s115
      %p117 = scmp.eq.s32.totalorder %s14, 0
      %p118 = por %p116, %p117
      %p119 = scmp.le.s32.totalorder 1, %s8
      %p120 = scmp.lt.s32.totalorder %s8, 4
      %p121 = pnand %p119, %p120
      %p122 = pneg %p121
      // Predicated region
      $region9: #{_preprocess.3} parent=5 // pred_check
        _
      $region10: #{_preprocess.3} parent=5 // pred_check_branch
        %124 = sbr.rel (%p121) target = $region12
      $region11: #{_preprocess.3} parent=5 // pred_region
        %s125 = ssub.s32 %s8, 1
        // Predicated region
        $region13: #{_preprocess.3} parent=11 // pred_check
          %p126 = pneg %p55
        $region14: #{_preprocess.3} parent=11 // pred_check_branch
          %128 = sbr.rel (%p126) target = $region16
        $region15: #{_preprocess.3} parent=11 // pred_region
          %s129 = smul.u32 56, %s18
          %p130 = scmp.lt.s32.totalorder %s129, 55
          %s131 = scalar_select %p130, %s129, 55
          %p132 = scmp.lt.s32.totalorder %s20, 0
          %s133 = scalar_select %p132, %s20, 0
          %s134 = sadd.s32 %s133, %s131
          %s135 = smul.addr %s134, 8
          %s136 = scalar_lea.vmem %s0, %s135
          %s137 = smul.u32 56, %s18
        $region16: #{_preprocess.3} parent=11 // pred_fallthru
          _
      $region12: #{_preprocess.3} parent=5 // pred_fallthru
        _
      %p138 = scmp.lt.s32.totalorder %s8, 3
      // Predicated region
      $region17: #{_preprocess.3} parent=5 // pred_check
        %p139 = pneg %p138
      $region18: #{_preprocess.3} parent=5 // pred_check_branch
        %141 = sbr.rel (%p139) target = $region20
      $region19: #{_preprocess.3} parent=5 // pred_region
        // Predicated region
        $region21: #{_preprocess.3} parent=19 // pred_check
          %p142 = pneg %p77
        $region22: #{_preprocess.3} parent=19 // pred_check_branch
          %144 = sbr.rel (%p142) target = $region24
        $region23: #{_preprocess.3} parent=19 // pred_region
          %s145 = sand.u32 %s67, 1
          %s146 = sand.u32 %s67, 1
          %s147 = smul.addr %s146, 64
          %s148 = scalar_lea.vmem [#allocation3], %s147
          %s149 = smul.u32 2, %s17
          %s150 = smul.u32 4, %s16
          %s151 = ssub.s32 11, %s150
          %p152 = scmp.lt.s32.totalorder %s151, 4
          %s153 = scalar_select %p152, %s151, 4
          %s154 = smul.u32 256, %s153
          %p155 = scmp.ne.s32.totalorder 0, %s154
          %s156 = smul.addr %s149, 11
          %s157 = sadd.s32 %s150, %s156
          %s158 = smul.addr %s157, 8
          %s159 = scalar_lea.vmem %s1, %s158
          %s160 = smul.u32 %s153, 8
          // Predicated region
          $region25: #{_preprocess.3} parent=23 // pred_check
            %p161 = pneg %p155
          $region26: #{_preprocess.3} parent=23 // pred_check_branch
            %163 = sbr.rel (%p161) target = $region28
          $region27: #{_preprocess.3} parent=23 // pred_region
            %p164 = scmp.lt.u32.totalorder %s160, 8
            %p165 = pneg %p164
            // Predicated region
            $region29: #{_preprocess.3} parent=27 // pred_check
              _
            $region30: #{_preprocess.3} parent=27 // pred_check_branch
              %167 = sbr.rel (%p164) target = $region32
            $region31: #{_preprocess.3} parent=27 // pred_region
              %s184 = sand.u32 %s160, 7
              %p185 = scmp.eq.s32.totalorder %s184, 0
              // Predicated region
              $region44: #{_preprocess.3} parent=31 // pred_check
                %p186 = pneg %p185
              $region45: #{_preprocess.3} parent=31 // pred_check_branch
                %188 = sbr.rel (%p186) target = $region47
              $region46: #{_preprocess.3} parent=31 // pred_region
                %s189 = sshrl.u32 %s160, 3
                %s190 = sshrl.u32 %s189, 5
                // While loop
                $region48: #{_preprocess.3} parent=46 // loop_pre_header
                  _
                $region49: #{_preprocess.3} parent=46 // loop_header
                  %s194 = sphi 0, %s196
                  %p195 = scmp.ge.s32.totalorder %s194, %s190
                  %s199 = sphi 0, %s332
                  %s200 = sphi %s159, %s335
                  %s201 = sphi %s148, %s336
                $region50: #{_preprocess.3} parent=46 // loop_header_branch
                  %198 = sbr.rel (%p195) target = $region54
                $region51: #{_preprocess.3} parent=46 // loop_body
                  %v202 = vld [vmem:[%s200] sm:$0xff]
                  %203 = vst [vmem:[%s201] sm:$0xff] %v202
                  %v204 = vld [vmem:[%s200 + $0x8] sm:$0xff]
                  %205 = vst [vmem:[%s201 + $0x8] sm:$0xff] %v204
                  %v206 = vld [vmem:[%s200 + $0x10] sm:$0xff]
                  %207 = vst [vmem:[%s201 + $0x10] sm:$0xff] %v206
                  %v208 = vld [vmem:[%s200 + $0x18] sm:$0xff]
                  %209 = vst [vmem:[%s201 + $0x18] sm:$0xff] %v208
                  %v210 = vld [vmem:[%s200 + $0x20] sm:$0xff]
                  %211 = vst [vmem:[%s201 + $0x20] sm:$0xff] %v210
                  %v212 = vld [vmem:[%s200 + $0x28] sm:$0xff]
                  %213 = vst [vmem:[%s201 + $0x28] sm:$0xff] %v212
                  %v214 = vld [vmem:[%s200 + $0x30] sm:$0xff]
                  %215 = vst [vmem:[%s201 + $0x30] sm:$0xff] %v214
                  %v216 = vld [vmem:[%s200 + $0x38] sm:$0xff]
                  %217 = vst [vmem:[%s201 + $0x38] sm:$0xff] %v216
                  %v218 = vld [vmem:[%s200 + $0x40] sm:$0xff]
                  %219 = vst [vmem:[%s201 + $0x40] sm:$0xff] %v218
                  %v220 = vld [vmem:[%s200 + $0x48] sm:$0xff]
                  %221 = vst [vmem:[%s201 + $0x48] sm:$0xff] %v220
                  %v222 = vld [vmem:[%s200 + $0x50] sm:$0xff]
                  %223 = vst [vmem:[%s201 + $0x50] sm:$0xff] %v222
                  %v224 = vld [vmem:[%s200 + $0x58] sm:$0xff]
                  %225 = vst [vmem:[%s201 + $0x58] sm:$0xff] %v224
                  %v226 = vld [vmem:[%s200 + $0x60] sm:$0xff]
                  %227 = vst [vmem:[%s201 + $0x60] sm:$0xff] %v226
                  %v228 = vld [vmem:[%s200 + $0x68] sm:$0xff]
                  %229 = vst [vmem:[%s201 + $0x68] sm:$0xff] %v228
                  %v230 = vld [vmem:[%s200 + $0x70] sm:$0xff]
                  %231 = vst [vmem:[%s201 + $0x70] sm:$0xff] %v230
                  %v232 = vld [vmem:[%s200 + $0x78] sm:$0xff]
                  %233 = vst [vmem:[%s201 + $0x78] sm:$0xff] %v232
                  %v234 = vld [vmem:[%s200 + $0x80] sm:$0xff]
                  %235 = vst [vmem:[%s201 + $0x80] sm:$0xff] %v234
                  %v236 = vld [vmem:[%s200 + $0x88] sm:$0xff]
                  %237 = vst [vmem:[%s201 + $0x88] sm:$0xff] %v236
                  %v238 = vld [vmem:[%s200 + $0x90] sm:$0xff]
                  %239 = vst [vmem:[%s201 + $0x90] sm:$0xff] %v238
                  %v240 = vld [vmem:[%s200 + $0x98] sm:$0xff]
                  %241 = vst [vmem:[%s201 + $0x98] sm:$0xff] %v240
                  %v242 = vld [vmem:[%s200 + $0xa0] sm:$0xff]
                  %243 = vst [vmem:[%s201 + $0xa0] sm:$0xff] %v242
                  %v244 = vld [vmem:[%s200 + $0xa8] sm:$0xff]
                  %245 = vst [vmem:[%s201 + $0xa8] sm:$0xff] %v244
                  %v246 = vld [vmem:[%s200 + $0xb0] sm:$0xff]
                  %247 = vst [vmem:[%s201 + $0xb0] sm:$0xff] %v246
                  %v248 = vld [vmem:[%s200 + $0xb8] sm:$0xff]
                  %249 = vst [vmem:[%s201 + $0xb8] sm:$0xff] %v248
                  %v250 = vld [vmem:[%s200 + $0xc0] sm:$0xff]
                  %251 = vst [vmem:[%s201 + $0xc0] sm:$0xff] %v250
                  %v252 = vld [vmem:[%s200 + $0xc8] sm:$0xff]
                  %253 = vst [vmem:[%s201 + $0xc8] sm:$0xff] %v252
                  %v254 = vld [vmem:[%s200 + $0xd0] sm:$0xff]
                  %255 = vst [vmem:[%s201 + $0xd0] sm:$0xff] %v254
                  %v256 = vld [vmem:[%s200 + $0xd8] sm:$0xff]
                  %257 = vst [vmem:[%s201 + $0xd8] sm:$0xff] %v256
                  %v258 = vld [vmem:[%s200 + $0xe0] sm:$0xff]
                  %259 = vst [vmem:[%s201 + $0xe0] sm:$0xff] %v258
                  %v260 = vld [vmem:[%s200 + $0xe8] sm:$0xff]
                  %261 = vst [vmem:[%s201 + $0xe8] sm:$0xff] %v260
                  %v262 = vld [vmem:[%s200 + $0xf0] sm:$0xff]
                  %263 = vst [vmem:[%s201 + $0xf0] sm:$0xff] %v262
                  %v264 = vld [vmem:[%s200 + $0xf8] sm:$0xff]
                  %265 = vst [vmem:[%s201 + $0xf8] sm:$0xff] %v264
                  %v266 = vld [vmem:[%s200 + $0x58] sm:$0xff]
                  %267 = vst [vmem:[%s201 + $0x20] sm:$0xff] %v266
                  %v268 = vld [vmem:[%s200 + $0x60] sm:$0xff]
                  %269 = vst [vmem:[%s201 + $0x28] sm:$0xff] %v268
                  %v270 = vld [vmem:[%s200 + $0x68] sm:$0xff]
                  %271 = vst [vmem:[%s201 + $0x30] sm:$0xff] %v270
                  %v272 = vld [vmem:[%s200 + $0x70] sm:$0xff]
                  %273 = vst [vmem:[%s201 + $0x38] sm:$0xff] %v272
                  %v274 = vld [vmem:[%s200 + $0x78] sm:$0xff]
                  %275 = vst [vmem:[%s201 + $0x40] sm:$0xff] %v274
                  %v276 = vld [vmem:[%s200 + $0x80] sm:$0xff]
                  %277 = vst [vmem:[%s201 + $0x48] sm:$0xff] %v276
                  %v278 = vld [vmem:[%s200 + $0x88] sm:$0xff]
                  %279 = vst [vmem:[%s201 + $0x50] sm:$0xff] %v278
                  %v280 = vld [vmem:[%s200 + $0x90] sm:$0xff]
                  %281 = vst [vmem:[%s201 + $0x58] sm:$0xff] %v280
                  %v282 = vld [vmem:[%s200 + $0x98] sm:$0xff]
                  %283 = vst [vmem:[%s201 + $0x60] sm:$0xff] %v282
                  %v284 = vld [vmem:[%s200 + $0xa0] sm:$0xff]
                  %285 = vst [vmem:[%s201 + $0x68] sm:$0xff] %v284
                  %v286 = vld [vmem:[%s200 + $0xa8] sm:$0xff]
                  %287 = vst [vmem:[%s201 + $0x70] sm:$0xff] %v286
                  %v288 = vld [vmem:[%s200 + $0xb0] sm:$0xff]
                  %289 = vst [vmem:[%s201 + $0x78] sm:$0xff] %v288
                  %v290 = vld [vmem:[%s200 + $0xb8] sm:$0xff]
                  %291 = vst [vmem:[%s201 + $0x80] sm:$0xff] %v290
                  %v292 = vld [vmem:[%s200 + $0xc0] sm:$0xff]
                  %293 = vst [vmem:[%s201 + $0x88] sm:$0xff] %v292
                  %v294 = vld [vmem:[%s200 + $0xc8] sm:$0xff]
                  %295 = vst [vmem:[%s201 + $0x90] sm:$0xff] %v294
                  %v296 = vld [vmem:[%s200 + $0xd0] sm:$0xff]
                  %297 = vst [vmem:[%s201 + $0x98] sm:$0xff] %v296
                  %v298 = vld [vmem:[%s200 + $0xd8] sm:$0xff]
                  %299 = vst [vmem:[%s201 + $0xa0] sm:$0xff] %v298
                  %v300 = vld [vmem:[%s200 + $0xe0] sm:$0xff]
                  %301 = vst [vmem:[%s201 + $0xa8] sm:$0xff] %v300
                  %v302 = vld [vmem:[%s200 + $0xe8] sm:$0xff]
                  %303 = vst [vmem:[%s201 + $0xb0] sm:$0xff] %v302
                  %v304 = vld [vmem:[%s200 + $0xf0] sm:$0xff]
                  %305 = vst [vmem:[%s201 + $0xb8] sm:$0xff] %v304
                  %v306 = vld [vmem:[%s200 + $0xf8] sm:$0xff]
                  %307 = vst [vmem:[%s201 + $0xc0] sm:$0xff] %v306
                  %v308 = vld [vmem:[%s200 + $0x100] sm:$0xff]
                  %309 = vst [vmem:[%s201 + $0xc8] sm:$0xff] %v308
                  %v310 = vld [vmem:[%s200 + $0x108] sm:$0xff]
                  %311 = vst [vmem:[%s201 + $0xd0] sm:$0xff] %v310
                  %v312 = vld [vmem:[%s200 + $0x110] sm:$0xff]
                  %313 = vst [vmem:[%s201 + $0xd8] sm:$0xff] %v312
                  %v314 = vld [vmem:[%s200 + $0x118] sm:$0xff]
                  %315 = vst [vmem:[%s201 + $0xe0] sm:$0xff] %v314
                  %v316 = vld [vmem:[%s200 + $0x120] sm:$0xff]
                  %317 = vst [vmem:[%s201 + $0xe8] sm:$0xff] %v316
                  %v318 = vld [vmem:[%s200 + $0x128] sm:$0xff]
                  %319 = vst [vmem:[%s201 + $0xf0] sm:$0xff] %v318
                  %v320 = vld [vmem:[%s200 + $0x130] sm:$0xff]
                  %321 = vst [vmem:[%s201 + $0xf8] sm:$0xff] %v320
                  %v322 = vld [vmem:[%s200 + $0x138] sm:$0xff]
                  %323 = vst [vmem:[%s201 + $0x100] sm:$0xff] %v322
                  %v324 = vld [vmem:[%s200 + $0x140] sm:$0xff]
                  %325 = vst [vmem:[%s201 + $0x108] sm:$0xff] %v324
                  %v326 = vld [vmem:[%s200 + $0x148] sm:$0xff]
                  %327 = vst [vmem:[%s201 + $0x110] sm:$0xff] %v326
                  %v328 = vld [vmem:[%s200 + $0x150] sm:$0xff]
                  %329 = vst [vmem:[%s201 + $0x118] sm:$0xff] %v328
                  %s330 = sadd.s32 1, %s199
                  %p331 = scmp.ge.s32.totalorder %s330, %s190
                  %s332 = scalar_select %p331, 0, %s330
                  %s333 = smul.u32 %s332, 256
                  %s334 = smul.u32 %s332, 256
                  %s335 = scalar_lea.vmem %s159, %s333
                  %s336 = scalar_lea.vmem %s148, %s334 [#allocation3]
                $region52: #{_preprocess.3} parent=46 // loop_footer
                  %s196 = sadd.s32 %s194, 1
                $region53: #{_preprocess.3} parent=46 // loop_footer_branch
                  %193 = sbr.rel target = $region49
                $region54: #{_preprocess.3} parent=46 // loop_exit
                  _
                %s337 = sshrl.u32 %s189, 5
                %s338 = sand.u32 %s189, 31
                %s339 = smul.u32 %s337, 32
                %s340 = smul.u32 128, %s339
                %s341 = sshra.s32 %s340, 4
                %s342 = scalar_lea.vmem %s159, %s341
                %s343 = smul.u32 128, %s339
                %s344 = sshra.s32 %s343, 4
                %s345 = scalar_lea.vmem %s148, %s344 [#allocation3]
                // While loop
                $region55: #{_preprocess.3} parent=46 // loop_pre_header
                  _
                $region56: #{_preprocess.3} parent=46 // loop_header
                  %s349 = sphi 0, %s351
                  %p350 = scmp.ge.s32.totalorder %s349, %s338
                  %s354 = sphi 0, %s363
                  %s355 = sphi %s342, %s366
                  %s356 = sphi %s345, %s367
                $region57: #{_preprocess.3} parent=46 // loop_header_branch
                  %353 = sbr.rel (%p350) target = $region61
                $region58: #{_preprocess.3} parent=46 // loop_body
                  %v357 = vld [vmem:[%s355] sm:$0xff]
                  %358 = vst [vmem:[%s356] sm:$0xff] %v357
                  %v359 = vld [vmem:[%s355 + $0x58] sm:$0xff]
                  %360 = vst [vmem:[%s356 + $0x20] sm:$0xff] %v359
                  %s361 = sadd.s32 1, %s354
                  %p362 = scmp.ge.s32.totalorder %s361, %s338
                  %s363 = scalar_select %p362, 0, %s361
                  %s364 = smul.u32 %s363, 8
                  %s365 = smul.u32 %s363, 8
                  %s366 = scalar_lea.vmem %s342, %s364
                  %s367 = scalar_lea.vmem %s345, %s365 [#allocation3]
                $region59: #{_preprocess.3} parent=46 // loop_footer
                  %s351 = sadd.s32 %s349, 1
                $region60: #{_preprocess.3} parent=46 // loop_footer_branch
                  %348 = sbr.rel target = $region56
                $region61: #{_preprocess.3} parent=46 // loop_exit
                  _
              $region47: #{_preprocess.3} parent=31 // pred_fallthru
                _
              %p368 = pneg %p185
              // Predicated region
              $region62: #{_preprocess.3} parent=31 // pred_check
                _
              $region63: #{_preprocess.3} parent=31 // pred_check_branch
                %370 = sbr.rel (%p185) target = $region65
              $region64: #{_preprocess.3} parent=31 // pred_region
                %s371 = sand.u32 %s160, 7
                %s372 = ssub.s32 %s160, %s371
                %s373 = scalar_lea.vmem %s159, %s372
                %s374 = ssub.s32 %s160, %s371
                %s375 = scalar_lea.vmem %s148, %s374 [#allocation3]
                %s376 = sshrl.u32 %s160, 3
                %s377 = sshrl.u32 %s376, 5
                // While loop
                $region66: #{_preprocess.3} parent=64 // loop_pre_header
                  _
                $region67: #{_preprocess.3} parent=64 // loop_header
                  %s381 = sphi 0, %s383
                  %p382 = scmp.ge.s32.totalorder %s381, %s377
                  %s386 = sphi 0, %s519
                  %s387 = sphi %s159, %s522
                  %s388 = sphi %s148, %s523
                $region68: #{_preprocess.3} parent=64 // loop_header_branch
                  %385 = sbr.rel (%p382) target = $region72
                $region69: #{_preprocess.3} parent=64 // loop_body
                  %v389 = vld [vmem:[%s387] sm:$0xff]
                  %390 = vst [vmem:[%s388] sm:$0xff] %v389
                  %v391 = vld [vmem:[%s387 + $0x8] sm:$0xff]
                  %392 = vst [vmem:[%s388 + $0x8] sm:$0xff] %v391
                  %v393 = vld [vmem:[%s387 + $0x10] sm:$0xff]
                  %394 = vst [vmem:[%s388 + $0x10] sm:$0xff] %v393
                  %v395 = vld [vmem:[%s387 + $0x18] sm:$0xff]
                  %396 = vst [vmem:[%s388 + $0x18] sm:$0xff] %v395
                  %v397 = vld [vmem:[%s387 + $0x20] sm:$0xff]
                  %398 = vst [vmem:[%s388 + $0x20] sm:$0xff] %v397
                  %v399 = vld [vmem:[%s387 + $0x28] sm:$0xff]
                  %400 = vst [vmem:[%s388 + $0x28] sm:$0xff] %v399
                  %v401 = vld [vmem:[%s387 + $0x30] sm:$0xff]
                  %402 = vst [vmem:[%s388 + $0x30] sm:$0xff] %v401
                  %v403 = vld [vmem:[%s387 + $0x38] sm:$0xff]
                  %404 = vst [vmem:[%s388 + $0x38] sm:$0xff] %v403
                  %v405 = vld [vmem:[%s387 + $0x40] sm:$0xff]
                  %406 = vst [vmem:[%s388 + $0x40] sm:$0xff] %v405
                  %v407 = vld [vmem:[%s387 + $0x48] sm:$0xff]
                  %408 = vst [vmem:[%s388 + $0x48] sm:$0xff] %v407
                  %v409 = vld [vmem:[%s387 + $0x50] sm:$0xff]
                  %410 = vst [vmem:[%s388 + $0x50] sm:$0xff] %v409
                  %v411 = vld [vmem:[%s387 + $0x58] sm:$0xff]
                  %412 = vst [vmem:[%s388 + $0x58] sm:$0xff] %v411
                  %v413 = vld [vmem:[%s387 + $0x60] sm:$0xff]
                  %414 = vst [vmem:[%s388 + $0x60] sm:$0xff] %v413
                  %v415 = vld [vmem:[%s387 + $0x68] sm:$0xff]
                  %416 = vst [vmem:[%s388 + $0x68] sm:$0xff] %v415
                  %v417 = vld [vmem:[%s387 + $0x70] sm:$0xff]
                  %418 = vst [vmem:[%s388 + $0x70] sm:$0xff] %v417
                  %v419 = vld [vmem:[%s387 + $0x78] sm:$0xff]
                  %420 = vst [vmem:[%s388 + $0x78] sm:$0xff] %v419
                  %v421 = vld [vmem:[%s387 + $0x80] sm:$0xff]
                  %422 = vst [vmem:[%s388 + $0x80] sm:$0xff] %v421
                  %v423 = vld [vmem:[%s387 + $0x88] sm:$0xff]
                  %424 = vst [vmem:[%s388 + $0x88] sm:$0xff] %v423
                  %v425 = vld [vmem:[%s387 + $0x90] sm:$0xff]
                  %426 = vst [vmem:[%s388 + $0x90] sm:$0xff] %v425
                  %v427 = vld [vmem:[%s387 + $0x98] sm:$0xff]
                  %428 = vst [vmem:[%s388 + $0x98] sm:$0xff] %v427
                  %v429 = vld [vmem:[%s387 + $0xa0] sm:$0xff]
                  %430 = vst [vmem:[%s388 + $0xa0] sm:$0xff] %v429
                  %v431 = vld [vmem:[%s387 + $0xa8] sm:$0xff]
                  %432 = vst [vmem:[%s388 + $0xa8] sm:$0xff] %v431
                  %v433 = vld [vmem:[%s387 + $0xb0] sm:$0xff]
                  %434 = vst [vmem:[%s388 + $0xb0] sm:$0xff] %v433
                  %v435 = vld [vmem:[%s387 + $0xb8] sm:$0xff]
                  %436 = vst [vmem:[%s388 + $0xb8] sm:$0xff] %v435
                  %v437 = vld [vmem:[%s387 + $0xc0] sm:$0xff]
                  %438 = vst [vmem:[%s388 + $0xc0] sm:$0xff] %v437
                  %v439 = vld [vmem:[%s387 + $0xc8] sm:$0xff]
                  %440 = vst [vmem:[%s388 + $0xc8] sm:$0xff] %v439
                  %v441 = vld [vmem:[%s387 + $0xd0] sm:$0xff]
                  %442 = vst [vmem:[%s388 + $0xd0] sm:$0xff] %v441
                  %v443 = vld [vmem:[%s387 + $0xd8] sm:$0xff]
                  %444 = vst [vmem:[%s388 + $0xd8] sm:$0xff] %v443
                  %v445 = vld [vmem:[%s387 + $0xe0] sm:$0xff]
                  %446 = vst [vmem:[%s388 + $0xe0] sm:$0xff] %v445
                  %v447 = vld [vmem:[%s387 + $0xe8] sm:$0xff]
                  %448 = vst [vmem:[%s388 + $0xe8] sm:$0xff] %v447
                  %v449 = vld [vmem:[%s387 + $0xf0] sm:$0xff]
                  %450 = vst [vmem:[%s388 + $0xf0] sm:$0xff] %v449
                  %v451 = vld [vmem:[%s387 + $0xf8] sm:$0xff]
                  %452 = vst [vmem:[%s388 + $0xf8] sm:$0xff] %v451
                  %v453 = vld [vmem:[%s387 + $0x58] sm:$0xff]
                  %454 = vst [vmem:[%s388 + $0x20] sm:$0xff] %v453
                  %v455 = vld [vmem:[%s387 + $0x60] sm:$0xff]
                  %456 = vst [vmem:[%s388 + $0x28] sm:$0xff] %v455
                  %v457 = vld [vmem:[%s387 + $0x68] sm:$0xff]
                  %458 = vst [vmem:[%s388 + $0x30] sm:$0xff] %v457
                  %v459 = vld [vmem:[%s387 + $0x70] sm:$0xff]
                  %460 = vst [vmem:[%s388 + $0x38] sm:$0xff] %v459
                  %v461 = vld [vmem:[%s387 + $0x78] sm:$0xff]
                  %462 = vst [vmem:[%s388 + $0x40] sm:$0xff] %v461
                  %v463 = vld [vmem:[%s387 + $0x80] sm:$0xff]
                  %464 = vst [vmem:[%s388 + $0x48] sm:$0xff] %v463
                  %v465 = vld [vmem:[%s387 + $0x88] sm:$0xff]
                  %466 = vst [vmem:[%s388 + $0x50] sm:$0xff] %v465
                  %v467 = vld [vmem:[%s387 + $0x90] sm:$0xff]
                  %468 = vst [vmem:[%s388 + $0x58] sm:$0xff] %v467
                  %v469 = vld [vmem:[%s387 + $0x98] sm:$0xff]
                  %470 = vst [vmem:[%s388 + $0x60] sm:$0xff] %v469
                  %v471 = vld [vmem:[%s387 + $0xa0] sm:$0xff]
                  %472 = vst [vmem:[%s388 + $0x68] sm:$0xff] %v471
                  %v473 = vld [vmem:[%s387 + $0xa8] sm:$0xff]
                  %474 = vst [vmem:[%s388 + $0x70] sm:$0xff] %v473
                  %v475 = vld [vmem:[%s387 + $0xb0] sm:$0xff]
                  %476 = vst [vmem:[%s388 + $0x78] sm:$0xff] %v475
                  %v477 = vld [vmem:[%s387 + $0xb8] sm:$0xff]
                  %478 = vst [vmem:[%s388 + $0x80] sm:$0xff] %v477
                  %v479 = vld [vmem:[%s387 + $0xc0] sm:$0xff]
                  %480 = vst [vmem:[%s388 + $0x88] sm:$0xff] %v479
                  %v481 = vld [vmem:[%s387 + $0xc8] sm:$0xff]
                  %482 = vst [vmem:[%s388 + $0x90] sm:$0xff] %v481
                  %v483 = vld [vmem:[%s387 + $0xd0] sm:$0xff]
                  %484 = vst [vmem:[%s388 + $0x98] sm:$0xff] %v483
                  %v485 = vld [vmem:[%s387 + $0xd8] sm:$0xff]
                  %486 = vst [vmem:[%s388 + $0xa0] sm:$0xff] %v485
                  %v487 = vld [vmem:[%s387 + $0xe0] sm:$0xff]
                  %488 = vst [vmem:[%s388 + $0xa8] sm:$0xff] %v487
                  %v489 = vld [vmem:[%s387 + $0xe8] sm:$0xff]
                  %490 = vst [vmem:[%s388 + $0xb0] sm:$0xff] %v489
                  %v491 = vld [vmem:[%s387 + $0xf0] sm:$0xff]
                  %492 = vst [vmem:[%s388 + $0xb8] sm:$0xff] %v491
                  %v493 = vld [vmem:[%s387 + $0xf8] sm:$0xff]
                  %494 = vst [vmem:[%s388 + $0xc0] sm:$0xff] %v493
                  %v495 = vld [vmem:[%s387 + $0x100] sm:$0xff]
                  %496 = vst [vmem:[%s388 + $0xc8] sm:$0xff] %v495
                  %v497 = vld [vmem:[%s387 + $0x108] sm:$0xff]
                  %498 = vst [vmem:[%s388 + $0xd0] sm:$0xff] %v497
                  %v499 = vld [vmem:[%s387 + $0x110] sm:$0xff]
                  %500 = vst [vmem:[%s388 + $0xd8] sm:$0xff] %v499
                  %v501 = vld [vmem:[%s387 + $0x118] sm:$0xff]
                  %502 = vst [vmem:[%s388 + $0xe0] sm:$0xff] %v501
                  %v503 = vld [vmem:[%s387 + $0x120] sm:$0xff]
                  %504 = vst [vmem:[%s388 + $0xe8] sm:$0xff] %v503
                  %v505 = vld [vmem:[%s387 + $0x128] sm:$0xff]
                  %506 = vst [vmem:[%s388 + $0xf0] sm:$0xff] %v505
                  %v507 = vld [vmem:[%s387 + $0x130] sm:$0xff]
                  %508 = vst [vmem:[%s388 + $0xf8] sm:$0xff] %v507
                  %v509 = vld [vmem:[%s387 + $0x138] sm:$0xff]
                  %510 = vst [vmem:[%s388 + $0x100] sm:$0xff] %v509
                  %v511 = vld [vmem:[%s387 + $0x140] sm:$0xff]
                  %512 = vst [vmem:[%s388 + $0x108] sm:$0xff] %v511
                  %v513 = vld [vmem:[%s387 + $0x148] sm:$0xff]
                  %514 = vst [vmem:[%s388 + $0x110] sm:$0xff] %v513
                  %v515 = vld [vmem:[%s387 + $0x150] sm:$0xff]
                  %516 = vst [vmem:[%s388 + $0x118] sm:$0xff] %v515
                  %s517 = sadd.s32 1, %s386
                  %p518 = scmp.ge.s32.totalorder %s517, %s377
                  %s519 = scalar_select %p518, 0, %s517
                  %s520 = smul.u32 %s519, 256
                  %s521 = smul.u32 %s519, 256
                  %s522 = scalar_lea.vmem %s159, %s520
                  %s523 = scalar_lea.vmem %s148, %s521 [#allocation3]
                $region70: #{_preprocess.3} parent=64 // loop_footer
                  %s383 = sadd.s32 %s381, 1
                $region71: #{_preprocess.3} parent=64 // loop_footer_branch
                  %380 = sbr.rel target = $region67
                $region72: #{_preprocess.3} parent=64 // loop_exit
                  _
                %s524 = sshrl.u32 %s376, 5
                %s525 = sand.u32 %s376, 31
                %s526 = smul.u32 %s524, 32
                %s527 = smul.u32 128, %s526
                %s528 = sshra.s32 %s527, 4
                %s529 = scalar_lea.vmem %s159, %s528
                %s530 = smul.u32 128, %s526
                %s531 = sshra.s32 %s530, 4
                %s532 = scalar_lea.vmem %s148, %s531 [#allocation3]
                // While loop
                $region73: #{_preprocess.3} parent=64 // loop_pre_header
                  _
                $region74: #{_preprocess.3} parent=64 // loop_header
                  %s536 = sphi 0, %s538
                  %p537 = scmp.ge.s32.totalorder %s536, %s525
                  %s541 = sphi 0, %s550
                  %s542 = sphi %s529, %s553
                  %s543 = sphi %s532, %s554
                $region75: #{_preprocess.3} parent=64 // loop_header_branch
                  %540 = sbr.rel (%p537) target = $region79
                $region76: #{_preprocess.3} parent=64 // loop_body
                  %v544 = vld [vmem:[%s542] sm:$0xff]
                  %545 = vst [vmem:[%s543] sm:$0xff] %v544
                  %v546 = vld [vmem:[%s542 + $0x58] sm:$0xff]
                  %547 = vst [vmem:[%s543 + $0x20] sm:$0xff] %v546
                  %s548 = sadd.s32 1, %s541
                  %p549 = scmp.ge.s32.totalorder %s548, %s525
                  %s550 = scalar_select %p549, 0, %s548
                  %s551 = smul.u32 %s550, 8
                  %s552 = smul.u32 %s550, 8
                  %s553 = scalar_lea.vmem %s529, %s551
                  %s554 = scalar_lea.vmem %s532, %s552 [#allocation3]
                $region77: #{_preprocess.3} parent=64 // loop_footer
                  %s538 = sadd.s32 %s536, 1
                $region78: #{_preprocess.3} parent=64 // loop_footer_branch
                  %535 = sbr.rel target = $region74
                $region79: #{_preprocess.3} parent=64 // loop_exit
                  _
                %s555 = sshllo.u32 0, %s371
                loop: start=0, step=1, limit=1
                $region80: #{_preprocess.3} parent=64 // loop_pre_header
                  _
                $region81: #{_preprocess.3} parent=64 // loop_header
                  %s557 = sphi 0, %s561
                  %p558 = scmp.ge.s32.totalorder %s557, 1
                  %s562 = sphi %s373, %s373
                  %s563 = sphi %s375, %s375
                $region82: #{_preprocess.3} parent=64 // loop_header_branch
                  %560 = sbr.rel (%p558) target = $region86
                $region83: #{_preprocess.3} parent=64 // loop_body
                  %v564 = vld [vmem:[%s562] sm:%s555]
                  %565 = vst [vmem:[%s563] sm:%s555] %v564
                  %v566 = vld [vmem:[%s562 + $0x58] sm:%s555]
                  %567 = vst [vmem:[%s563 + $0x20] sm:%s555] %v566
                $region84: #{_preprocess.3} parent=64 // loop_footer
                  %s561 = sadd.s32 1, %s557
                $region85: #{_preprocess.3} parent=64 // loop_footer_branch
                  %556 = sbr.rel target = $region81
                $region86: #{_preprocess.3} parent=64 // loop_exit
                  _
              $region65: #{_preprocess.3} parent=31 // pred_fallthru
                _
            $region32: #{_preprocess.3} parent=27 // pred_fallthru
              _
            // Predicated region
            $region33: #{_preprocess.3} parent=27 // pred_check
              %p168 = pneg %p164
            $region34: #{_preprocess.3} parent=27 // pred_check_branch
              %170 = sbr.rel (%p168) target = $region36
            $region35: #{_preprocess.3} parent=27 // pred_region
              %s171 = sshllo.u32 0, %s160
              loop: start=0, step=1, limit=1
              $region37: #{_preprocess.3} parent=35 // loop_pre_header
                _
              $region38: #{_preprocess.3} parent=35 // loop_header
                %s173 = sphi 0, %s177
                %p174 = scmp.ge.s32.totalorder %s173, 1
                %s178 = sphi %s159, %s159
                %s179 = sphi %s148, %s148
              $region39: #{_preprocess.3} parent=35 // loop_header_branch
                %176 = sbr.rel (%p174) target = $region43
              $region40: #{_preprocess.3} parent=35 // loop_body
                %v180 = vld [vmem:[%s178] sm:%s171]
                %181 = vst [vmem:[%s179] sm:%s171] %v180
                %v182 = vld [vmem:[%s178 + $0x58] sm:%s171]
                %183 = vst [vmem:[%s179 + $0x20] sm:%s171] %v182
              $region41: #{_preprocess.3} parent=35 // loop_footer
                %s177 = sadd.s32 1, %s173
              $region42: #{_preprocess.3} parent=35 // loop_footer_branch
                %172 = sbr.rel target = $region38
              $region43: #{_preprocess.3} parent=35 // loop_exit
                _
            $region36: #{_preprocess.3} parent=27 // pred_fallthru
              _
          $region28: #{_preprocess.3} parent=23 // pred_fallthru
            _
          %568 = vnop
        $region24: #{_preprocess.3} parent=19 // pred_fallthru
          _
      $region20: #{_preprocess.3} parent=5 // pred_fallthru
        _
      %p569 = scmp.le.s32.totalorder 1, %s8
      %p570 = scmp.lt.s32.totalorder %s8, 4
      %p571 = pnand %p569, %p570
      %p572 = pneg %p571
      // Predicated region
      $region87: #{_preprocess.3} parent=5 // pred_check
        _
      $region88: #{_preprocess.3} parent=5 // pred_check_branch
        %574 = sbr.rel (%p571) target = $region90
      $region89: #{_preprocess.3} parent=5 // pred_region
        %s575 = ssub.s32 %s8, 1
        %s576 = sand.u32 %s70, 1
        %s577 = sand.u32 %s70, 1
        %s578 = smul.addr %s577, 64
        %s579 = scalar_lea.vmem [#allocation3], %s578
        // Predicated region
        $region91: #{_preprocess.3} parent=89 // pred_check
          %p580 = pneg %p83
        $region92: #{_preprocess.3} parent=89 // pred_check_branch
          %582 = sbr.rel (%p580) target = $region94
        $region93: #{_preprocess.3} parent=89 // pred_region
          _
        $region94: #{_preprocess.3} parent=89 // pred_fallthru
          _
        %s583 = smul.u32 56, %s18
        %p584 = scmp.lt.s32.totalorder %s583, 55
        %s585 = scalar_select %p584, %s583, 55
        %p586 = scmp.lt.s32.totalorder %s20, 0
        %s587 = scalar_select %p586, %s20, 0
        %s588 = sadd.s32 %s587, %s585
        %s589 = smul.addr %s588, 8
        %s590 = scalar_lea.vmem %s0, %s589
        %p591 = pneg %p55
        %p592 = pneg %p52
        %s593 = sand.u32 %s70, 1
        %s594 = sand.u32 %s70, 1
        %s595 = smul.addr %s594, 64
        %s596 = scalar_lea.vmem [#allocation3], %s595
        %p597 = pneg %p83
        %p598 = pneg %p80
        %p599 = pneg %p111
        %p600 = pneg %p108
        %s601 = sand.u32 %s98, 1
        %s602 = sand.u32 %s98, 1
        %s603 = smul.addr %s602, 1792
        %s604 = scalar_lea.vmem [#allocation4], %s603
        %s605 = smul.u32 56, %s18
        %p606 = scmp.lt.s32.totalorder %s605, 55
        %s607 = scalar_select %p606, %s605, 55
        %p608 = scmp.lt.s32.totalorder %s20, 0
        %s609 = scalar_select %p608, %s20, 0
        %s610 = sadd.s32 %s609, %s607
        %s611 = smul.addr %s610, 8
        %s612 = scalar_lea.vmem %s0, %s611
        %s613 = smul.u32 56, %s18
        %s614 = smul.u32 2, %s20
        %s615 = smul.u32 4, %s19
        %s616 = ssub.s32 11, %s615
        %p617 = scmp.lt.s32.totalorder %s616, 4
        %s618 = scalar_select %p617, %s616, 4
        %s619 = smul.u32 256, %s618
        %s620 = smul.u32 56, %s18
        %s621 = smul.u32 4, %s19
        %s622 = ssub.s32 11, %s621
        %p623 = scmp.lt.s32.totalorder %s622, 4
        %s624 = scalar_select %p623, %s622, 4
        %s625 = smul.u32 7168, %s624
        %p626 = scmp.eq.s32.totalorder %s20, 0
        // Predicated region
        $region95: #{_preprocess.3} parent=89 // pred_check
          %p627 = pneg %p626
        $region96: #{_preprocess.3} parent=89 // pred_check_branch
          %629 = sbr.rel (%p627) target = $region98
        $region97: #{_preprocess.3} parent=89 // pred_region
          %630 = vst [vmem:[#allocation2] sm:$0xff] 0.0
          %631 = vst [vmem:[#allocation2 + $0x8] sm:$0xff] 0.0
          %632 = vst [vmem:[#allocation2 + $0x10] sm:$0xff] 0.0
          %633 = vst [vmem:[#allocation2 + $0x18] sm:$0xff] 0.0
          %634 = vst [vmem:[#allocation2 + $0x20] sm:$0xff] 0.0
          %635 = vst [vmem:[#allocation2 + $0x28] sm:$0xff] 0.0
          %636 = vst [vmem:[#allocation2 + $0x30] sm:$0xff] 0.0
          %637 = vst [vmem:[#allocation2 + $0x38] sm:$0xff] 0.0
          %638 = vst [vmem:[#allocation2 + $0x40] sm:$0xff] 0.0
          %639 = vst [vmem:[#allocation2 + $0x48] sm:$0xff] 0.0
          %640 = vst [vmem:[#allocation2 + $0x50] sm:$0xff] 0.0
          %641 = vst [vmem:[#allocation2 + $0x58] sm:$0xff] 0.0
          %642 = vst [vmem:[#allocation2 + $0x60] sm:$0xff] 0.0
          %643 = vst [vmem:[#allocation2 + $0x68] sm:$0xff] 0.0
          %644 = vst [vmem:[#allocation2 + $0x70] sm:$0xff] 0.0
          %645 = vst [vmem:[#allocation2 + $0x78] sm:$0xff] 0.0
          %646 = vst [vmem:[#allocation2 + $0x80] sm:$0xff] 0.0
          %647 = vst [vmem:[#allocation2 + $0x88] sm:$0xff] 0.0
          %648 = vst [vmem:[#allocation2 + $0x90] sm:$0xff] 0.0
          %649 = vst [vmem:[#allocation2 + $0x98] sm:$0xff] 0.0
          %650 = vst [vmem:[#allocation2 + $0xa0] sm:$0xff] 0.0
          %651 = vst [vmem:[#allocation2 + $0xa8] sm:$0xff] 0.0
          %652 = vst [vmem:[#allocation2 + $0xb0] sm:$0xff] 0.0
          %653 = vst [vmem:[#allocation2 + $0xb8] sm:$0xff] 0.0
          %654 = vst [vmem:[#allocation2 + $0xc0] sm:$0xff] 0.0
          %655 = vst [vmem:[#allocation2 + $0xc8] sm:$0xff] 0.0
          %656 = vst [vmem:[#allocation2 + $0xd0] sm:$0xff] 0.0
          %657 = vst [vmem:[#allocation2 + $0xd8] sm:$0xff] 0.0
          %658 = vst [vmem:[#allocation2 + $0xe0] sm:$0xff] 0.0
          %659 = vst [vmem:[#allocation2 + $0xe8] sm:$0xff] 0.0
          %660 = vst [vmem:[#allocation2 + $0xf0] sm:$0xff] 0.0
          %661 = vst [vmem:[#allocation2 + $0xf8] sm:$0xff] 0.0
          %662 = vst [vmem:[#allocation2 + $0x100] sm:$0xff] 0.0
          %663 = vst [vmem:[#allocation2 + $0x108] sm:$0xff] 0.0
          %664 = vst [vmem:[#allocation2 + $0x110] sm:$0xff] 0.0
          %665 = vst [vmem:[#allocation2 + $0x118] sm:$0xff] 0.0
          %666 = vst [vmem:[#allocation2 + $0x120] sm:$0xff] 0.0
          %667 = vst [vmem:[#allocation2 + $0x128] sm:$0xff] 0.0
          %668 = vst [vmem:[#allocation2 + $0x130] sm:$0xff] 0.0
          %669 = vst [vmem:[#allocation2 + $0x138] sm:$0xff] 0.0
          %670 = vst [vmem:[#allocation2 + $0x140] sm:$0xff] 0.0
          %671 = vst [vmem:[#allocation2 + $0x148] sm:$0xff] 0.0
          %672 = vst [vmem:[#allocation2 + $0x150] sm:$0xff] 0.0
          %673 = vst [vmem:[#allocation2 + $0x158] sm:$0xff] 0.0
          %674 = vst [vmem:[#allocation2 + $0x160] sm:$0xff] 0.0
          %675 = vst [vmem:[#allocation2 + $0x168] sm:$0xff] 0.0
          %676 = vst [vmem:[#allocation2 + $0x170] sm:$0xff] 0.0
          %677 = vst [vmem:[#allocation2 + $0x178] sm:$0xff] 0.0
          %678 = vst [vmem:[#allocation2 + $0x180] sm:$0xff] 0.0
          %679 = vst [vmem:[#allocation2 + $0x188] sm:$0xff] 0.0
          %680 = vst [vmem:[#allocation2 + $0x190] sm:$0xff] 0.0
          %681 = vst [vmem:[#allocation2 + $0x198] sm:$0xff] 0.0
          %682 = vst [vmem:[#allocation2 + $0x1a0] sm:$0xff] 0.0
          %683 = vst [vmem:[#allocation2 + $0x1a8] sm:$0xff] 0.0
          %684 = vst [vmem:[#allocation2 + $0x1b0] sm:$0xff] 0.0
          %685 = vst [vmem:[#allocation2 + $0x1b8] sm:$0xff] 0.0
          %686 = vst [vmem:[#allocation2 + $0x1c0] sm:$0xff] 0.0
          %687 = vst [vmem:[#allocation2 + $0x1c8] sm:$0xff] 0.0
          %688 = vst [vmem:[#allocation2 + $0x1d0] sm:$0xff] 0.0
          %689 = vst [vmem:[#allocation2 + $0x1d8] sm:$0xff] 0.0
          %690 = vst [vmem:[#allocation2 + $0x1e0] sm:$0xff] 0.0
          %691 = vst [vmem:[#allocation2 + $0x1e8] sm:$0xff] 0.0
          %692 = vst [vmem:[#allocation2 + $0x1f0] sm:$0xff] 0.0
          %693 = vst [vmem:[#allocation2 + $0x1f8] sm:$0xff] 0.0
          %694 = vst [vmem:[#allocation2 + $0x200] sm:$0xff] 0.0
          %695 = vst [vmem:[#allocation2 + $0x208] sm:$0xff] 0.0
          %696 = vst [vmem:[#allocation2 + $0x210] sm:$0xff] 0.0
          %697 = vst [vmem:[#allocation2 + $0x218] sm:$0xff] 0.0
          %698 = vst [vmem:[#allocation2 + $0x220] sm:$0xff] 0.0
          %699 = vst [vmem:[#allocation2 + $0x228] sm:$0xff] 0.0
          %700 = vst [vmem:[#allocation2 + $0x230] sm:$0xff] 0.0
          %701 = vst [vmem:[#allocation2 + $0x238] sm:$0xff] 0.0
          %702 = vst [vmem:[#allocation2 + $0x240] sm:$0xff] 0.0
          %703 = vst [vmem:[#allocation2 + $0x248] sm:$0xff] 0.0
          %704 = vst [vmem:[#allocation2 + $0x250] sm:$0xff] 0.0
          %705 = vst [vmem:[#allocation2 + $0x258] sm:$0xff] 0.0
          %706 = vst [vmem:[#allocation2 + $0x260] sm:$0xff] 0.0
          %707 = vst [vmem:[#allocation2 + $0x268] sm:$0xff] 0.0
          %708 = vst [vmem:[#allocation2 + $0x270] sm:$0xff] 0.0
          %709 = vst [vmem:[#allocation2 + $0x278] sm:$0xff] 0.0
          %710 = vst [vmem:[#allocation2 + $0x280] sm:$0xff] 0.0
          %711 = vst [vmem:[#allocation2 + $0x288] sm:$0xff] 0.0
          %712 = vst [vmem:[#allocation2 + $0x290] sm:$0xff] 0.0
          %713 = vst [vmem:[#allocation2 + $0x298] sm:$0xff] 0.0
          %714 = vst [vmem:[#allocation2 + $0x2a0] sm:$0xff] 0.0
          %715 = vst [vmem:[#allocation2 + $0x2a8] sm:$0xff] 0.0
          %716 = vst [vmem:[#allocation2 + $0x2b0] sm:$0xff] 0.0
          %717 = vst [vmem:[#allocation2 + $0x2b8] sm:$0xff] 0.0
          %718 = vst [vmem:[#allocation2 + $0x2c0] sm:$0xff] 0.0
          %719 = vst [vmem:[#allocation2 + $0x2c8] sm:$0xff] 0.0
          %720 = vst [vmem:[#allocation2 + $0x2d0] sm:$0xff] 0.0
          %721 = vst [vmem:[#allocation2 + $0x2d8] sm:$0xff] 0.0
          %722 = vst [vmem:[#allocation2 + $0x2e0] sm:$0xff] 0.0
          %723 = vst [vmem:[#allocation2 + $0x2e8] sm:$0xff] 0.0
          %724 = vst [vmem:[#allocation2 + $0x2f0] sm:$0xff] 0.0
          %725 = vst [vmem:[#allocation2 + $0x2f8] sm:$0xff] 0.0
          %726 = vst [vmem:[#allocation2 + $0x300] sm:$0xff] 0.0
          %727 = vst [vmem:[#allocation2 + $0x308] sm:$0xff] 0.0
          %728 = vst [vmem:[#allocation2 + $0x310] sm:$0xff] 0.0
          %729 = vst [vmem:[#allocation2 + $0x318] sm:$0xff] 0.0
          %730 = vst [vmem:[#allocation2 + $0x320] sm:$0xff] 0.0
          %731 = vst [vmem:[#allocation2 + $0x328] sm:$0xff] 0.0
          %732 = vst [vmem:[#allocation2 + $0x330] sm:$0xff] 0.0
          %733 = vst [vmem:[#allocation2 + $0x338] sm:$0xff] 0.0
          %734 = vst [vmem:[#allocation2 + $0x340] sm:$0xff] 0.0
          %735 = vst [vmem:[#allocation2 + $0x348] sm:$0xff] 0.0
          %736 = vst [vmem:[#allocation2 + $0x350] sm:$0xff] 0.0
          %737 = vst [vmem:[#allocation2 + $0x358] sm:$0xff] 0.0
          %738 = vst [vmem:[#allocation2 + $0x360] sm:$0xff] 0.0
          %739 = vst [vmem:[#allocation2 + $0x368] sm:$0xff] 0.0
          %740 = vst [vmem:[#allocation2 + $0x370] sm:$0xff] 0.0
          %741 = vst [vmem:[#allocation2 + $0x378] sm:$0xff] 0.0
          %742 = vst [vmem:[#allocation2 + $0x380] sm:$0xff] 0.0
          %743 = vst [vmem:[#allocation2 + $0x388] sm:$0xff] 0.0
          %744 = vst [vmem:[#allocation2 + $0x390] sm:$0xff] 0.0
          %745 = vst [vmem:[#allocation2 + $0x398] sm:$0xff] 0.0
          %746 = vst [vmem:[#allocation2 + $0x3a0] sm:$0xff] 0.0
          %747 = vst [vmem:[#allocation2 + $0x3a8] sm:$0xff] 0.0
          %748 = vst [vmem:[#allocation2 + $0x3b0] sm:$0xff] 0.0
          %749 = vst [vmem:[#allocation2 + $0x3b8] sm:$0xff] 0.0
          %750 = vst [vmem:[#allocation2 + $0x3c0] sm:$0xff] 0.0
          %751 = vst [vmem:[#allocation2 + $0x3c8] sm:$0xff] 0.0
          %752 = vst [vmem:[#allocation2 + $0x3d0] sm:$0xff] 0.0
          %753 = vst [vmem:[#allocation2 + $0x3d8] sm:$0xff] 0.0
          %754 = vst [vmem:[#allocation2 + $0x3e0] sm:$0xff] 0.0
          %755 = vst [vmem:[#allocation2 + $0x3e8] sm:$0xff] 0.0
          %756 = vst [vmem:[#allocation2 + $0x3f0] sm:$0xff] 0.0
          %757 = vst [vmem:[#allocation2 + $0x3f8] sm:$0xff] 0.0
          %758 = vst [vmem:[#allocation2 + $0x400] sm:$0xff] 0.0
          %759 = vst [vmem:[#allocation2 + $0x408] sm:$0xff] 0.0
          %760 = vst [vmem:[#allocation2 + $0x410] sm:$0xff] 0.0
          %761 = vst [vmem:[#allocation2 + $0x418] sm:$0xff] 0.0
          %762 = vst [vmem:[#allocation2 + $0x420] sm:$0xff] 0.0
          %763 = vst [vmem:[#allocation2 + $0x428] sm:$0xff] 0.0
          %764 = vst [vmem:[#allocation2 + $0x430] sm:$0xff] 0.0
          %765 = vst [vmem:[#allocation2 + $0x438] sm:$0xff] 0.0
          %766 = vst [vmem:[#allocation2 + $0x440] sm:$0xff] 0.0
          %767 = vst [vmem:[#allocation2 + $0x448] sm:$0xff] 0.0
          %768 = vst [vmem:[#allocation2 + $0x450] sm:$0xff] 0.0
          %769 = vst [vmem:[#allocation2 + $0x458] sm:$0xff] 0.0
          %770 = vst [vmem:[#allocation2 + $0x460] sm:$0xff] 0.0
          %771 = vst [vmem:[#allocation2 + $0x468] sm:$0xff] 0.0
          %772 = vst [vmem:[#allocation2 + $0x470] sm:$0xff] 0.0
          %773 = vst [vmem:[#allocation2 + $0x478] sm:$0xff] 0.0
          %774 = vst [vmem:[#allocation2 + $0x480] sm:$0xff] 0.0
          %775 = vst [vmem:[#allocation2 + $0x488] sm:$0xff] 0.0
          %776 = vst [vmem:[#allocation2 + $0x490] sm:$0xff] 0.0
          %777 = vst [vmem:[#allocation2 + $0x498] sm:$0xff] 0.0
          %778 = vst [vmem:[#allocation2 + $0x4a0] sm:$0xff] 0.0
          %779 = vst [vmem:[#allocation2 + $0x4a8] sm:$0xff] 0.0
          %780 = vst [vmem:[#allocation2 + $0x4b0] sm:$0xff] 0.0
          %781 = vst [vmem:[#allocation2 + $0x4b8] sm:$0xff] 0.0
          %782 = vst [vmem:[#allocation2 + $0x4c0] sm:$0xff] 0.0
          %783 = vst [vmem:[#allocation2 + $0x4c8] sm:$0xff] 0.0
          %784 = vst [vmem:[#allocation2 + $0x4d0] sm:$0xff] 0.0
          %785 = vst [vmem:[#allocation2 + $0x4d8] sm:$0xff] 0.0
          %786 = vst [vmem:[#allocation2 + $0x4e0] sm:$0xff] 0.0
          %787 = vst [vmem:[#allocation2 + $0x4e8] sm:$0xff] 0.0
          %788 = vst [vmem:[#allocation2 + $0x4f0] sm:$0xff] 0.0
          %789 = vst [vmem:[#allocation2 + $0x4f8] sm:$0xff] 0.0
          %790 = vst [vmem:[#allocation2 + $0x500] sm:$0xff] 0.0
          %791 = vst [vmem:[#allocation2 + $0x508] sm:$0xff] 0.0
          %792 = vst [vmem:[#allocation2 + $0x510] sm:$0xff] 0.0
          %793 = vst [vmem:[#allocation2 + $0x518] sm:$0xff] 0.0
          %794 = vst [vmem:[#allocation2 + $0x520] sm:$0xff] 0.0
          %795 = vst [vmem:[#allocation2 + $0x528] sm:$0xff] 0.0
          %796 = vst [vmem:[#allocation2 + $0x530] sm:$0xff] 0.0
          %797 = vst [vmem:[#allocation2 + $0x538] sm:$0xff] 0.0
          %798 = vst [vmem:[#allocation2 + $0x540] sm:$0xff] 0.0
          %799 = vst [vmem:[#allocation2 + $0x548] sm:$0xff] 0.0
          %800 = vst [vmem:[#allocation2 + $0x550] sm:$0xff] 0.0
          %801 = vst [vmem:[#allocation2 + $0x558] sm:$0xff] 0.0
          %802 = vst [vmem:[#allocation2 + $0x560] sm:$0xff] 0.0
          %803 = vst [vmem:[#allocation2 + $0x568] sm:$0xff] 0.0
          %804 = vst [vmem:[#allocation2 + $0x570] sm:$0xff] 0.0
          %805 = vst [vmem:[#allocation2 + $0x578] sm:$0xff] 0.0
          %806 = vst [vmem:[#allocation2 + $0x580] sm:$0xff] 0.0
          %807 = vst [vmem:[#allocation2 + $0x588] sm:$0xff] 0.0
          %808 = vst [vmem:[#allocation2 + $0x590] sm:$0xff] 0.0
          %809 = vst [vmem:[#allocation2 + $0x598] sm:$0xff] 0.0
          %810 = vst [vmem:[#allocation2 + $0x5a0] sm:$0xff] 0.0
          %811 = vst [vmem:[#allocation2 + $0x5a8] sm:$0xff] 0.0
          %812 = vst [vmem:[#allocation2 + $0x5b0] sm:$0xff] 0.0
          %813 = vst [vmem:[#allocation2 + $0x5b8] sm:$0xff] 0.0
          %814 = vst [vmem:[#allocation2 + $0x5c0] sm:$0xff] 0.0
          %815 = vst [vmem:[#allocation2 + $0x5c8] sm:$0xff] 0.0
          %816 = vst [vmem:[#allocation2 + $0x5d0] sm:$0xff] 0.0
          %817 = vst [vmem:[#allocation2 + $0x5d8] sm:$0xff] 0.0
          %818 = vst [vmem:[#allocation2 + $0x5e0] sm:$0xff] 0.0
          %819 = vst [vmem:[#allocation2 + $0x5e8] sm:$0xff] 0.0
          %820 = vst [vmem:[#allocation2 + $0x5f0] sm:$0xff] 0.0
          %821 = vst [vmem:[#allocation2 + $0x5f8] sm:$0xff] 0.0
          %822 = vst [vmem:[#allocation2 + $0x600] sm:$0xff] 0.0
          %823 = vst [vmem:[#allocation2 + $0x608] sm:$0xff] 0.0
          %824 = vst [vmem:[#allocation2 + $0x610] sm:$0xff] 0.0
          %825 = vst [vmem:[#allocation2 + $0x618] sm:$0xff] 0.0
          %826 = vst [vmem:[#allocation2 + $0x620] sm:$0xff] 0.0
          %827 = vst [vmem:[#allocation2 + $0x628] sm:$0xff] 0.0
          %828 = vst [vmem:[#allocation2 + $0x630] sm:$0xff] 0.0
          %829 = vst [vmem:[#allocation2 + $0x638] sm:$0xff] 0.0
          %830 = vst [vmem:[#allocation2 + $0x640] sm:$0xff] 0.0
          %831 = vst [vmem:[#allocation2 + $0x648] sm:$0xff] 0.0
          %832 = vst [vmem:[#allocation2 + $0x650] sm:$0xff] 0.0
          %833 = vst [vmem:[#allocation2 + $0x658] sm:$0xff] 0.0
          %834 = vst [vmem:[#allocation2 + $0x660] sm:$0xff] 0.0
          %835 = vst [vmem:[#allocation2 + $0x668] sm:$0xff] 0.0
          %836 = vst [vmem:[#allocation2 + $0x670] sm:$0xff] 0.0
          %837 = vst [vmem:[#allocation2 + $0x678] sm:$0xff] 0.0
          %838 = vst [vmem:[#allocation2 + $0x680] sm:$0xff] 0.0
          %839 = vst [vmem:[#allocation2 + $0x688] sm:$0xff] 0.0
          %840 = vst [vmem:[#allocation2 + $0x690] sm:$0xff] 0.0
          %841 = vst [vmem:[#allocation2 + $0x698] sm:$0xff] 0.0
          %842 = vst [vmem:[#allocation2 + $0x6a0] sm:$0xff] 0.0
          %843 = vst [vmem:[#allocation2 + $0x6a8] sm:$0xff] 0.0
          %844 = vst [vmem:[#allocation2 + $0x6b0] sm:$0xff] 0.0
          %845 = vst [vmem:[#allocation2 + $0x6b8] sm:$0xff] 0.0
          %846 = vst [vmem:[#allocation2 + $0x6c0] sm:$0xff] 0.0
          %847 = vst [vmem:[#allocation2 + $0x6c8] sm:$0xff] 0.0
          %848 = vst [vmem:[#allocation2 + $0x6d0] sm:$0xff] 0.0
          %849 = vst [vmem:[#allocation2 + $0x6d8] sm:$0xff] 0.0
          %850 = vst [vmem:[#allocation2 + $0x6e0] sm:$0xff] 0.0
          %851 = vst [vmem:[#allocation2 + $0x6e8] sm:$0xff] 0.0
          %852 = vst [vmem:[#allocation2 + $0x6f0] sm:$0xff] 0.0
          %853 = vst [vmem:[#allocation2 + $0x6f8] sm:$0xff] 0.0
        $region98: #{_preprocess.3} parent=89 // pred_fallthru
          _
        %v854 = vld [vmem:[#allocation2] sm:$0xff]
        %v855 = vld [vmem:[#allocation2 + $0x8] sm:$0xff]
        %v856 = vld [vmem:[#allocation2 + $0x10] sm:$0xff]
        %v857 = vld [vmem:[#allocation2 + $0x18] sm:$0xff]
        %v858 = vld [vmem:[#allocation2 + $0x20] sm:$0xff]
        %v859 = vld [vmem:[#allocation2 + $0x28] sm:$0xff]
        %v860 = vld [vmem:[#allocation2 + $0x30] sm:$0xff]
        %v861 = vld [vmem:[#allocation2 + $0x38] sm:$0xff]
        %v862 = vld [vmem:[#allocation2 + $0x40] sm:$0xff]
        %v863 = vld [vmem:[#allocation2 + $0x48] sm:$0xff]
        %v864 = vld [vmem:[#allocation2 + $0x50] sm:$0xff]
        %v865 = vld [vmem:[#allocation2 + $0x58] sm:$0xff]
        %v866 = vld [vmem:[#allocation2 + $0x60] sm:$0xff]
        %v867 = vld [vmem:[#allocation2 + $0x68] sm:$0xff]
        %v868 = vld [vmem:[#allocation2 + $0x70] sm:$0xff]
        %v869 = vld [vmem:[#allocation2 + $0x78] sm:$0xff]
        %v870 = vld [vmem:[#allocation2 + $0x80] sm:$0xff]
        %v871 = vld [vmem:[#allocation2 + $0x88] sm:$0xff]
        %v872 = vld [vmem:[#allocation2 + $0x90] sm:$0xff]
        %v873 = vld [vmem:[#allocation2 + $0x98] sm:$0xff]
        %v874 = vld [vmem:[#allocation2 + $0xa0] sm:$0xff]
        %v875 = vld [vmem:[#allocation2 + $0xa8] sm:$0xff]
        %v876 = vld [vmem:[#allocation2 + $0xb0] sm:$0xff]
        %v877 = vld [vmem:[#allocation2 + $0xb8] sm:$0xff]
        %v878 = vld [vmem:[#allocation2 + $0xc0] sm:$0xff]
        %v879 = vld [vmem:[#allocation2 + $0xc8] sm:$0xff]
        %v880 = vld [vmem:[#allocation2 + $0xd0] sm:$0xff]
        %v881 = vld [vmem:[#allocation2 + $0xd8] sm:$0xff]
        %v882 = vld [vmem:[#allocation2 + $0xe0] sm:$0xff]
        %v883 = vld [vmem:[#allocation2 + $0xe8] sm:$0xff]
        %v884 = vld [vmem:[#allocation2 + $0xf0] sm:$0xff]
        %v885 = vld [vmem:[#allocation2 + $0xf8] sm:$0xff]
        %v886 = vld [vmem:[#allocation2 + $0x100] sm:$0xff]
        %v887 = vld [vmem:[#allocation2 + $0x108] sm:$0xff]
        %v888 = vld [vmem:[#allocation2 + $0x110] sm:$0xff]
        %v889 = vld [vmem:[#allocation2 + $0x118] sm:$0xff]
        %v890 = vld [vmem:[#allocation2 + $0x120] sm:$0xff]
        %v891 = vld [vmem:[#allocation2 + $0x128] sm:$0xff]
        %v892 = vld [vmem:[#allocation2 + $0x130] sm:$0xff]
        %v893 = vld [vmem:[#allocation2 + $0x138] sm:$0xff]
        %v894 = vld [vmem:[#allocation2 + $0x140] sm:$0xff]
        %v895 = vld [vmem:[#allocation2 + $0x148] sm:$0xff]
        %v896 = vld [vmem:[#allocation2 + $0x150] sm:$0xff]
        %v897 = vld [vmem:[#allocation2 + $0x158] sm:$0xff]
        %v898 = vld [vmem:[#allocation2 + $0x160] sm:$0xff]
        %v899 = vld [vmem:[#allocation2 + $0x168] sm:$0xff]
        %v900 = vld [vmem:[#allocation2 + $0x170] sm:$0xff]
        %v901 = vld [vmem:[#allocation2 + $0x178] sm:$0xff]
        %v902 = vld [vmem:[#allocation2 + $0x180] sm:$0xff]
        %v903 = vld [vmem:[#allocation2 + $0x188] sm:$0xff]
        %v904 = vld [vmem:[#allocation2 + $0x190] sm:$0xff]
        %v905 = vld [vmem:[#allocation2 + $0x198] sm:$0xff]
        %v906 = vld [vmem:[#allocation2 + $0x1a0] sm:$0xff]
        %v907 = vld [vmem:[#allocation2 + $0x1a8] sm:$0xff]
        %v908 = vld [vmem:[#allocation2 + $0x1b0] sm:$0xff]
        %v909 = vld [vmem:[#allocation2 + $0x1b8] sm:$0xff]
        %v910 = vld [vmem:[#allocation2 + $0x1c0] sm:$0xff]
        %v911 = vld [vmem:[#allocation2 + $0x1c8] sm:$0xff]
        %v912 = vld [vmem:[#allocation2 + $0x1d0] sm:$0xff]
        %v913 = vld [vmem:[#allocation2 + $0x1d8] sm:$0xff]
        %v914 = vld [vmem:[#allocation2 + $0x1e0] sm:$0xff]
        %v915 = vld [vmem:[#allocation2 + $0x1e8] sm:$0xff]
        %v916 = vld [vmem:[#allocation2 + $0x1f0] sm:$0xff]
        %v917 = vld [vmem:[#allocation2 + $0x1f8] sm:$0xff]
        %v918 = vld [vmem:[#allocation2 + $0x200] sm:$0xff]
        %v919 = vld [vmem:[#allocation2 + $0x208] sm:$0xff]
        %v920 = vld [vmem:[#allocation2 + $0x210] sm:$0xff]
        %v921 = vld [vmem:[#allocation2 + $0x218] sm:$0xff]
        %v922 = vld [vmem:[#allocation2 + $0x220] sm:$0xff]
        %v923 = vld [vmem:[#allocation2 + $0x228] sm:$0xff]
        %v924 = vld [vmem:[#allocation2 + $0x230] sm:$0xff]
        %v925 = vld [vmem:[#allocation2 + $0x238] sm:$0xff]
        %v926 = vld [vmem:[#allocation2 + $0x240] sm:$0xff]
        %v927 = vld [vmem:[#allocation2 + $0x248] sm:$0xff]
        %v928 = vld [vmem:[#allocation2 + $0x250] sm:$0xff]
        %v929 = vld [vmem:[#allocation2 + $0x258] sm:$0xff]
        %v930 = vld [vmem:[#allocation2 + $0x260] sm:$0xff]
        %v931 = vld [vmem:[#allocation2 + $0x268] sm:$0xff]
        %v932 = vld [vmem:[#allocation2 + $0x270] sm:$0xff]
        %v933 = vld [vmem:[#allocation2 + $0x278] sm:$0xff]
        %v934 = vld [vmem:[#allocation2 + $0x280] sm:$0xff]
        %v935 = vld [vmem:[#allocation2 + $0x288] sm:$0xff]
        %v936 = vld [vmem:[#allocation2 + $0x290] sm:$0xff]
        %v937 = vld [vmem:[#allocation2 + $0x298] sm:$0xff]
        %v938 = vld [vmem:[#allocation2 + $0x2a0] sm:$0xff]
        %v939 = vld [vmem:[#allocation2 + $0x2a8] sm:$0xff]
        %v940 = vld [vmem:[#allocation2 + $0x2b0] sm:$0xff]
        %v941 = vld [vmem:[#allocation2 + $0x2b8] sm:$0xff]
        %v942 = vld [vmem:[#allocation2 + $0x2c0] sm:$0xff]
        %v943 = vld [vmem:[#allocation2 + $0x2c8] sm:$0xff]
        %v944 = vld [vmem:[#allocation2 + $0x2d0] sm:$0xff]
        %v945 = vld [vmem:[#allocation2 + $0x2d8] sm:$0xff]
        %v946 = vld [vmem:[#allocation2 + $0x2e0] sm:$0xff]
        %v947 = vld [vmem:[#allocation2 + $0x2e8] sm:$0xff]
        %v948 = vld [vmem:[#allocation2 + $0x2f0] sm:$0xff]
        %v949 = vld [vmem:[#allocation2 + $0x2f8] sm:$0xff]
        %v950 = vld [vmem:[#allocation2 + $0x300] sm:$0xff]
        %v951 = vld [vmem:[#allocation2 + $0x308] sm:$0xff]
        %v952 = vld [vmem:[#allocation2 + $0x310] sm:$0xff]
        %v953 = vld [vmem:[#allocation2 + $0x318] sm:$0xff]
        %v954 = vld [vmem:[#allocation2 + $0x320] sm:$0xff]
        %v955 = vld [vmem:[#allocation2 + $0x328] sm:$0xff]
        %v956 = vld [vmem:[#allocation2 + $0x330] sm:$0xff]
        %v957 = vld [vmem:[#allocation2 + $0x338] sm:$0xff]
        %v958 = vld [vmem:[#allocation2 + $0x340] sm:$0xff]
        %v959 = vld [vmem:[#allocation2 + $0x348] sm:$0xff]
        %v960 = vld [vmem:[#allocation2 + $0x350] sm:$0xff]
        %v961 = vld [vmem:[#allocation2 + $0x358] sm:$0xff]
        %v962 = vld [vmem:[#allocation2 + $0x360] sm:$0xff]
        %v963 = vld [vmem:[#allocation2 + $0x368] sm:$0xff]
        %v964 = vld [vmem:[#allocation2 + $0x370] sm:$0xff]
        %v965 = vld [vmem:[#allocation2 + $0x378] sm:$0xff]
        %v966 = vld [vmem:[#allocation2 + $0x380] sm:$0xff]
        %v967 = vld [vmem:[#allocation2 + $0x388] sm:$0xff]
        %v968 = vld [vmem:[#allocation2 + $0x390] sm:$0xff]
        %v969 = vld [vmem:[#allocation2 + $0x398] sm:$0xff]
        %v970 = vld [vmem:[#allocation2 + $0x3a0] sm:$0xff]
        %v971 = vld [vmem:[#allocation2 + $0x3a8] sm:$0xff]
        %v972 = vld [vmem:[#allocation2 + $0x3b0] sm:$0xff]
        %v973 = vld [vmem:[#allocation2 + $0x3b8] sm:$0xff]
        %v974 = vld [vmem:[#allocation2 + $0x3c0] sm:$0xff]
        %v975 = vld [vmem:[#allocation2 + $0x3c8] sm:$0xff]
        %v976 = vld [vmem:[#allocation2 + $0x3d0] sm:$0xff]
        %v977 = vld [vmem:[#allocation2 + $0x3d8] sm:$0xff]
        %v978 = vld [vmem:[#allocation2 + $0x3e0] sm:$0xff]
        %v979 = vld [vmem:[#allocation2 + $0x3e8] sm:$0xff]
        %v980 = vld [vmem:[#allocation2 + $0x3f0] sm:$0xff]
        %v981 = vld [vmem:[#allocation2 + $0x3f8] sm:$0xff]
        %v982 = vld [vmem:[#allocation2 + $0x400] sm:$0xff]
        %v983 = vld [vmem:[#allocation2 + $0x408] sm:$0xff]
        %v984 = vld [vmem:[#allocation2 + $0x410] sm:$0xff]
        %v985 = vld [vmem:[#allocation2 + $0x418] sm:$0xff]
        %v986 = vld [vmem:[#allocation2 + $0x420] sm:$0xff]
        %v987 = vld [vmem:[#allocation2 + $0x428] sm:$0xff]
        %v988 = vld [vmem:[#allocation2 + $0x430] sm:$0xff]
        %v989 = vld [vmem:[#allocation2 + $0x438] sm:$0xff]
        %v990 = vld [vmem:[#allocation2 + $0x440] sm:$0xff]
        %v991 = vld [vmem:[#allocation2 + $0x448] sm:$0xff]
        %v992 = vld [vmem:[#allocation2 + $0x450] sm:$0xff]
        %v993 = vld [vmem:[#allocation2 + $0x458] sm:$0xff]
        %v994 = vld [vmem:[#allocation2 + $0x460] sm:$0xff]
        %v995 = vld [vmem:[#allocation2 + $0x468] sm:$0xff]
        %v996 = vld [vmem:[#allocation2 + $0x470] sm:$0xff]
        %v997 = vld [vmem:[#allocation2 + $0x478] sm:$0xff]
        %v998 = vld [vmem:[#allocation2 + $0x480] sm:$0xff]
        %v999 = vld [vmem:[#allocation2 + $0x488] sm:$0xff]
        %v1000 = vld [vmem:[#allocation2 + $0x490] sm:$0xff]
        %v1001 = vld [vmem:[#allocation2 + $0x498] sm:$0xff]
        %v1002 = vld [vmem:[#allocation2 + $0x4a0] sm:$0xff]
        %v1003 = vld [vmem:[#allocation2 + $0x4a8] sm:$0xff]
        %v1004 = vld [vmem:[#allocation2 + $0x4b0] sm:$0xff]
        %v1005 = vld [vmem:[#allocation2 + $0x4b8] sm:$0xff]
        %v1006 = vld [vmem:[#allocation2 + $0x4c0] sm:$0xff]
        %v1007 = vld [vmem:[#allocation2 + $0x4c8] sm:$0xff]
        %v1008 = vld [vmem:[#allocation2 + $0x4d0] sm:$0xff]
        %v1009 = vld [vmem:[#allocation2 + $0x4d8] sm:$0xff]
        %v1010 = vld [vmem:[#allocation2 + $0x4e0] sm:$0xff]
        %v1011 = vld [vmem:[#allocation2 + $0x4e8] sm:$0xff]
        %v1012 = vld [vmem:[#allocation2 + $0x4f0] sm:$0xff]
        %v1013 = vld [vmem:[#allocation2 + $0x4f8] sm:$0xff]
        %v1014 = vld [vmem:[#allocation2 + $0x500] sm:$0xff]
        %v1015 = vld [vmem:[#allocation2 + $0x508] sm:$0xff]
        %v1016 = vld [vmem:[#allocation2 + $0x510] sm:$0xff]
        %v1017 = vld [vmem:[#allocation2 + $0x518] sm:$0xff]
        %v1018 = vld [vmem:[#allocation2 + $0x520] sm:$0xff]
        %v1019 = vld [vmem:[#allocation2 + $0x528] sm:$0xff]
        %v1020 = vld [vmem:[#allocation2 + $0x530] sm:$0xff]
        %v1021 = vld [vmem:[#allocation2 + $0x538] sm:$0xff]
        %v1022 = vld [vmem:[#allocation2 + $0x540] sm:$0xff]
        %v1023 = vld [vmem:[#allocation2 + $0x548] sm:$0xff]
        %v1024 = vld [vmem:[#allocation2 + $0x550] sm:$0xff]
        %v1025 = vld [vmem:[#allocation2 + $0x558] sm:$0xff]
        %v1026 = vld [vmem:[#allocation2 + $0x560] sm:$0xff]
        %v1027 = vld [vmem:[#allocation2 + $0x568] sm:$0xff]
        %v1028 = vld [vmem:[#allocation2 + $0x570] sm:$0xff]
        %v1029 = vld [vmem:[#allocation2 + $0x578] sm:$0xff]
        %v1030 = vld [vmem:[#allocation2 + $0x580] sm:$0xff]
        %v1031 = vld [vmem:[#allocation2 + $0x588] sm:$0xff]
        %v1032 = vld [vmem:[#allocation2 + $0x590] sm:$0xff]
        %v1033 = vld [vmem:[#allocation2 + $0x598] sm:$0xff]
        %v1034 = vld [vmem:[#allocation2 + $0x5a0] sm:$0xff]
        %v1035 = vld [vmem:[#allocation2 + $0x5a8] sm:$0xff]
        %v1036 = vld [vmem:[#allocation2 + $0x5b0] sm:$0xff]
        %v1037 = vld [vmem:[#allocation2 + $0x5b8] sm:$0xff]
        %v1038 = vld [vmem:[#allocation2 + $0x5c0] sm:$0xff]
        %v1039 = vld [vmem:[#allocation2 + $0x5c8] sm:$0xff]
        %v1040 = vld [vmem:[#allocation2 + $0x5d0] sm:$0xff]
        %v1041 = vld [vmem:[#allocation2 + $0x5d8] sm:$0xff]
        %v1042 = vld [vmem:[#allocation2 + $0x5e0] sm:$0xff]
        %v1043 = vld [vmem:[#allocation2 + $0x5e8] sm:$0xff]
        %v1044 = vld [vmem:[#allocation2 + $0x5f0] sm:$0xff]
        %v1045 = vld [vmem:[#allocation2 + $0x5f8] sm:$0xff]
        %v1046 = vld [vmem:[#allocation2 + $0x600] sm:$0xff]
        %v1047 = vld [vmem:[#allocation2 + $0x608] sm:$0xff]
        %v1048 = vld [vmem:[#allocation2 + $0x610] sm:$0xff]
        %v1049 = vld [vmem:[#allocation2 + $0x618] sm:$0xff]
        %v1050 = vld [vmem:[#allocation2 + $0x620] sm:$0xff]
        %v1051 = vld [vmem:[#allocation2 + $0x628] sm:$0xff]
        %v1052 = vld [vmem:[#allocation2 + $0x630] sm:$0xff]
        %v1053 = vld [vmem:[#allocation2 + $0x638] sm:$0xff]
        %v1054 = vld [vmem:[#allocation2 + $0x640] sm:$0xff]
        %v1055 = vld [vmem:[#allocation2 + $0x648] sm:$0xff]
        %v1056 = vld [vmem:[#allocation2 + $0x650] sm:$0xff]
        %v1057 = vld [vmem:[#allocation2 + $0x658] sm:$0xff]
        %v1058 = vld [vmem:[#allocation2 + $0x660] sm:$0xff]
        %v1059 = vld [vmem:[#allocation2 + $0x668] sm:$0xff]
        %v1060 = vld [vmem:[#allocation2 + $0x670] sm:$0xff]
        %v1061 = vld [vmem:[#allocation2 + $0x678] sm:$0xff]
        %v1062 = vld [vmem:[#allocation2 + $0x680] sm:$0xff]
        %v1063 = vld [vmem:[#allocation2 + $0x688] sm:$0xff]
        %v1064 = vld [vmem:[#allocation2 + $0x690] sm:$0xff]
        %v1065 = vld [vmem:[#allocation2 + $0x698] sm:$0xff]
        %v1066 = vld [vmem:[#allocation2 + $0x6a0] sm:$0xff]
        %v1067 = vld [vmem:[#allocation2 + $0x6a8] sm:$0xff]
        %v1068 = vld [vmem:[#allocation2 + $0x6b0] sm:$0xff]
        %v1069 = vld [vmem:[#allocation2 + $0x6b8] sm:$0xff]
        %v1070 = vld [vmem:[#allocation2 + $0x6c0] sm:$0xff]
        %v1071 = vld [vmem:[#allocation2 + $0x6c8] sm:$0xff]
        %v1072 = vld [vmem:[#allocation2 + $0x6d0] sm:$0xff]
        %v1073 = vld [vmem:[#allocation2 + $0x6d8] sm:$0xff]
        %v1074 = vld [vmem:[#allocation2 + $0x6e0] sm:$0xff]
        %v1075 = vld [vmem:[#allocation2 + $0x6e8] sm:$0xff]
        %v1076 = vld [vmem:[#allocation2 + $0x6f0] sm:$0xff]
        %v1077 = vld [vmem:[#allocation2 + $0x6f8] sm:$0xff]
        %v1078 = vld [vmem:[%s612] sm:$0xff]
        %v1079 = vld [vmem:[%s612 + $0x8] sm:$0xff]
        %v1080 = vld [vmem:[%s612 + $0x10] sm:$0xff]
        %v1081 = vld [vmem:[%s612 + $0x18] sm:$0xff]
        %v1082 = vld [vmem:[%s612 + $0x20] sm:$0xff]
        %v1083 = vld [vmem:[%s612 + $0x28] sm:$0xff]
        %v1084 = vld [vmem:[%s612 + $0x30] sm:$0xff]
        %v1085 = vld [vmem:[%s612 + $0x38] sm:$0xff]
        %v1086 = vld [vmem:[%s612 + $0x40] sm:$0xff]
        %v1087 = vld [vmem:[%s612 + $0x48] sm:$0xff]
        %v1088 = vld [vmem:[%s612 + $0x50] sm:$0xff]
        %v1089 = vld [vmem:[%s612 + $0x58] sm:$0xff]
        %v1090 = vld [vmem:[%s612 + $0x60] sm:$0xff]
        %v1091 = vld [vmem:[%s612 + $0x68] sm:$0xff]
        %v1092 = vld [vmem:[%s612 + $0x70] sm:$0xff]
        %v1093 = vld [vmem:[%s612 + $0x78] sm:$0xff]
        %v1094 = vld [vmem:[%s612 + $0x80] sm:$0xff]
        %v1095 = vld [vmem:[%s612 + $0x88] sm:$0xff]
        %v1096 = vld [vmem:[%s612 + $0x90] sm:$0xff]
        %v1097 = vld [vmem:[%s612 + $0x98] sm:$0xff]
        %v1098 = vld [vmem:[%s612 + $0xa0] sm:$0xff]
        %v1099 = vld [vmem:[%s612 + $0xa8] sm:$0xff]
        %v1100 = vld [vmem:[%s612 + $0xb0] sm:$0xff]
        %v1101 = vld [vmem:[%s612 + $0xb8] sm:$0xff]
        %v1102 = vld [vmem:[%s612 + $0xc0] sm:$0xff]
        %v1103 = vld [vmem:[%s612 + $0xc8] sm:$0xff]
        %v1104 = vld [vmem:[%s612 + $0xd0] sm:$0xff]
        %v1105 = vld [vmem:[%s612 + $0xd8] sm:$0xff]
        %v1106 = vld [vmem:[%s612 + $0xe0] sm:$0xff]
        %v1107 = vld [vmem:[%s612 + $0xe8] sm:$0xff]
        %v1108 = vld [vmem:[%s612 + $0xf0] sm:$0xff]
        %v1109 = vld [vmem:[%s612 + $0xf8] sm:$0xff]
        %v1110 = vld [vmem:[%s612 + $0x100] sm:$0xff]
        %v1111 = vld [vmem:[%s612 + $0x108] sm:$0xff]
        %v1112 = vld [vmem:[%s612 + $0x110] sm:$0xff]
        %v1113 = vld [vmem:[%s612 + $0x118] sm:$0xff]
        %v1114 = vld [vmem:[%s612 + $0x120] sm:$0xff]
        %v1115 = vld [vmem:[%s612 + $0x128] sm:$0xff]
        %v1116 = vld [vmem:[%s612 + $0x130] sm:$0xff]
        %v1117 = vld [vmem:[%s612 + $0x138] sm:$0xff]
        %v1118 = vld [vmem:[%s612 + $0x140] sm:$0xff]
        %v1119 = vld [vmem:[%s612 + $0x148] sm:$0xff]
        %v1120 = vld [vmem:[%s612 + $0x150] sm:$0xff]
        %v1121 = vld [vmem:[%s612 + $0x158] sm:$0xff]
        %v1122 = vld [vmem:[%s612 + $0x160] sm:$0xff]
        %v1123 = vld [vmem:[%s612 + $0x168] sm:$0xff]
        %v1124 = vld [vmem:[%s612 + $0x170] sm:$0xff]
        %v1125 = vld [vmem:[%s612 + $0x178] sm:$0xff]
        %v1126 = vld [vmem:[%s612 + $0x180] sm:$0xff]
        %v1127 = vld [vmem:[%s612 + $0x188] sm:$0xff]
        %v1128 = vld [vmem:[%s612 + $0x190] sm:$0xff]
        %v1129 = vld [vmem:[%s612 + $0x198] sm:$0xff]
        %v1130 = vld [vmem:[%s612 + $0x1a0] sm:$0xff]
        %v1131 = vld [vmem:[%s612 + $0x1a8] sm:$0xff]
        %v1132 = vld [vmem:[%s612 + $0x1b0] sm:$0xff]
        %v1133 = vld [vmem:[%s612 + $0x1b8] sm:$0xff]
        %v1134 = vld [vmem:[%s579] sm:$0xff]
        %v1135 = vld [vmem:[%s579 + $0x8] sm:$0xff]
        %v1136 = vld [vmem:[%s579 + $0x10] sm:$0xff]
        %v1137 = vld [vmem:[%s579 + $0x18] sm:$0xff]
        %v1138 = vld [vmem:[%s579 + $0x20] sm:$0xff]
        %v1139 = vld [vmem:[%s579 + $0x28] sm:$0xff]
        %v1140 = vld [vmem:[%s579 + $0x30] sm:$0xff]
        %v1141 = vld [vmem:[%s579 + $0x38] sm:$0xff]
        %vm1142 = vcmask 130048
        %v1144 = vsel %vm1142, %v1078, 0
        %v1147 = vsel %vm1142, %v1079, 0
        %v1150 = vsel %vm1142, %v1080, 0
        %v1153 = vsel %vm1142, %v1081, 0
        %v1156 = vsel %vm1142, %v1082, 0
        %v1159 = vsel %vm1142, %v1083, 0
        %v1162 = vsel %vm1142, %v1084, 0
        %v1165 = vsel %vm1142, %v1085, 0
        %v1168 = vsel %vm1142, %v1086, 0
        %v1171 = vsel %vm1142, %v1087, 0
        %v1174 = vsel %vm1142, %v1088, 0
        %v1177 = vsel %vm1142, %v1089, 0
        %v1180 = vsel %vm1142, %v1090, 0
        %v1183 = vsel %vm1142, %v1091, 0
        %v1186 = vsel %vm1142, %v1092, 0
        %v1189 = vsel %vm1142, %v1093, 0
        %v1192 = vsel %vm1142, %v1094, 0
        %v1195 = vsel %vm1142, %v1095, 0
        %v1198 = vsel %vm1142, %v1096, 0
        %v1201 = vsel %vm1142, %v1097, 0
        %v1204 = vsel %vm1142, %v1098, 0
        %v1207 = vsel %vm1142, %v1099, 0
        %v1210 = vsel %vm1142, %v1100, 0
        %v1213 = vsel %vm1142, %v1101, 0
        %v1216 = vsel %vm1142, %v1102, 0
        %v1219 = vsel %vm1142, %v1103, 0
        %v1222 = vsel %vm1142, %v1104, 0
        %v1225 = vsel %vm1142, %v1105, 0
        %v1228 = vsel %vm1142, %v1106, 0
        %v1231 = vsel %vm1142, %v1107, 0
        %v1234 = vsel %vm1142, %v1108, 0
        %v1237 = vsel %vm1142, %v1109, 0
        %v1240 = vsel %vm1142, %v1110, 0
        %v1243 = vsel %vm1142, %v1111, 0
        %v1246 = vsel %vm1142, %v1112, 0
        %v1249 = vsel %vm1142, %v1113, 0
        %v1252 = vsel %vm1142, %v1114, 0
        %v1255 = vsel %vm1142, %v1115, 0
        %v1258 = vsel %vm1142, %v1116, 0
        %v1261 = vsel %vm1142, %v1117, 0
        %v1264 = vsel %vm1142, %v1118, 0
        %v1267 = vsel %vm1142, %v1119, 0
        %v1270 = vsel %vm1142, %v1120, 0
        %v1273 = vsel %vm1142, %v1121, 0
        %v1276 = vsel %vm1142, %v1122, 0
        %v1279 = vsel %vm1142, %v1123, 0
        %v1282 = vsel %vm1142, %v1124, 0
        %v1285 = vsel %vm1142, %v1125, 0
        %v1288 = vsel %vm1142, %v1126, 0
        %v1291 = vsel %vm1142, %v1127, 0
        %v1294 = vsel %vm1142, %v1128, 0
        %v1297 = vsel %vm1142, %v1129, 0
        %v1300 = vsel %vm1142, %v1130, 0
        %v1303 = vsel %vm1142, %v1131, 0
        %v1306 = vsel %vm1142, %v1132, 0
        %v1309 = vsel %vm1142, %v1133, 0
        %1311 = vmatprep.subr.mxu0 %v1135
        %1312 = vmatpush1.msra.mxu0 %v1134
        %1313 = vmatprep.subr.mxu0 %v1139
        %1314 = vmatpush1.msra.mxu0 %v1138
        %1315 = vmatprep.subr.mxu0 0.0
        %1316 = vmatpush1.msra.mxu0 0.0
        %1317 = vmatprep.subr.mxu0 0.0
        %1318 = vmatpush1.msra.mxu0 0.0
        %1319 = vmatprep.subr.mxu0 0.0
        %1320 = vmatpush1.msra.mxu0 0.0
        %1321 = vmatprep.subr.mxu0 0.0
        %1322 = vmatpush1.msra.mxu0 0.0
        %1323 = vmatprep.subr.mxu0 0.0
        %1324 = vmatpush1.msra.mxu0 0.0
        %1325 = vmatprep.subr.mxu0 0.0
        %1326 = vmatpush1.msra.mxu0 0.0
        %1327 = vmatprep.subr.mxu0 0.0
        %1328 = vmatpush1.msra.mxu0 0.0
        %1329 = vmatprep.subr.mxu0 0.0
        %1330 = vmatpush1.msra.mxu0 0.0
        %1331 = vmatprep.subr.mxu0 0.0
        %1332 = vmatpush1.msra.mxu0 0.0
        %1333 = vmatprep.subr.mxu0 0.0
        %1334 = vmatpush1.msra.mxu0 0.0
        %1335 = vmatprep.subr.mxu0 0.0
        %1336 = vmatpush1.msra.mxu0 0.0
        %1337 = vmatprep.subr.mxu0 0.0
        %1338 = vmatpush1.msra.mxu0 0.0
        %1339 = vmatprep.subr.mxu0 0.0
        %1340 = vmatpush1.msra.mxu0 0.0
        %1341 = vmatprep.subr.mxu0 0.0
        %1342 = vmatpush1.msra.mxu0 0.0
        %1343 = vmatprep.subr.mxu0 0.0
        %1344 = vmatpush1.msra.mxu0 0.0
        %1345 = vmatprep.subr.mxu0 0.0
        %1346 = vmatpush1.msra.mxu0 0.0
        %1347 = vmatprep.subr.mxu0 0.0
        %1348 = vmatpush1.msra.mxu0 0.0
        %1349 = vmatprep.subr.mxu0 0.0
        %1350 = vmatpush1.msra.mxu0 0.0
        %1351 = vmatprep.subr.mxu0 0.0
        %1352 = vmatpush1.msra.mxu0 0.0
        %1353 = vmatprep.subr.mxu0 0.0
        %1354 = vmatpush1.msra.mxu0 0.0
        %1355 = vmatprep.subr.mxu0 0.0
        %1356 = vmatpush1.msra.mxu0 0.0
        %1357 = vmatprep.subr.mxu0 0.0
        %1358 = vmatpush1.msra.mxu0 0.0
        %1359 = vmatprep.subr.mxu0 0.0
        %1360 = vmatpush1.msra.mxu0 0.0
        %1361 = vmatprep.subr.mxu0 0.0
        %1362 = vmatpush1.msra.mxu0 0.0
        %1363 = vmatprep.subr.mxu0 0.0
        %1364 = vmatpush1.msra.mxu0 0.0
        %1365 = vmatprep.subr.mxu0 0.0
        %1366 = vmatpush1.msra.mxu0 0.0
        %1367 = vmatprep.subr.mxu0 0.0
        %1368 = vmatpush1.msra.mxu0 0.0
        %1369 = vmatprep.subr.mxu0 0.0
        %1370 = vmatpush1.msra.mxu0 0.0
        %1371 = vmatprep.subr.mxu0 0.0
        %1372 = vmatpush1.msra.mxu0 0.0
        %1373 = vmatprep.subr.mxu0 0.0
        %1374 = vmatpush1.msra.mxu0 0.0
        %1375 = vmatprep.mubr.f32.mxu0 0.0
        %1376 = vmatmul.mubr.f32.gmra.mrb[0].mxu0 %v1144
        %v1377 = vpop.f32.mrb[0].mxu0
        %v1378 = vadd.f32 0.0, %v1377
        %v1379 = vpop.f32.mrb[0].mxu0
        %v1380 = vadd.f32 0.0, %v1379
        %1381 = vmatprep.mubr.f32.mxu0 0.0
        %1382 = vmatmul.mubr.f32.gmra.mrb[0].mxu0 %v1147
        %v1383 = vpop.f32.mrb[0].mxu0
        %v1384 = vadd.f32 0.0, %v1383
        %v1385 = vpop.f32.mrb[0].mxu0
        %v1386 = vadd.f32 0.0, %v1385
        %1387 = vmatprep.mubr.f32.mxu0 0.0
        %1388 = vmatmul.mubr.f32.gmra.mrb[0].mxu0 %v1150
        %v1389 = vpop.f32.mrb[0].mxu0
        %v1390 = vadd.f32 0.0, %v1389
        %v1391 = vpop.f32.mrb[0].mxu0
        %v1392 = vadd.f32 0.0, %v1391
        %1393 = vmatprep.mubr.f32.mxu0 0.0
        %1394 = vmatmul.mubr.f32.gmra.mrb[0].mxu0 %v1153
        %v1395 = vpop.f32.mrb[0].mxu0
        %v1396 = vadd.f32 0.0, %v1395
        %v1397 = vpop.f32.mrb[0].mxu0
        %v1398 = vadd.f32 0.0, %v1397
        %1399 = vmatprep.mubr.f32.mxu0 0.0
        %1400 = vmatmul.mubr.f32.gmra.mrb[0].mxu0 %v1156
        %v1401 = vpop.f32.mrb[0].mxu0
        %v1402 = vadd.f32 0.0, %v1401
        %v1403 = vpop.f32.mrb[0].mxu0
        %v1404 = vadd.f32 0.0, %v1403
        %1405 = vmatprep.mubr.f32.mxu0 0.0
        %1406 = vmatmul.mubr.f32.gmra.mrb[0].mxu0 %v1159
        %v1407 = vpop.f32.mrb[0].mxu0
        %v1408 = vadd.f32 0.0, %v1407
        %v1409 = vpop.f32.mrb[0].mxu0
        %v1410 = vadd.f32 0.0, %v1409
        %1411 = vmatprep.mubr.f32.mxu0 0.0
        %1412 = vmatmul.mubr.f32.gmra.mrb[0].mxu0 %v1162
        %v1413 = vpop.f32.mrb[0].mxu0
        %v1414 = vadd.f32 0.0, %v1413
        %v1415 = vpop.f32.mrb[0].mxu0
        %v1416 = vadd.f32 0.0, %v1415
        %1417 = vmatprep.mubr.f32.mxu0 0.0
        %1418 = vmatmul.mubr.f32.gmra.mrb[0].mxu0 %v1165
        %v1419 = vpop.f32.mrb[0].mxu0
        %v1420 = vadd.f32 0.0, %v1419
        %v1421 = vpop.f32.mrb[0].mxu0
        %v1422 = vadd.f32 0.0, %v1421
        %1423 = vmatprep.mubr.f32.mxu0 0.0
        %1424 = vmatmul.mubr.f32.gmra.mrb[0].mxu0 %v1168
        %v1425 = vpop.f32.mrb[0].mxu0
        %v1426 = vadd.f32 0.0, %v1425
        %v1427 = vpop.f32.mrb[0].mxu0
        %v1428 = vadd.f32 0.0, %v1427
        %1429 = vmatprep.mubr.f32.mxu0 0.0
        %1430 = vmatmul.mubr.f32.gmra.mrb[0].mxu0 %v1171
        %v1431 = vpop.f32.mrb[0].mxu0
        %v1432 = vadd.f32 0.0, %v1431
        %v1433 = vpop.f32.mrb[0].mxu0
        %v1434 = vadd.f32 0.0, %v1433
        %1435 = vmatprep.mubr.f32.mxu0 0.0
        %1436 = vmatmul.mubr.f32.gmra.mrb[0].mxu0 %v1174
        %v1437 = vpop.f32.mrb[0].mxu0
        %v1438 = vadd.f32 0.0, %v1437
        %v1439 = vpop.f32.mrb[0].mxu0
        %v1440 = vadd.f32 0.0, %v1439
        %1441 = vmatprep.mubr.f32.mxu0 0.0
        %1442 = vmatmul.mubr.f32.gmra.mrb[0].mxu0 %v1177
        %v1443 = vpop.f32.mrb[0].mxu0
        %v1444 = vadd.f32 0.0, %v1443
        %v1445 = vpop.f32.mrb[0].mxu0
        %v1446 = vadd.f32 0.0, %v1445
        %1447 = vmatprep.mubr.f32.mxu0 0.0
        %1448 = vmatmul.mubr.f32.gmra.mrb[0].mxu0 %v1180
        %v1449 = vpop.f32.mrb[0].mxu0
        %v1450 = vadd.f32 0.0, %v1449
        %v1451 = vpop.f32.mrb[0].mxu0
        %v1452 = vadd.f32 0.0, %v1451
        %1453 = vmatprep.mubr.f32.mxu0 0.0
        %1454 = vmatmul.mubr.f32.gmra.mrb[0].mxu0 %v1183
        %v1455 = vpop.f32.mrb[0].mxu0
        %v1456 = vadd.f32 0.0, %v1455
        %v1457 = vpop.f32.mrb[0].mxu0
        %v1458 = vadd.f32 0.0, %v1457
        %1459 = vmatprep.mubr.f32.mxu0 0.0
        %1460 = vmatmul.mubr.f32.gmra.mrb[0].mxu0 %v1186
        %v1461 = vpop.f32.mrb[0].mxu0
        %v1462 = vadd.f32 0.0, %v1461
        %v1463 = vpop.f32.mrb[0].mxu0
        %v1464 = vadd.f32 0.0, %v1463
        %1465 = vmatprep.mubr.f32.mxu0 0.0
        %1466 = vmatmul.mubr.f32.gmra.mrb[0].mxu0 %v1189
        %v1467 = vpop.f32.mrb[0].mxu0
        %v1468 = vadd.f32 0.0, %v1467
        %v1469 = vpop.f32.mrb[0].mxu0
        %v1470 = vadd.f32 0.0, %v1469
        %1471 = vmatprep.mubr.f32.mxu0 0.0
        %1472 = vmatmul.mubr.f32.gmra.mrb[0].mxu0 %v1192
        %v1473 = vpop.f32.mrb[0].mxu0
        %v1474 = vadd.f32 0.0, %v1473
        %v1475 = vpop.f32.mrb[0].mxu0
        %v1476 = vadd.f32 0.0, %v1475
        %1477 = vmatprep.mubr.f32.mxu0 0.0
        %1478 = vmatmul.mubr.f32.gmra.mrb[0].mxu0 %v1195
        %v1479 = vpop.f32.mrb[0].mxu0
        %v1480 = vadd.f32 0.0, %v1479
        %v1481 = vpop.f32.mrb[0].mxu0
        %v1482 = vadd.f32 0.0, %v1481
        %1483 = vmatprep.mubr.f32.mxu0 0.0
        %1484 = vmatmul.mubr.f32.gmra.mrb[0].mxu0 %v1198
        %v1485 = vpop.f32.mrb[0].mxu0
        %v1486 = vadd.f32 0.0, %v1485
        %v1487 = vpop.f32.mrb[0].mxu0
        %v1488 = vadd.f32 0.0, %v1487
        %1489 = vmatprep.mubr.f32.mxu0 0.0
        %1490 = vmatmul.mubr.f32.gmra.mrb[0].mxu0 %v1201
        %v1491 = vpop.f32.mrb[0].mxu0
        %v1492 = vadd.f32 0.0, %v1491
        %v1493 = vpop.f32.mrb[0].mxu0
        %v1494 = vadd.f32 0.0, %v1493
        %1495 = vmatprep.mubr.f32.mxu0 0.0
        %1496 = vmatmul.mubr.f32.gmra.mrb[0].mxu0 %v1204
        %v1497 = vpop.f32.mrb[0].mxu0
        %v1498 = vadd.f32 0.0, %v1497
        %v1499 = vpop.f32.mrb[0].mxu0
        %v1500 = vadd.f32 0.0, %v1499
        %1501 = vmatprep.mubr.f32.mxu0 0.0
        %1502 = vmatmul.mubr.f32.gmra.mrb[0].mxu0 %v1207
        %v1503 = vpop.f32.mrb[0].mxu0
        %v1504 = vadd.f32 0.0, %v1503
        %v1505 = vpop.f32.mrb[0].mxu0
        %v1506 = vadd.f32 0.0, %v1505
        %1507 = vmatprep.mubr.f32.mxu0 0.0
        %1508 = vmatmul.mubr.f32.gmra.mrb[0].mxu0 %v1210
        %v1509 = vpop.f32.mrb[0].mxu0
        %v1510 = vadd.f32 0.0, %v1509
        %v1511 = vpop.f32.mrb[0].mxu0
        %v1512 = vadd.f32 0.0, %v1511
        %1513 = vmatprep.mubr.f32.mxu0 0.0
        %1514 = vmatmul.mubr.f32.gmra.mrb[0].mxu0 %v1213
        %v1515 = vpop.f32.mrb[0].mxu0
        %v1516 = vadd.f32 0.0, %v1515
        %v1517 = vpop.f32.mrb[0].mxu0
        %v1518 = vadd.f32 0.0, %v1517
        %1519 = vmatprep.mubr.f32.mxu0 0.0
        %1520 = vmatmul.mubr.f32.gmra.mrb[0].mxu0 %v1216
        %v1521 = vpop.f32.mrb[0].mxu0
        %v1522 = vadd.f32 0.0, %v1521
        %v1523 = vpop.f32.mrb[0].mxu0
        %v1524 = vadd.f32 0.0, %v1523
        %1525 = vmatprep.mubr.f32.mxu0 0.0
        %1526 = vmatmul.mubr.f32.gmra.mrb[0].mxu0 %v1219
        %v1527 = vpop.f32.mrb[0].mxu0
        %v1528 = vadd.f32 0.0, %v1527
        %v1529 = vpop.f32.mrb[0].mxu0
        %v1530 = vadd.f32 0.0, %v1529
        %1531 = vmatprep.mubr.f32.mxu0 0.0
        %1532 = vmatmul.mubr.f32.gmra.mrb[0].mxu0 %v1222
        %v1533 = vpop.f32.mrb[0].mxu0
        %v1534 = vadd.f32 0.0, %v1533
        %v1535 = vpop.f32.mrb[0].mxu0
        %v1536 = vadd.f32 0.0, %v1535
        %1537 = vmatprep.mubr.f32.mxu0 0.0
        %1538 = vmatmul.mubr.f32.gmra.mrb[0].mxu0 %v1225
        %v1539 = vpop.f32.mrb[0].mxu0
        %v1540 = vadd.f32 0.0, %v1539
        %v1541 = vpop.f32.mrb[0].mxu0
        %v1542 = vadd.f32 0.0, %v1541
        %1543 = vmatprep.mubr.f32.mxu0 0.0
        %1544 = vmatmul.mubr.f32.gmra.mrb[0].mxu0 %v1228
        %v1545 = vpop.f32.mrb[0].mxu0
        %v1546 = vadd.f32 0.0, %v1545
        %v1547 = vpop.f32.mrb[0].mxu0
        %v1548 = vadd.f32 0.0, %v1547
        %1549 = vmatprep.mubr.f32.mxu0 0.0
        %1550 = vmatmul.mubr.f32.gmra.mrb[0].mxu0 %v1231
        %v1551 = vpop.f32.mrb[0].mxu0
        %v1552 = vadd.f32 0.0, %v1551
        %v1553 = vpop.f32.mrb[0].mxu0
        %v1554 = vadd.f32 0.0, %v1553
        %1555 = vmatprep.mubr.f32.mxu0 0.0
        %1556 = vmatmul.mubr.f32.gmra.mrb[0].mxu0 %v1234
        %v1557 = vpop.f32.mrb[0].mxu0
        %v1558 = vadd.f32 0.0, %v1557
        %v1559 = vpop.f32.mrb[0].mxu0
        %v1560 = vadd.f32 0.0, %v1559
        %1561 = vmatprep.mubr.f32.mxu0 0.0
        %1562 = vmatmul.mubr.f32.gmra.mrb[0].mxu0 %v1237
        %v1563 = vpop.f32.mrb[0].mxu0
        %v1564 = vadd.f32 0.0, %v1563
        %v1565 = vpop.f32.mrb[0].mxu0
        %v1566 = vadd.f32 0.0, %v1565
        %1567 = vmatprep.mubr.f32.mxu0 0.0
        %1568 = vmatmul.mubr.f32.gmra.mrb[0].mxu0 %v1240
        %v1569 = vpop.f32.mrb[0].mxu0
        %v1570 = vadd.f32 0.0, %v1569
        %v1571 = vpop.f32.mrb[0].mxu0
        %v1572 = vadd.f32 0.0, %v1571
        %1573 = vmatprep.mubr.f32.mxu0 0.0
        %1574 = vmatmul.mubr.f32.gmra.mrb[0].mxu0 %v1243
        %v1575 = vpop.f32.mrb[0].mxu0
        %v1576 = vadd.f32 0.0, %v1575
        %v1577 = vpop.f32.mrb[0].mxu0
        %v1578 = vadd.f32 0.0, %v1577
        %1579 = vmatprep.mubr.f32.mxu0 0.0
        %1580 = vmatmul.mubr.f32.gmra.mrb[0].mxu0 %v1246
        %v1581 = vpop.f32.mrb[0].mxu0
        %v1582 = vadd.f32 0.0, %v1581
        %v1583 = vpop.f32.mrb[0].mxu0
        %v1584 = vadd.f32 0.0, %v1583
        %1585 = vmatprep.mubr.f32.mxu0 0.0
        %1586 = vmatmul.mubr.f32.gmra.mrb[0].mxu0 %v1249
        %v1587 = vpop.f32.mrb[0].mxu0
        %v1588 = vadd.f32 0.0, %v1587
        %v1589 = vpop.f32.mrb[0].mxu0
        %v1590 = vadd.f32 0.0, %v1589
        %1591 = vmatprep.mubr.f32.mxu0 0.0
        %1592 = vmatmul.mubr.f32.gmra.mrb[0].mxu0 %v1252
        %v1593 = vpop.f32.mrb[0].mxu0
        %v1594 = vadd.f32 0.0, %v1593
        %v1595 = vpop.f32.mrb[0].mxu0
        %v1596 = vadd.f32 0.0, %v1595
        %1597 = vmatprep.mubr.f32.mxu0 0.0
        %1598 = vmatmul.mubr.f32.gmra.mrb[0].mxu0 %v1255
        %v1599 = vpop.f32.mrb[0].mxu0
        %v1600 = vadd.f32 0.0, %v1599
        %v1601 = vpop.f32.mrb[0].mxu0
        %v1602 = vadd.f32 0.0, %v1601
        %1603 = vmatprep.mubr.f32.mxu0 0.0
        %1604 = vmatmul.mubr.f32.gmra.mrb[0].mxu0 %v1258
        %v1605 = vpop.f32.mrb[0].mxu0
        %v1606 = vadd.f32 0.0, %v1605
        %v1607 = vpop.f32.mrb[0].mxu0
        %v1608 = vadd.f32 0.0, %v1607
        %1609 = vmatprep.mubr.f32.mxu0 0.0
        %1610 = vmatmul.mubr.f32.gmra.mrb[0].mxu0 %v1261
        %v1611 = vpop.f32.mrb[0].mxu0
        %v1612 = vadd.f32 0.0, %v1611
        %v1613 = vpop.f32.mrb[0].mxu0
        %v1614 = vadd.f32 0.0, %v1613
        %1615 = vmatprep.mubr.f32.mxu0 0.0
        %1616 = vmatmul.mubr.f32.gmra.mrb[0].mxu0 %v1264
        %v1617 = vpop.f32.mrb[0].mxu0
        %v1618 = vadd.f32 0.0, %v1617
        %v1619 = vpop.f32.mrb[0].mxu0
        %v1620 = vadd.f32 0.0, %v1619
        %1621 = vmatprep.mubr.f32.mxu0 0.0
        %1622 = vmatmul.mubr.f32.gmra.mrb[0].mxu0 %v1267
        %v1623 = vpop.f32.mrb[0].mxu0
        %v1624 = vadd.f32 0.0, %v1623
        %v1625 = vpop.f32.mrb[0].mxu0
        %v1626 = vadd.f32 0.0, %v1625
        %1627 = vmatprep.mubr.f32.mxu0 0.0
        %1628 = vmatmul.mubr.f32.gmra.mrb[0].mxu0 %v1270
        %v1629 = vpop.f32.mrb[0].mxu0
        %v1630 = vadd.f32 0.0, %v1629
        %v1631 = vpop.f32.mrb[0].mxu0
        %v1632 = vadd.f32 0.0, %v1631
        %1633 = vmatprep.mubr.f32.mxu0 0.0
        %1634 = vmatmul.mubr.f32.gmra.mrb[0].mxu0 %v1273
        %v1635 = vpop.f32.mrb[0].mxu0
        %v1636 = vadd.f32 0.0, %v1635
        %v1637 = vpop.f32.mrb[0].mxu0
        %v1638 = vadd.f32 0.0, %v1637
        %1639 = vmatprep.mubr.f32.mxu0 0.0
        %1640 = vmatmul.mubr.f32.gmra.mrb[0].mxu0 %v1276
        %v1641 = vpop.f32.mrb[0].mxu0
        %v1642 = vadd.f32 0.0, %v1641
        %v1643 = vpop.f32.mrb[0].mxu0
        %v1644 = vadd.f32 0.0, %v1643
        %1645 = vmatprep.mubr.f32.mxu0 0.0
        %1646 = vmatmul.mubr.f32.gmra.mrb[0].mxu0 %v1279
        %v1647 = vpop.f32.mrb[0].mxu0
        %v1648 = vadd.f32 0.0, %v1647
        %v1649 = vpop.f32.mrb[0].mxu0
        %v1650 = vadd.f32 0.0, %v1649
        %1651 = vmatprep.mubr.f32.mxu0 0.0
        %1652 = vmatmul.mubr.f32.gmra.mrb[0].mxu0 %v1282
        %v1653 = vpop.f32.mrb[0].mxu0
        %v1654 = vadd.f32 0.0, %v1653
        %v1655 = vpop.f32.mrb[0].mxu0
        %v1656 = vadd.f32 0.0, %v1655
        %1657 = vmatprep.mubr.f32.mxu0 0.0
        %1658 = vmatmul.mubr.f32.gmra.mrb[0].mxu0 %v1285
        %v1659 = vpop.f32.mrb[0].mxu0
        %v1660 = vadd.f32 0.0, %v1659
        %v1661 = vpop.f32.mrb[0].mxu0
        %v1662 = vadd.f32 0.0, %v1661
        %1663 = vmatprep.mubr.f32.mxu0 0.0
        %1664 = vmatmul.mubr.f32.gmra.mrb[0].mxu0 %v1288
        %v1665 = vpop.f32.mrb[0].mxu0
        %v1666 = vadd.f32 0.0, %v1665
        %v1667 = vpop.f32.mrb[0].mxu0
        %v1668 = vadd.f32 0.0, %v1667
        %1669 = vmatprep.mubr.f32.mxu0 0.0
        %1670 = vmatmul.mubr.f32.gmra.mrb[0].mxu0 %v1291
        %v1671 = vpop.f32.mrb[0].mxu0
        %v1672 = vadd.f32 0.0, %v1671
        %v1673 = vpop.f32.mrb[0].mxu0
        %v1674 = vadd.f32 0.0, %v1673
        %1675 = vmatprep.mubr.f32.mxu0 0.0
        %1676 = vmatmul.mubr.f32.gmra.mrb[0].mxu0 %v1294
        %v1677 = vpop.f32.mrb[0].mxu0
        %v1678 = vadd.f32 0.0, %v1677
        %v1679 = vpop.f32.mrb[0].mxu0
        %v1680 = vadd.f32 0.0, %v1679
        %1681 = vmatprep.mubr.f32.mxu0 0.0
        %1682 = vmatmul.mubr.f32.gmra.mrb[0].mxu0 %v1297
        %v1683 = vpop.f32.mrb[0].mxu0
        %v1684 = vadd.f32 0.0, %v1683
        %v1685 = vpop.f32.mrb[0].mxu0
        %v1686 = vadd.f32 0.0, %v1685
        %1687 = vmatprep.mubr.f32.mxu0 0.0
        %1688 = vmatmul.mubr.f32.gmra.mrb[0].mxu0 %v1300
        %v1689 = vpop.f32.mrb[0].mxu0
        %v1690 = vadd.f32 0.0, %v1689
        %v1691 = vpop.f32.mrb[0].mxu0
        %v1692 = vadd.f32 0.0, %v1691
        %1693 = vmatprep.mubr.f32.mxu0 0.0
        %1694 = vmatmul.mubr.f32.gmra.mrb[0].mxu0 %v1303
        %v1695 = vpop.f32.mrb[0].mxu0
        %v1696 = vadd.f32 0.0, %v1695
        %v1697 = vpop.f32.mrb[0].mxu0
        %v1698 = vadd.f32 0.0, %v1697
        %1699 = vmatprep.mubr.f32.mxu0 0.0
        %1700 = vmatmul.mubr.f32.gmra.mrb[0].mxu0 %v1306
        %v1701 = vpop.f32.mrb[0].mxu0
        %v1702 = vadd.f32 0.0, %v1701
        %v1703 = vpop.f32.mrb[0].mxu0
        %v1704 = vadd.f32 0.0, %v1703
        %1705 = vmatprep.mubr.f32.mxu0 0.0
        %1706 = vmatmul.mubr.f32.gmra.mrb[0].mxu0 %v1309
        %v1707 = vpop.f32.mrb[0].mxu0
        %v1708 = vadd.f32 0.0, %v1707
        %v1709 = vpop.f32.mrb[0].mxu0
        %v1710 = vadd.f32 0.0, %v1709
        %1711 = vdwg.mxu0
        %1712 = vmatprep.subr.mxu0 %v1137
        %1713 = vmatpush1.msra.mxu0 %v1136
        %1714 = vmatprep.subr.mxu0 %v1141
        %1715 = vmatpush1.msra.mxu0 %v1140
        %1716 = vmatprep.subr.mxu0 0.0
        %1717 = vmatpush1.msra.mxu0 0.0
        %1718 = vmatprep.subr.mxu0 0.0
        %1719 = vmatpush1.msra.mxu0 0.0
        %1720 = vmatprep.subr.mxu0 0.0
        %1721 = vmatpush1.msra.mxu0 0.0
        %1722 = vmatprep.subr.mxu0 0.0
        %1723 = vmatpush1.msra.mxu0 0.0
        %1724 = vmatprep.subr.mxu0 0.0
        %1725 = vmatpush1.msra.mxu0 0.0
        %1726 = vmatprep.subr.mxu0 0.0
        %1727 = vmatpush1.msra.mxu0 0.0
        %1728 = vmatprep.subr.mxu0 0.0
        %1729 = vmatpush1.msra.mxu0 0.0
        %1730 = vmatprep.subr.mxu0 0.0
        %1731 = vmatpush1.msra.mxu0 0.0
        %1732 = vmatprep.subr.mxu0 0.0
        %1733 = vmatpush1.msra.mxu0 0.0
        %1734 = vmatprep.subr.mxu0 0.0
        %1735 = vmatpush1.msra.mxu0 0.0
        %1736 = vmatprep.subr.mxu0 0.0
        %1737 = vmatpush1.msra.mxu0 0.0
        %1738 = vmatprep.subr.mxu0 0.0
        %1739 = vmatpush1.msra.mxu0 0.0
        %1740 = vmatprep.subr.mxu0 0.0
        %1741 = vmatpush1.msra.mxu0 0.0
        %1742 = vmatprep.subr.mxu0 0.0
        %1743 = vmatpush1.msra.mxu0 0.0
        %1744 = vmatprep.subr.mxu0 0.0
        %1745 = vmatpush1.msra.mxu0 0.0
        %1746 = vmatprep.subr.mxu0 0.0
        %1747 = vmatpush1.msra.mxu0 0.0
        %1748 = vmatprep.subr.mxu0 0.0
        %1749 = vmatpush1.msra.mxu0 0.0
        %1750 = vmatprep.subr.mxu0 0.0
        %1751 = vmatpush1.msra.mxu0 0.0
        %1752 = vmatprep.subr.mxu0 0.0
        %1753 = vmatpush1.msra.mxu0 0.0
        %1754 = vmatprep.subr.mxu0 0.0
        %1755 = vmatpush1.msra.mxu0 0.0
        %1756 = vmatprep.subr.mxu0 0.0
        %1757 = vmatpush1.msra.mxu0 0.0
        %1758 = vmatprep.subr.mxu0 0.0
        %1759 = vmatpush1.msra.mxu0 0.0
        %1760 = vmatprep.subr.mxu0 0.0
        %1761 = vmatpush1.msra.mxu0 0.0
        %1762 = vmatprep.subr.mxu0 0.0
        %1763 = vmatpush1.msra.mxu0 0.0
        %1764 = vmatprep.subr.mxu0 0.0
        %1765 = vmatpush1.msra.mxu0 0.0
        %1766 = vmatprep.subr.mxu0 0.0
        %1767 = vmatpush1.msra.mxu0 0.0
        %1768 = vmatprep.subr.mxu0 0.0
        %1769 = vmatpush1.msra.mxu0 0.0
        %1770 = vmatprep.subr.mxu0 0.0
        %1771 = vmatpush1.msra.mxu0 0.0
        %1772 = vmatprep.subr.mxu0 0.0
        %1773 = vmatpush1.msra.mxu0 0.0
        %1774 = vmatprep.subr.mxu0 0.0
        %1775 = vmatpush1.msra.mxu0 0.0
        %1776 = vmatprep.mubr.f32.mxu0 0.0
        %1777 = vmatmul.mubr.f32.gmra.mrb[0].mxu0 %v1144
        %v1778 = vpop.f32.mrb[0].mxu0
        %v1779 = vadd.f32 0.0, %v1778
        %v1780 = vpop.f32.mrb[0].mxu0
        %v1781 = vadd.f32 0.0, %v1780
        %1782 = vmatprep.mubr.f32.mxu0 0.0
        %1783 = vmatmul.mubr.f32.gmra.mrb[0].mxu0 %v1147
        %v1784 = vpop.f32.mrb[0].mxu0
        %v1785 = vadd.f32 0.0, %v1784
        %v1786 = vpop.f32.mrb[0].mxu0
        %v1787 = vadd.f32 0.0, %v1786
        %1788 = vmatprep.mubr.f32.mxu0 0.0
        %1789 = vmatmul.mubr.f32.gmra.mrb[0].mxu0 %v1150
        %v1790 = vpop.f32.mrb[0].mxu0
        %v1791 = vadd.f32 0.0, %v1790
        %v1792 = vpop.f32.mrb[0].mxu0
        %v1793 = vadd.f32 0.0, %v1792
        %1794 = vmatprep.mubr.f32.mxu0 0.0
        %1795 = vmatmul.mubr.f32.gmra.mrb[0].mxu0 %v1153
        %v1796 = vpop.f32.mrb[0].mxu0
        %v1797 = vadd.f32 0.0, %v1796
        %v1798 = vpop.f32.mrb[0].mxu0
        %v1799 = vadd.f32 0.0, %v1798
        %1800 = vmatprep.mubr.f32.mxu0 0.0
        %1801 = vmatmul.mubr.f32.gmra.mrb[0].mxu0 %v1156
        %v1802 = vpop.f32.mrb[0].mxu0
        %v1803 = vadd.f32 0.0, %v1802
        %v1804 = vpop.f32.mrb[0].mxu0
        %v1805 = vadd.f32 0.0, %v1804
        %1806 = vmatprep.mubr.f32.mxu0 0.0
        %1807 = vmatmul.mubr.f32.gmra.mrb[0].mxu0 %v1159
        %v1808 = vpop.f32.mrb[0].mxu0
        %v1809 = vadd.f32 0.0, %v1808
        %v1810 = vpop.f32.mrb[0].mxu0
        %v1811 = vadd.f32 0.0, %v1810
        %1812 = vmatprep.mubr.f32.mxu0 0.0
        %1813 = vmatmul.mubr.f32.gmra.mrb[0].mxu0 %v1162
        %v1814 = vpop.f32.mrb[0].mxu0
        %v1815 = vadd.f32 0.0, %v1814
        %v1816 = vpop.f32.mrb[0].mxu0
        %v1817 = vadd.f32 0.0, %v1816
        %1818 = vmatprep.mubr.f32.mxu0 0.0
        %1819 = vmatmul.mubr.f32.gmra.mrb[0].mxu0 %v1165
        %v1820 = vpop.f32.mrb[0].mxu0
        %v1821 = vadd.f32 0.0, %v1820
        %v1822 = vpop.f32.mrb[0].mxu0
        %v1823 = vadd.f32 0.0, %v1822
        %1824 = vmatprep.mubr.f32.mxu0 0.0
        %1825 = vmatmul.mubr.f32.gmra.mrb[0].mxu0 %v1168
        %v1826 = vpop.f32.mrb[0].mxu0
        %v1827 = vadd.f32 0.0, %v1826
        %v1828 = vpop.f32.mrb[0].mxu0
        %v1829 = vadd.f32 0.0, %v1828
        %1830 = vmatprep.mubr.f32.mxu0 0.0
        %1831 = vmatmul.mubr.f32.gmra.mrb[0].mxu0 %v1171
        %v1832 = vpop.f32.mrb[0].mxu0
        %v1833 = vadd.f32 0.0, %v1832
        %v1834 = vpop.f32.mrb[0].mxu0
        %v1835 = vadd.f32 0.0, %v1834
        %1836 = vmatprep.mubr.f32.mxu0 0.0
        %1837 = vmatmul.mubr.f32.gmra.mrb[0].mxu0 %v1174
        %v1838 = vpop.f32.mrb[0].mxu0
        %v1839 = vadd.f32 0.0, %v1838
        %v1840 = vpop.f32.mrb[0].mxu0
        %v1841 = vadd.f32 0.0, %v1840
        %1842 = vmatprep.mubr.f32.mxu0 0.0
        %1843 = vmatmul.mubr.f32.gmra.mrb[0].mxu0 %v1177
        %v1844 = vpop.f32.mrb[0].mxu0
        %v1845 = vadd.f32 0.0, %v1844
        %v1846 = vpop.f32.mrb[0].mxu0
        %v1847 = vadd.f32 0.0, %v1846
        %1848 = vmatprep.mubr.f32.mxu0 0.0
        %1849 = vmatmul.mubr.f32.gmra.mrb[0].mxu0 %v1180
        %v1850 = vpop.f32.mrb[0].mxu0
        %v1851 = vadd.f32 0.0, %v1850
        %v1852 = vpop.f32.mrb[0].mxu0
        %v1853 = vadd.f32 0.0, %v1852
        %1854 = vmatprep.mubr.f32.mxu0 0.0
        %1855 = vmatmul.mubr.f32.gmra.mrb[0].mxu0 %v1183
        %v1856 = vpop.f32.mrb[0].mxu0
        %v1857 = vadd.f32 0.0, %v1856
        %v1858 = vpop.f32.mrb[0].mxu0
        %v1859 = vadd.f32 0.0, %v1858
        %1860 = vmatprep.mubr.f32.mxu0 0.0
        %1861 = vmatmul.mubr.f32.gmra.mrb[0].mxu0 %v1186
        %v1862 = vpop.f32.mrb[0].mxu0
        %v1863 = vadd.f32 0.0, %v1862
        %v1864 = vpop.f32.mrb[0].mxu0
        %v1865 = vadd.f32 0.0, %v1864
        %1866 = vmatprep.mubr.f32.mxu0 0.0
        %1867 = vmatmul.mubr.f32.gmra.mrb[0].mxu0 %v1189
        %v1868 = vpop.f32.mrb[0].mxu0
        %v1869 = vadd.f32 0.0, %v1868
        %v1870 = vpop.f32.mrb[0].mxu0
        %v1871 = vadd.f32 0.0, %v1870
        %1872 = vmatprep.mubr.f32.mxu0 0.0
        %1873 = vmatmul.mubr.f32.gmra.mrb[0].mxu0 %v1192
        %v1874 = vpop.f32.mrb[0].mxu0
        %v1875 = vadd.f32 0.0, %v1874
        %v1876 = vpop.f32.mrb[0].mxu0
        %v1877 = vadd.f32 0.0, %v1876
        %1878 = vmatprep.mubr.f32.mxu0 0.0
        %1879 = vmatmul.mubr.f32.gmra.mrb[0].mxu0 %v1195
        %v1880 = vpop.f32.mrb[0].mxu0
        %v1881 = vadd.f32 0.0, %v1880
        %v1882 = vpop.f32.mrb[0].mxu0
        %v1883 = vadd.f32 0.0, %v1882
        %1884 = vmatprep.mubr.f32.mxu0 0.0
        %1885 = vmatmul.mubr.f32.gmra.mrb[0].mxu0 %v1198
        %v1886 = vpop.f32.mrb[0].mxu0
        %v1887 = vadd.f32 0.0, %v1886
        %v1888 = vpop.f32.mrb[0].mxu0
        %v1889 = vadd.f32 0.0, %v1888
        %1890 = vmatprep.mubr.f32.mxu0 0.0
        %1891 = vmatmul.mubr.f32.gmra.mrb[0].mxu0 %v1201
        %v1892 = vpop.f32.mrb[0].mxu0
        %v1893 = vadd.f32 0.0, %v1892
        %v1894 = vpop.f32.mrb[0].mxu0
        %v1895 = vadd.f32 0.0, %v1894
        %1896 = vmatprep.mubr.f32.mxu0 0.0
        %1897 = vmatmul.mubr.f32.gmra.mrb[0].mxu0 %v1204
        %v1898 = vpop.f32.mrb[0].mxu0
        %v1899 = vadd.f32 0.0, %v1898
        %v1900 = vpop.f32.mrb[0].mxu0
        %v1901 = vadd.f32 0.0, %v1900
        %1902 = vmatprep.mubr.f32.mxu0 0.0
        %1903 = vmatmul.mubr.f32.gmra.mrb[0].mxu0 %v1207
        %v1904 = vpop.f32.mrb[0].mxu0
        %v1905 = vadd.f32 0.0, %v1904
        %v1906 = vpop.f32.mrb[0].mxu0
        %v1907 = vadd.f32 0.0, %v1906
        %1908 = vmatprep.mubr.f32.mxu0 0.0
        %1909 = vmatmul.mubr.f32.gmra.mrb[0].mxu0 %v1210
        %v1910 = vpop.f32.mrb[0].mxu0
        %v1911 = vadd.f32 0.0, %v1910
        %v1912 = vpop.f32.mrb[0].mxu0
        %v1913 = vadd.f32 0.0, %v1912
        %1914 = vmatprep.mubr.f32.mxu0 0.0
        %1915 = vmatmul.mubr.f32.gmra.mrb[0].mxu0 %v1213
        %v1916 = vpop.f32.mrb[0].mxu0
        %v1917 = vadd.f32 0.0, %v1916
        %v1918 = vpop.f32.mrb[0].mxu0
        %v1919 = vadd.f32 0.0, %v1918
        %1920 = vmatprep.mubr.f32.mxu0 0.0
        %1921 = vmatmul.mubr.f32.gmra.mrb[0].mxu0 %v1216
        %v1922 = vpop.f32.mrb[0].mxu0
        %v1923 = vadd.f32 0.0, %v1922
        %v1924 = vpop.f32.mrb[0].mxu0
        %v1925 = vadd.f32 0.0, %v1924
        %1926 = vmatprep.mubr.f32.mxu0 0.0
        %1927 = vmatmul.mubr.f32.gmra.mrb[0].mxu0 %v1219
        %v1928 = vpop.f32.mrb[0].mxu0
        %v1929 = vadd.f32 0.0, %v1928
        %v1930 = vpop.f32.mrb[0].mxu0
        %v1931 = vadd.f32 0.0, %v1930
        %1932 = vmatprep.mubr.f32.mxu0 0.0
        %1933 = vmatmul.mubr.f32.gmra.mrb[0].mxu0 %v1222
        %v1934 = vpop.f32.mrb[0].mxu0
        %v1935 = vadd.f32 0.0, %v1934
        %v1936 = vpop.f32.mrb[0].mxu0
        %v1937 = vadd.f32 0.0, %v1936
        %1938 = vmatprep.mubr.f32.mxu0 0.0
        %1939 = vmatmul.mubr.f32.gmra.mrb[0].mxu0 %v1225
        %v1940 = vpop.f32.mrb[0].mxu0
        %v1941 = vadd.f32 0.0, %v1940
        %v1942 = vpop.f32.mrb[0].mxu0
        %v1943 = vadd.f32 0.0, %v1942
        %1944 = vmatprep.mubr.f32.mxu0 0.0
        %1945 = vmatmul.mubr.f32.gmra.mrb[0].mxu0 %v1228
        %v1946 = vpop.f32.mrb[0].mxu0
        %v1947 = vadd.f32 0.0, %v1946
        %v1948 = vpop.f32.mrb[0].mxu0
        %v1949 = vadd.f32 0.0, %v1948
        %1950 = vmatprep.mubr.f32.mxu0 0.0
        %1951 = vmatmul.mubr.f32.gmra.mrb[0].mxu0 %v1231
        %v1952 = vpop.f32.mrb[0].mxu0
        %v1953 = vadd.f32 0.0, %v1952
        %v1954 = vpop.f32.mrb[0].mxu0
        %v1955 = vadd.f32 0.0, %v1954
        %1956 = vmatprep.mubr.f32.mxu0 0.0
        %1957 = vmatmul.mubr.f32.gmra.mrb[0].mxu0 %v1234
        %v1958 = vpop.f32.mrb[0].mxu0
        %v1959 = vadd.f32 0.0, %v1958
        %v1960 = vpop.f32.mrb[0].mxu0
        %v1961 = vadd.f32 0.0, %v1960
        %1962 = vmatprep.mubr.f32.mxu0 0.0
        %1963 = vmatmul.mubr.f32.gmra.mrb[0].mxu0 %v1237
        %v1964 = vpop.f32.mrb[0].mxu0
        %v1965 = vadd.f32 0.0, %v1964
        %v1966 = vpop.f32.mrb[0].mxu0
        %v1967 = vadd.f32 0.0, %v1966
        %1968 = vmatprep.mubr.f32.mxu0 0.0
        %1969 = vmatmul.mubr.f32.gmra.mrb[0].mxu0 %v1240
        %v1970 = vpop.f32.mrb[0].mxu0
        %v1971 = vadd.f32 0.0, %v1970
        %v1972 = vpop.f32.mrb[0].mxu0
        %v1973 = vadd.f32 0.0, %v1972
        %1974 = vmatprep.mubr.f32.mxu0 0.0
        %1975 = vmatmul.mubr.f32.gmra.mrb[0].mxu0 %v1243
        %v1976 = vpop.f32.mrb[0].mxu0
        %v1977 = vadd.f32 0.0, %v1976
        %v1978 = vpop.f32.mrb[0].mxu0
        %v1979 = vadd.f32 0.0, %v1978
        %1980 = vmatprep.mubr.f32.mxu0 0.0
        %1981 = vmatmul.mubr.f32.gmra.mrb[0].mxu0 %v1246
        %v1982 = vpop.f32.mrb[0].mxu0
        %v1983 = vadd.f32 0.0, %v1982
        %v1984 = vpop.f32.mrb[0].mxu0
        %v1985 = vadd.f32 0.0, %v1984
        %1986 = vmatprep.mubr.f32.mxu0 0.0
        %1987 = vmatmul.mubr.f32.gmra.mrb[0].mxu0 %v1249
        %v1988 = vpop.f32.mrb[0].mxu0
        %v1989 = vadd.f32 0.0, %v1988
        %v1990 = vpop.f32.mrb[0].mxu0
        %v1991 = vadd.f32 0.0, %v1990
        %1992 = vmatprep.mubr.f32.mxu0 0.0
        %1993 = vmatmul.mubr.f32.gmra.mrb[0].mxu0 %v1252
        %v1994 = vpop.f32.mrb[0].mxu0
        %v1995 = vadd.f32 0.0, %v1994
        %v1996 = vpop.f32.mrb[0].mxu0
        %v1997 = vadd.f32 0.0, %v1996
        %1998 = vmatprep.mubr.f32.mxu0 0.0
        %1999 = vmatmul.mubr.f32.gmra.mrb[0].mxu0 %v1255
        %v2000 = vpop.f32.mrb[0].mxu0
        %v2001 = vadd.f32 0.0, %v2000
        %v2002 = vpop.f32.mrb[0].mxu0
        %v2003 = vadd.f32 0.0, %v2002
        %2004 = vmatprep.mubr.f32.mxu0 0.0
        %2005 = vmatmul.mubr.f32.gmra.mrb[0].mxu0 %v1258
        %v2006 = vpop.f32.mrb[0].mxu0
        %v2007 = vadd.f32 0.0, %v2006
        %v2008 = vpop.f32.mrb[0].mxu0
        %v2009 = vadd.f32 0.0, %v2008
        %2010 = vmatprep.mubr.f32.mxu0 0.0
        %2011 = vmatmul.mubr.f32.gmra.mrb[0].mxu0 %v1261
        %v2012 = vpop.f32.mrb[0].mxu0
        %v2013 = vadd.f32 0.0, %v2012
        %v2014 = vpop.f32.mrb[0].mxu0
        %v2015 = vadd.f32 0.0, %v2014
        %2016 = vmatprep.mubr.f32.mxu0 0.0
        %2017 = vmatmul.mubr.f32.gmra.mrb[0].mxu0 %v1264
        %v2018 = vpop.f32.mrb[0].mxu0
        %v2019 = vadd.f32 0.0, %v2018
        %v2020 = vpop.f32.mrb[0].mxu0
        %v2021 = vadd.f32 0.0, %v2020
        %2022 = vmatprep.mubr.f32.mxu0 0.0
        %2023 = vmatmul.mubr.f32.gmra.mrb[0].mxu0 %v1267
        %v2024 = vpop.f32.mrb[0].mxu0
        %v2025 = vadd.f32 0.0, %v2024
        %v2026 = vpop.f32.mrb[0].mxu0
        %v2027 = vadd.f32 0.0, %v2026
        %2028 = vmatprep.mubr.f32.mxu0 0.0
        %2029 = vmatmul.mubr.f32.gmra.mrb[0].mxu0 %v1270
        %v2030 = vpop.f32.mrb[0].mxu0
        %v2031 = vadd.f32 0.0, %v2030
        %v2032 = vpop.f32.mrb[0].mxu0
        %v2033 = vadd.f32 0.0, %v2032
        %2034 = vmatprep.mubr.f32.mxu0 0.0
        %2035 = vmatmul.mubr.f32.gmra.mrb[0].mxu0 %v1273
        %v2036 = vpop.f32.mrb[0].mxu0
        %v2037 = vadd.f32 0.0, %v2036
        %v2038 = vpop.f32.mrb[0].mxu0
        %v2039 = vadd.f32 0.0, %v2038
        %2040 = vmatprep.mubr.f32.mxu0 0.0
        %2041 = vmatmul.mubr.f32.gmra.mrb[0].mxu0 %v1276
        %v2042 = vpop.f32.mrb[0].mxu0
        %v2043 = vadd.f32 0.0, %v2042
        %v2044 = vpop.f32.mrb[0].mxu0
        %v2045 = vadd.f32 0.0, %v2044
        %2046 = vmatprep.mubr.f32.mxu0 0.0
        %2047 = vmatmul.mubr.f32.gmra.mrb[0].mxu0 %v1279
        %v2048 = vpop.f32.mrb[0].mxu0
        %v2049 = vadd.f32 0.0, %v2048
        %v2050 = vpop.f32.mrb[0].mxu0
        %v2051 = vadd.f32 0.0, %v2050
        %2052 = vmatprep.mubr.f32.mxu0 0.0
        %2053 = vmatmul.mubr.f32.gmra.mrb[0].mxu0 %v1282
        %v2054 = vpop.f32.mrb[0].mxu0
        %v2055 = vadd.f32 0.0, %v2054
        %v2056 = vpop.f32.mrb[0].mxu0
        %v2057 = vadd.f32 0.0, %v2056
        %2058 = vmatprep.mubr.f32.mxu0 0.0
        %2059 = vmatmul.mubr.f32.gmra.mrb[0].mxu0 %v1285
        %v2060 = vpop.f32.mrb[0].mxu0
        %v2061 = vadd.f32 0.0, %v2060
        %v2062 = vpop.f32.mrb[0].mxu0
        %v2063 = vadd.f32 0.0, %v2062
        %2064 = vmatprep.mubr.f32.mxu0 0.0
        %2065 = vmatmul.mubr.f32.gmra.mrb[0].mxu0 %v1288
        %v2066 = vpop.f32.mrb[0].mxu0
        %v2067 = vadd.f32 0.0, %v2066
        %v2068 = vpop.f32.mrb[0].mxu0
        %v2069 = vadd.f32 0.0, %v2068
        %2070 = vmatprep.mubr.f32.mxu0 0.0
        %2071 = vmatmul.mubr.f32.gmra.mrb[0].mxu0 %v1291
        %v2072 = vpop.f32.mrb[0].mxu0
        %v2073 = vadd.f32 0.0, %v2072
        %v2074 = vpop.f32.mrb[0].mxu0
        %v2075 = vadd.f32 0.0, %v2074
        %2076 = vmatprep.mubr.f32.mxu0 0.0
        %2077 = vmatmul.mubr.f32.gmra.mrb[0].mxu0 %v1294
        %v2078 = vpop.f32.mrb[0].mxu0
        %v2079 = vadd.f32 0.0, %v2078
        %v2080 = vpop.f32.mrb[0].mxu0
        %v2081 = vadd.f32 0.0, %v2080
        %2082 = vmatprep.mubr.f32.mxu0 0.0
        %2083 = vmatmul.mubr.f32.gmra.mrb[0].mxu0 %v1297
        %v2084 = vpop.f32.mrb[0].mxu0
        %v2085 = vadd.f32 0.0, %v2084
        %v2086 = vpop.f32.mrb[0].mxu0
        %v2087 = vadd.f32 0.0, %v2086
        %2088 = vmatprep.mubr.f32.mxu0 0.0
        %2089 = vmatmul.mubr.f32.gmra.mrb[0].mxu0 %v1300
        %v2090 = vpop.f32.mrb[0].mxu0
        %v2091 = vadd.f32 0.0, %v2090
        %v2092 = vpop.f32.mrb[0].mxu0
        %v2093 = vadd.f32 0.0, %v2092
        %2094 = vmatprep.mubr.f32.mxu0 0.0
        %2095 = vmatmul.mubr.f32.gmra.mrb[0].mxu0 %v1303
        %v2096 = vpop.f32.mrb[0].mxu0
        %v2097 = vadd.f32 0.0, %v2096
        %v2098 = vpop.f32.mrb[0].mxu0
        %v2099 = vadd.f32 0.0, %v2098
        %2100 = vmatprep.mubr.f32.mxu0 0.0
        %2101 = vmatmul.mubr.f32.gmra.mrb[0].mxu0 %v1306
        %v2102 = vpop.f32.mrb[0].mxu0
        %v2103 = vadd.f32 0.0, %v2102
        %v2104 = vpop.f32.mrb[0].mxu0
        %v2105 = vadd.f32 0.0, %v2104
        %2106 = vmatprep.mubr.f32.mxu0 0.0
        %2107 = vmatmul.mubr.f32.gmra.mrb[0].mxu0 %v1309
        %v2108 = vpop.f32.mrb[0].mxu0
        %v2109 = vadd.f32 0.0, %v2108
        %v2110 = vpop.f32.mrb[0].mxu0
        %v2111 = vadd.f32 0.0, %v2110
        %2112 = vdwg.mxu0
        %v2113 = vadd.f32 %v854, %v1378
        %v2114 = vadd.f32 %v855, %v1380
        %v2115 = vadd.f32 %v856, %v1779
        %v2116 = vadd.f32 %v857, %v1781
        %v2117 = vadd.f32 %v858, %v1384
        %v2118 = vadd.f32 %v859, %v1386
        %v2119 = vadd.f32 %v860, %v1785
        %v2120 = vadd.f32 %v861, %v1787
        %v2121 = vadd.f32 %v862, %v1390
        %v2122 = vadd.f32 %v863, %v1392
        %v2123 = vadd.f32 %v864, %v1791
        %v2124 = vadd.f32 %v865, %v1793
        %v2125 = vadd.f32 %v866, %v1396
        %v2126 = vadd.f32 %v867, %v1398
        %v2127 = vadd.f32 %v868, %v1797
        %v2128 = vadd.f32 %v869, %v1799
        %v2129 = vadd.f32 %v870, %v1402
        %v2130 = vadd.f32 %v871, %v1404
        %v2131 = vadd.f32 %v872, %v1803
        %v2132 = vadd.f32 %v873, %v1805
        %v2133 = vadd.f32 %v874, %v1408
        %v2134 = vadd.f32 %v875, %v1410
        %v2135 = vadd.f32 %v876, %v1809
        %v2136 = vadd.f32 %v877, %v1811
        %v2137 = vadd.f32 %v878, %v1414
        %v2138 = vadd.f32 %v879, %v1416
        %v2139 = vadd.f32 %v880, %v1815
        %v2140 = vadd.f32 %v881, %v1817
        %v2141 = vadd.f32 %v882, %v1420
        %v2142 = vadd.f32 %v883, %v1422
        %v2143 = vadd.f32 %v884, %v1821
        %v2144 = vadd.f32 %v885, %v1823
        %v2145 = vadd.f32 %v886, %v1426
        %v2146 = vadd.f32 %v887, %v1428
        %v2147 = vadd.f32 %v888, %v1827
        %v2148 = vadd.f32 %v889, %v1829
        %v2149 = vadd.f32 %v890, %v1432
        %v2150 = vadd.f32 %v891, %v1434
        %v2151 = vadd.f32 %v892, %v1833
        %v2152 = vadd.f32 %v893, %v1835
        %v2153 = vadd.f32 %v894, %v1438
        %v2154 = vadd.f32 %v895, %v1440
        %v2155 = vadd.f32 %v896, %v1839
        %v2156 = vadd.f32 %v897, %v1841
        %v2157 = vadd.f32 %v898, %v1444
        %v2158 = vadd.f32 %v899, %v1446
        %v2159 = vadd.f32 %v900, %v1845
        %v2160 = vadd.f32 %v901, %v1847
        %v2161 = vadd.f32 %v902, %v1450
        %v2162 = vadd.f32 %v903, %v1452
        %v2163 = vadd.f32 %v904, %v1851
        %v2164 = vadd.f32 %v905, %v1853
        %v2165 = vadd.f32 %v906, %v1456
        %v2166 = vadd.f32 %v907, %v1458
        %v2167 = vadd.f32 %v908, %v1857
        %v2168 = vadd.f32 %v909, %v1859
        %v2169 = vadd.f32 %v910, %v1462
        %v2170 = vadd.f32 %v911, %v1464
        %v2171 = vadd.f32 %v912, %v1863
        %v2172 = vadd.f32 %v913, %v1865
        %v2173 = vadd.f32 %v914, %v1468
        %v2174 = vadd.f32 %v915, %v1470
        %v2175 = vadd.f32 %v916, %v1869
        %v2176 = vadd.f32 %v917, %v1871
        %v2177 = vadd.f32 %v918, %v1474
        %v2178 = vadd.f32 %v919, %v1476
        %v2179 = vadd.f32 %v920, %v1875
        %v2180 = vadd.f32 %v921, %v1877
        %v2181 = vadd.f32 %v922, %v1480
        %v2182 = vadd.f32 %v923, %v1482
        %v2183 = vadd.f32 %v924, %v1881
        %v2184 = vadd.f32 %v925, %v1883
        %v2185 = vadd.f32 %v926, %v1486
        %v2186 = vadd.f32 %v927, %v1488
        %v2187 = vadd.f32 %v928, %v1887
        %v2188 = vadd.f32 %v929, %v1889
        %v2189 = vadd.f32 %v930, %v1492
        %v2190 = vadd.f32 %v931, %v1494
        %v2191 = vadd.f32 %v932, %v1893
        %v2192 = vadd.f32 %v933, %v1895
        %v2193 = vadd.f32 %v934, %v1498
        %v2194 = vadd.f32 %v935, %v1500
        %v2195 = vadd.f32 %v936, %v1899
        %v2196 = vadd.f32 %v937, %v1901
        %v2197 = vadd.f32 %v938, %v1504
        %v2198 = vadd.f32 %v939, %v1506
        %v2199 = vadd.f32 %v940, %v1905
        %v2200 = vadd.f32 %v941, %v1907
        %v2201 = vadd.f32 %v942, %v1510
        %v2202 = vadd.f32 %v943, %v1512
        %v2203 = vadd.f32 %v944, %v1911
        %v2204 = vadd.f32 %v945, %v1913
        %v2205 = vadd.f32 %v946, %v1516
        %v2206 = vadd.f32 %v947, %v1518
        %v2207 = vadd.f32 %v948, %v1917
        %v2208 = vadd.f32 %v949, %v1919
        %v2209 = vadd.f32 %v950, %v1522
        %v2210 = vadd.f32 %v951, %v1524
        %v2211 = vadd.f32 %v952, %v1923
        %v2212 = vadd.f32 %v953, %v1925
        %v2213 = vadd.f32 %v954, %v1528
        %v2214 = vadd.f32 %v955, %v1530
        %v2215 = vadd.f32 %v956, %v1929
        %v2216 = vadd.f32 %v957, %v1931
        %v2217 = vadd.f32 %v958, %v1534
        %v2218 = vadd.f32 %v959, %v1536
        %v2219 = vadd.f32 %v960, %v1935
        %v2220 = vadd.f32 %v961, %v1937
        %v2221 = vadd.f32 %v962, %v1540
        %v2222 = vadd.f32 %v963, %v1542
        %v2223 = vadd.f32 %v964, %v1941
        %v2224 = vadd.f32 %v965, %v1943
        %v2225 = vadd.f32 %v966, %v1546
        %v2226 = vadd.f32 %v967, %v1548
        %v2227 = vadd.f32 %v968, %v1947
        %v2228 = vadd.f32 %v969, %v1949
        %v2229 = vadd.f32 %v970, %v1552
        %v2230 = vadd.f32 %v971, %v1554
        %v2231 = vadd.f32 %v972, %v1953
        %v2232 = vadd.f32 %v973, %v1955
        %v2233 = vadd.f32 %v974, %v1558
        %v2234 = vadd.f32 %v975, %v1560
        %v2235 = vadd.f32 %v976, %v1959
        %v2236 = vadd.f32 %v977, %v1961
        %v2237 = vadd.f32 %v978, %v1564
        %v2238 = vadd.f32 %v979, %v1566
        %v2239 = vadd.f32 %v980, %v1965
        %v2240 = vadd.f32 %v981, %v1967
        %v2241 = vadd.f32 %v982, %v1570
        %v2242 = vadd.f32 %v983, %v1572
        %v2243 = vadd.f32 %v984, %v1971
        %v2244 = vadd.f32 %v985, %v1973
        %v2245 = vadd.f32 %v986, %v1576
        %v2246 = vadd.f32 %v987, %v1578
        %v2247 = vadd.f32 %v988, %v1977
        %v2248 = vadd.f32 %v989, %v1979
        %v2249 = vadd.f32 %v990, %v1582
        %v2250 = vadd.f32 %v991, %v1584
        %v2251 = vadd.f32 %v992, %v1983
        %v2252 = vadd.f32 %v993, %v1985
        %v2253 = vadd.f32 %v994, %v1588
        %v2254 = vadd.f32 %v995, %v1590
        %v2255 = vadd.f32 %v996, %v1989
        %v2256 = vadd.f32 %v997, %v1991
        %v2257 = vadd.f32 %v998, %v1594
        %v2258 = vadd.f32 %v999, %v1596
        %v2259 = vadd.f32 %v1000, %v1995
        %v2260 = vadd.f32 %v1001, %v1997
        %v2261 = vadd.f32 %v1002, %v1600
        %v2262 = vadd.f32 %v1003, %v1602
        %v2263 = vadd.f32 %v1004, %v2001
        %v2264 = vadd.f32 %v1005, %v2003
        %v2265 = vadd.f32 %v1006, %v1606
        %v2266 = vadd.f32 %v1007, %v1608
        %v2267 = vadd.f32 %v1008, %v2007
        %v2268 = vadd.f32 %v1009, %v2009
        %v2269 = vadd.f32 %v1010, %v1612
        %v2270 = vadd.f32 %v1011, %v1614
        %v2271 = vadd.f32 %v1012, %v2013
        %v2272 = vadd.f32 %v1013, %v2015
        %v2273 = vadd.f32 %v1014, %v1618
        %v2274 = vadd.f32 %v1015, %v1620
        %v2275 = vadd.f32 %v1016, %v2019
        %v2276 = vadd.f32 %v1017, %v2021
        %v2277 = vadd.f32 %v1018, %v1624
        %v2278 = vadd.f32 %v1019, %v1626
        %v2279 = vadd.f32 %v1020, %v2025
        %v2280 = vadd.f32 %v1021, %v2027
        %v2281 = vadd.f32 %v1022, %v1630
        %v2282 = vadd.f32 %v1023, %v1632
        %v2283 = vadd.f32 %v1024, %v2031
        %v2284 = vadd.f32 %v1025, %v2033
        %v2285 = vadd.f32 %v1026, %v1636
        %v2286 = vadd.f32 %v1027, %v1638
        %v2287 = vadd.f32 %v1028, %v2037
        %v2288 = vadd.f32 %v1029, %v2039
        %v2289 = vadd.f32 %v1030, %v1642
        %v2290 = vadd.f32 %v1031, %v1644
        %v2291 = vadd.f32 %v1032, %v2043
        %v2292 = vadd.f32 %v1033, %v2045
        %v2293 = vadd.f32 %v1034, %v1648
        %v2294 = vadd.f32 %v1035, %v1650
        %v2295 = vadd.f32 %v1036, %v2049
        %v2296 = vadd.f32 %v1037, %v2051
        %v2297 = vadd.f32 %v1038, %v1654
        %v2298 = vadd.f32 %v1039, %v1656
        %v2299 = vadd.f32 %v1040, %v2055
        %v2300 = vadd.f32 %v1041, %v2057
        %v2301 = vadd.f32 %v1042, %v1660
        %v2302 = vadd.f32 %v1043, %v1662
        %v2303 = vadd.f32 %v1044, %v2061
        %v2304 = vadd.f32 %v1045, %v2063
        %v2305 = vadd.f32 %v1046, %v1666
        %v2306 = vadd.f32 %v1047, %v1668
        %v2307 = vadd.f32 %v1048, %v2067
        %v2308 = vadd.f32 %v1049, %v2069
        %v2309 = vadd.f32 %v1050, %v1672
        %v2310 = vadd.f32 %v1051, %v1674
        %v2311 = vadd.f32 %v1052, %v2073
        %v2312 = vadd.f32 %v1053, %v2075
        %v2313 = vadd.f32 %v1054, %v1678
        %v2314 = vadd.f32 %v1055, %v1680
        %v2315 = vadd.f32 %v1056, %v2079
        %v2316 = vadd.f32 %v1057, %v2081
        %v2317 = vadd.f32 %v1058, %v1684
        %v2318 = vadd.f32 %v1059, %v1686
        %v2319 = vadd.f32 %v1060, %v2085
        %v2320 = vadd.f32 %v1061, %v2087
        %v2321 = vadd.f32 %v1062, %v1690
        %v2322 = vadd.f32 %v1063, %v1692
        %v2323 = vadd.f32 %v1064, %v2091
        %v2324 = vadd.f32 %v1065, %v2093
        %v2325 = vadd.f32 %v1066, %v1696
        %v2326 = vadd.f32 %v1067, %v1698
        %v2327 = vadd.f32 %v1068, %v2097
        %v2328 = vadd.f32 %v1069, %v2099
        %v2329 = vadd.f32 %v1070, %v1702
        %v2330 = vadd.f32 %v1071, %v1704
        %v2331 = vadd.f32 %v1072, %v2103
        %v2332 = vadd.f32 %v1073, %v2105
        %v2333 = vadd.f32 %v1074, %v1708
        %v2334 = vadd.f32 %v1075, %v1710
        %v2335 = vadd.f32 %v1076, %v2109
        %v2336 = vadd.f32 %v1077, %v2111
        %2337 = vst [vmem:[#allocation2] sm:$0xff] %v2113
        %2338 = vst [vmem:[#allocation2 + $0x8] sm:$0xff] %v2114
        %2339 = vst [vmem:[#allocation2 + $0x10] sm:$0xff] %v2115
        %2340 = vst [vmem:[#allocation2 + $0x18] sm:$0xff] %v2116
        %2341 = vst [vmem:[#allocation2 + $0x20] sm:$0xff] %v2117
        %2342 = vst [vmem:[#allocation2 + $0x28] sm:$0xff] %v2118
        %2343 = vst [vmem:[#allocation2 + $0x30] sm:$0xff] %v2119
        %2344 = vst [vmem:[#allocation2 + $0x38] sm:$0xff] %v2120
        %2345 = vst [vmem:[#allocation2 + $0x40] sm:$0xff] %v2121
        %2346 = vst [vmem:[#allocation2 + $0x48] sm:$0xff] %v2122
        %2347 = vst [vmem:[#allocation2 + $0x50] sm:$0xff] %v2123
        %2348 = vst [vmem:[#allocation2 + $0x58] sm:$0xff] %v2124
        %2349 = vst [vmem:[#allocation2 + $0x60] sm:$0xff] %v2125
        %2350 = vst [vmem:[#allocation2 + $0x68] sm:$0xff] %v2126
        %2351 = vst [vmem:[#allocation2 + $0x70] sm:$0xff] %v2127
        %2352 = vst [vmem:[#allocation2 + $0x78] sm:$0xff] %v2128
        %2353 = vst [vmem:[#allocation2 + $0x80] sm:$0xff] %v2129
        %2354 = vst [vmem:[#allocation2 + $0x88] sm:$0xff] %v2130
        %2355 = vst [vmem:[#allocation2 + $0x90] sm:$0xff] %v2131
        %2356 = vst [vmem:[#allocation2 + $0x98] sm:$0xff] %v2132
        %2357 = vst [vmem:[#allocation2 + $0xa0] sm:$0xff] %v2133
        %2358 = vst [vmem:[#allocation2 + $0xa8] sm:$0xff] %v2134
        %2359 = vst [vmem:[#allocation2 + $0xb0] sm:$0xff] %v2135
        %2360 = vst [vmem:[#allocation2 + $0xb8] sm:$0xff] %v2136
        %2361 = vst [vmem:[#allocation2 + $0xc0] sm:$0xff] %v2137
        %2362 = vst [vmem:[#allocation2 + $0xc8] sm:$0xff] %v2138
        %2363 = vst [vmem:[#allocation2 + $0xd0] sm:$0xff] %v2139
        %2364 = vst [vmem:[#allocation2 + $0xd8] sm:$0xff] %v2140
        %2365 = vst [vmem:[#allocation2 + $0xe0] sm:$0xff] %v2141
        %2366 = vst [vmem:[#allocation2 + $0xe8] sm:$0xff] %v2142
        %2367 = vst [vmem:[#allocation2 + $0xf0] sm:$0xff] %v2143
        %2368 = vst [vmem:[#allocation2 + $0xf8] sm:$0xff] %v2144
        %2369 = vst [vmem:[#allocation2 + $0x100] sm:$0xff] %v2145
        %2370 = vst [vmem:[#allocation2 + $0x108] sm:$0xff] %v2146
        %2371 = vst [vmem:[#allocation2 + $0x110] sm:$0xff] %v2147
        %2372 = vst [vmem:[#allocation2 + $0x118] sm:$0xff] %v2148
        %2373 = vst [vmem:[#allocation2 + $0x120] sm:$0xff] %v2149
        %2374 = vst [vmem:[#allocation2 + $0x128] sm:$0xff] %v2150
        %2375 = vst [vmem:[#allocation2 + $0x130] sm:$0xff] %v2151
        %2376 = vst [vmem:[#allocation2 + $0x138] sm:$0xff] %v2152
        %2377 = vst [vmem:[#allocation2 + $0x140] sm:$0xff] %v2153
        %2378 = vst [vmem:[#allocation2 + $0x148] sm:$0xff] %v2154
        %2379 = vst [vmem:[#allocation2 + $0x150] sm:$0xff] %v2155
        %2380 = vst [vmem:[#allocation2 + $0x158] sm:$0xff] %v2156
        %2381 = vst [vmem:[#allocation2 + $0x160] sm:$0xff] %v2157
        %2382 = vst [vmem:[#allocation2 + $0x168] sm:$0xff] %v2158
        %2383 = vst [vmem:[#allocation2 + $0x170] sm:$0xff] %v2159
        %2384 = vst [vmem:[#allocation2 + $0x178] sm:$0xff] %v2160
        %2385 = vst [vmem:[#allocation2 + $0x180] sm:$0xff] %v2161
        %2386 = vst [vmem:[#allocation2 + $0x188] sm:$0xff] %v2162
        %2387 = vst [vmem:[#allocation2 + $0x190] sm:$0xff] %v2163
        %2388 = vst [vmem:[#allocation2 + $0x198] sm:$0xff] %v2164
        %2389 = vst [vmem:[#allocation2 + $0x1a0] sm:$0xff] %v2165
        %2390 = vst [vmem:[#allocation2 + $0x1a8] sm:$0xff] %v2166
        %2391 = vst [vmem:[#allocation2 + $0x1b0] sm:$0xff] %v2167
        %2392 = vst [vmem:[#allocation2 + $0x1b8] sm:$0xff] %v2168
        %2393 = vst [vmem:[#allocation2 + $0x1c0] sm:$0xff] %v2169
        %2394 = vst [vmem:[#allocation2 + $0x1c8] sm:$0xff] %v2170
        %2395 = vst [vmem:[#allocation2 + $0x1d0] sm:$0xff] %v2171
        %2396 = vst [vmem:[#allocation2 + $0x1d8] sm:$0xff] %v2172
        %2397 = vst [vmem:[#allocation2 + $0x1e0] sm:$0xff] %v2173
        %2398 = vst [vmem:[#allocation2 + $0x1e8] sm:$0xff] %v2174
        %2399 = vst [vmem:[#allocation2 + $0x1f0] sm:$0xff] %v2175
        %2400 = vst [vmem:[#allocation2 + $0x1f8] sm:$0xff] %v2176
        %2401 = vst [vmem:[#allocation2 + $0x200] sm:$0xff] %v2177
        %2402 = vst [vmem:[#allocation2 + $0x208] sm:$0xff] %v2178
        %2403 = vst [vmem:[#allocation2 + $0x210] sm:$0xff] %v2179
        %2404 = vst [vmem:[#allocation2 + $0x218] sm:$0xff] %v2180
        %2405 = vst [vmem:[#allocation2 + $0x220] sm:$0xff] %v2181
        %2406 = vst [vmem:[#allocation2 + $0x228] sm:$0xff] %v2182
        %2407 = vst [vmem:[#allocation2 + $0x230] sm:$0xff] %v2183
        %2408 = vst [vmem:[#allocation2 + $0x238] sm:$0xff] %v2184
        %2409 = vst [vmem:[#allocation2 + $0x240] sm:$0xff] %v2185
        %2410 = vst [vmem:[#allocation2 + $0x248] sm:$0xff] %v2186
        %2411 = vst [vmem:[#allocation2 + $0x250] sm:$0xff] %v2187
        %2412 = vst [vmem:[#allocation2 + $0x258] sm:$0xff] %v2188
        %2413 = vst [vmem:[#allocation2 + $0x260] sm:$0xff] %v2189
        %2414 = vst [vmem:[#allocation2 + $0x268] sm:$0xff] %v2190
        %2415 = vst [vmem:[#allocation2 + $0x270] sm:$0xff] %v2191
        %2416 = vst [vmem:[#allocation2 + $0x278] sm:$0xff] %v2192
        %2417 = vst [vmem:[#allocation2 + $0x280] sm:$0xff] %v2193
        %2418 = vst [vmem:[#allocation2 + $0x288] sm:$0xff] %v2194
        %2419 = vst [vmem:[#allocation2 + $0x290] sm:$0xff] %v2195
        %2420 = vst [vmem:[#allocation2 + $0x298] sm:$0xff] %v2196
        %2421 = vst [vmem:[#allocation2 + $0x2a0] sm:$0xff] %v2197
        %2422 = vst [vmem:[#allocation2 + $0x2a8] sm:$0xff] %v2198
        %2423 = vst [vmem:[#allocation2 + $0x2b0] sm:$0xff] %v2199
        %2424 = vst [vmem:[#allocation2 + $0x2b8] sm:$0xff] %v2200
        %2425 = vst [vmem:[#allocation2 + $0x2c0] sm:$0xff] %v2201
        %2426 = vst [vmem:[#allocation2 + $0x2c8] sm:$0xff] %v2202
        %2427 = vst [vmem:[#allocation2 + $0x2d0] sm:$0xff] %v2203
        %2428 = vst [vmem:[#allocation2 + $0x2d8] sm:$0xff] %v2204
        %2429 = vst [vmem:[#allocation2 + $0x2e0] sm:$0xff] %v2205
        %2430 = vst [vmem:[#allocation2 + $0x2e8] sm:$0xff] %v2206
        %2431 = vst [vmem:[#allocation2 + $0x2f0] sm:$0xff] %v2207
        %2432 = vst [vmem:[#allocation2 + $0x2f8] sm:$0xff] %v2208
        %2433 = vst [vmem:[#allocation2 + $0x300] sm:$0xff] %v2209
        %2434 = vst [vmem:[#allocation2 + $0x308] sm:$0xff] %v2210
        %2435 = vst [vmem:[#allocation2 + $0x310] sm:$0xff] %v2211
        %2436 = vst [vmem:[#allocation2 + $0x318] sm:$0xff] %v2212
        %2437 = vst [vmem:[#allocation2 + $0x320] sm:$0xff] %v2213
        %2438 = vst [vmem:[#allocation2 + $0x328] sm:$0xff] %v2214
        %2439 = vst [vmem:[#allocation2 + $0x330] sm:$0xff] %v2215
        %2440 = vst [vmem:[#allocation2 + $0x338] sm:$0xff] %v2216
        %2441 = vst [vmem:[#allocation2 + $0x340] sm:$0xff] %v2217
        %2442 = vst [vmem:[#allocation2 + $0x348] sm:$0xff] %v2218
        %2443 = vst [vmem:[#allocation2 + $0x350] sm:$0xff] %v2219
        %2444 = vst [vmem:[#allocation2 + $0x358] sm:$0xff] %v2220
        %2445 = vst [vmem:[#allocation2 + $0x360] sm:$0xff] %v2221
        %2446 = vst [vmem:[#allocation2 + $0x368] sm:$0xff] %v2222
        %2447 = vst [vmem:[#allocation2 + $0x370] sm:$0xff] %v2223
        %2448 = vst [vmem:[#allocation2 + $0x378] sm:$0xff] %v2224
        %2449 = vst [vmem:[#allocation2 + $0x380] sm:$0xff] %v2225
        %2450 = vst [vmem:[#allocation2 + $0x388] sm:$0xff] %v2226
        %2451 = vst [vmem:[#allocation2 + $0x390] sm:$0xff] %v2227
        %2452 = vst [vmem:[#allocation2 + $0x398] sm:$0xff] %v2228
        %2453 = vst [vmem:[#allocation2 + $0x3a0] sm:$0xff] %v2229
        %2454 = vst [vmem:[#allocation2 + $0x3a8] sm:$0xff] %v2230
        %2455 = vst [vmem:[#allocation2 + $0x3b0] sm:$0xff] %v2231
        %2456 = vst [vmem:[#allocation2 + $0x3b8] sm:$0xff] %v2232
        %2457 = vst [vmem:[#allocation2 + $0x3c0] sm:$0xff] %v2233
        %2458 = vst [vmem:[#allocation2 + $0x3c8] sm:$0xff] %v2234
        %2459 = vst [vmem:[#allocation2 + $0x3d0] sm:$0xff] %v2235
        %2460 = vst [vmem:[#allocation2 + $0x3d8] sm:$0xff] %v2236
        %2461 = vst [vmem:[#allocation2 + $0x3e0] sm:$0xff] %v2237
        %2462 = vst [vmem:[#allocation2 + $0x3e8] sm:$0xff] %v2238
        %2463 = vst [vmem:[#allocation2 + $0x3f0] sm:$0xff] %v2239
        %2464 = vst [vmem:[#allocation2 + $0x3f8] sm:$0xff] %v2240
        %2465 = vst [vmem:[#allocation2 + $0x400] sm:$0xff] %v2241
        %2466 = vst [vmem:[#allocation2 + $0x408] sm:$0xff] %v2242
        %2467 = vst [vmem:[#allocation2 + $0x410] sm:$0xff] %v2243
        %2468 = vst [vmem:[#allocation2 + $0x418] sm:$0xff] %v2244
        %2469 = vst [vmem:[#allocation2 + $0x420] sm:$0xff] %v2245
        %2470 = vst [vmem:[#allocation2 + $0x428] sm:$0xff] %v2246
        %2471 = vst [vmem:[#allocation2 + $0x430] sm:$0xff] %v2247
        %2472 = vst [vmem:[#allocation2 + $0x438] sm:$0xff] %v2248
        %2473 = vst [vmem:[#allocation2 + $0x440] sm:$0xff] %v2249
        %2474 = vst [vmem:[#allocation2 + $0x448] sm:$0xff] %v2250
        %2475 = vst [vmem:[#allocation2 + $0x450] sm:$0xff] %v2251
        %2476 = vst [vmem:[#allocation2 + $0x458] sm:$0xff] %v2252
        %2477 = vst [vmem:[#allocation2 + $0x460] sm:$0xff] %v2253
        %2478 = vst [vmem:[#allocation2 + $0x468] sm:$0xff] %v2254
        %2479 = vst [vmem:[#allocation2 + $0x470] sm:$0xff] %v2255
        %2480 = vst [vmem:[#allocation2 + $0x478] sm:$0xff] %v2256
        %2481 = vst [vmem:[#allocation2 + $0x480] sm:$0xff] %v2257
        %2482 = vst [vmem:[#allocation2 + $0x488] sm:$0xff] %v2258
        %2483 = vst [vmem:[#allocation2 + $0x490] sm:$0xff] %v2259
        %2484 = vst [vmem:[#allocation2 + $0x498] sm:$0xff] %v2260
        %2485 = vst [vmem:[#allocation2 + $0x4a0] sm:$0xff] %v2261
        %2486 = vst [vmem:[#allocation2 + $0x4a8] sm:$0xff] %v2262
        %2487 = vst [vmem:[#allocation2 + $0x4b0] sm:$0xff] %v2263
        %2488 = vst [vmem:[#allocation2 + $0x4b8] sm:$0xff] %v2264
        %2489 = vst [vmem:[#allocation2 + $0x4c0] sm:$0xff] %v2265
        %2490 = vst [vmem:[#allocation2 + $0x4c8] sm:$0xff] %v2266
        %2491 = vst [vmem:[#allocation2 + $0x4d0] sm:$0xff] %v2267
        %2492 = vst [vmem:[#allocation2 + $0x4d8] sm:$0xff] %v2268
        %2493 = vst [vmem:[#allocation2 + $0x4e0] sm:$0xff] %v2269
        %2494 = vst [vmem:[#allocation2 + $0x4e8] sm:$0xff] %v2270
        %2495 = vst [vmem:[#allocation2 + $0x4f0] sm:$0xff] %v2271
        %2496 = vst [vmem:[#allocation2 + $0x4f8] sm:$0xff] %v2272
        %2497 = vst [vmem:[#allocation2 + $0x500] sm:$0xff] %v2273
        %2498 = vst [vmem:[#allocation2 + $0x508] sm:$0xff] %v2274
        %2499 = vst [vmem:[#allocation2 + $0x510] sm:$0xff] %v2275
        %2500 = vst [vmem:[#allocation2 + $0x518] sm:$0xff] %v2276
        %2501 = vst [vmem:[#allocation2 + $0x520] sm:$0xff] %v2277
        %2502 = vst [vmem:[#allocation2 + $0x528] sm:$0xff] %v2278
        %2503 = vst [vmem:[#allocation2 + $0x530] sm:$0xff] %v2279
        %2504 = vst [vmem:[#allocation2 + $0x538] sm:$0xff] %v2280
        %2505 = vst [vmem:[#allocation2 + $0x540] sm:$0xff] %v2281
        %2506 = vst [vmem:[#allocation2 + $0x548] sm:$0xff] %v2282
        %2507 = vst [vmem:[#allocation2 + $0x550] sm:$0xff] %v2283
        %2508 = vst [vmem:[#allocation2 + $0x558] sm:$0xff] %v2284
        %2509 = vst [vmem:[#allocation2 + $0x560] sm:$0xff] %v2285
        %2510 = vst [vmem:[#allocation2 + $0x568] sm:$0xff] %v2286
        %2511 = vst [vmem:[#allocation2 + $0x570] sm:$0xff] %v2287
        %2512 = vst [vmem:[#allocation2 + $0x578] sm:$0xff] %v2288
        %2513 = vst [vmem:[#allocation2 + $0x580] sm:$0xff] %v2289
        %2514 = vst [vmem:[#allocation2 + $0x588] sm:$0xff] %v2290
        %2515 = vst [vmem:[#allocation2 + $0x590] sm:$0xff] %v2291
        %2516 = vst [vmem:[#allocation2 + $0x598] sm:$0xff] %v2292
        %2517 = vst [vmem:[#allocation2 + $0x5a0] sm:$0xff] %v2293
        %2518 = vst [vmem:[#allocation2 + $0x5a8] sm:$0xff] %v2294
        %2519 = vst [vmem:[#allocation2 + $0x5b0] sm:$0xff] %v2295
        %2520 = vst [vmem:[#allocation2 + $0x5b8] sm:$0xff] %v2296
        %2521 = vst [vmem:[#allocation2 + $0x5c0] sm:$0xff] %v2297
        %2522 = vst [vmem:[#allocation2 + $0x5c8] sm:$0xff] %v2298
        %2523 = vst [vmem:[#allocation2 + $0x5d0] sm:$0xff] %v2299
        %2524 = vst [vmem:[#allocation2 + $0x5d8] sm:$0xff] %v2300
        %2525 = vst [vmem:[#allocation2 + $0x5e0] sm:$0xff] %v2301
        %2526 = vst [vmem:[#allocation2 + $0x5e8] sm:$0xff] %v2302
        %2527 = vst [vmem:[#allocation2 + $0x5f0] sm:$0xff] %v2303
        %2528 = vst [vmem:[#allocation2 + $0x5f8] sm:$0xff] %v2304
        %2529 = vst [vmem:[#allocation2 + $0x600] sm:$0xff] %v2305
        %2530 = vst [vmem:[#allocation2 + $0x608] sm:$0xff] %v2306
        %2531 = vst [vmem:[#allocation2 + $0x610] sm:$0xff] %v2307
        %2532 = vst [vmem:[#allocation2 + $0x618] sm:$0xff] %v2308
        %2533 = vst [vmem:[#allocation2 + $0x620] sm:$0xff] %v2309
        %2534 = vst [vmem:[#allocation2 + $0x628] sm:$0xff] %v2310
        %2535 = vst [vmem:[#allocation2 + $0x630] sm:$0xff] %v2311
        %2536 = vst [vmem:[#allocation2 + $0x638] sm:$0xff] %v2312
        %2537 = vst [vmem:[#allocation2 + $0x640] sm:$0xff] %v2313
        %2538 = vst [vmem:[#allocation2 + $0x648] sm:$0xff] %v2314
        %2539 = vst [vmem:[#allocation2 + $0x650] sm:$0xff] %v2315
        %2540 = vst [vmem:[#allocation2 + $0x658] sm:$0xff] %v2316
        %2541 = vst [vmem:[#allocation2 + $0x660] sm:$0xff] %v2317
        %2542 = vst [vmem:[#allocation2 + $0x668] sm:$0xff] %v2318
        %2543 = vst [vmem:[#allocation2 + $0x670] sm:$0xff] %v2319
        %2544 = vst [vmem:[#allocation2 + $0x678] sm:$0xff] %v2320
        %2545 = vst [vmem:[#allocation2 + $0x680] sm:$0xff] %v2321
        %2546 = vst [vmem:[#allocation2 + $0x688] sm:$0xff] %v2322
        %2547 = vst [vmem:[#allocation2 + $0x690] sm:$0xff] %v2323
        %2548 = vst [vmem:[#allocation2 + $0x698] sm:$0xff] %v2324
        %2549 = vst [vmem:[#allocation2 + $0x6a0] sm:$0xff] %v2325
        %2550 = vst [vmem:[#allocation2 + $0x6a8] sm:$0xff] %v2326
        %2551 = vst [vmem:[#allocation2 + $0x6b0] sm:$0xff] %v2327
        %2552 = vst [vmem:[#allocation2 + $0x6b8] sm:$0xff] %v2328
        %2553 = vst [vmem:[#allocation2 + $0x6c0] sm:$0xff] %v2329
        %2554 = vst [vmem:[#allocation2 + $0x6c8] sm:$0xff] %v2330
        %2555 = vst [vmem:[#allocation2 + $0x6d0] sm:$0xff] %v2331
        %2556 = vst [vmem:[#allocation2 + $0x6d8] sm:$0xff] %v2332
        %2557 = vst [vmem:[#allocation2 + $0x6e0] sm:$0xff] %v2333
        %2558 = vst [vmem:[#allocation2 + $0x6e8] sm:$0xff] %v2334
        %2559 = vst [vmem:[#allocation2 + $0x6f0] sm:$0xff] %v2335
        %2560 = vst [vmem:[#allocation2 + $0x6f8] sm:$0xff] %v2336
        // Predicated region
        $region99: #{_preprocess.3} parent=89 // pred_check
          %p2561 = pneg %p626
        $region100: #{_preprocess.3} parent=89 // pred_check_branch
          %2563 = sbr.rel (%p2561) target = $region102
        $region101: #{_preprocess.3} parent=89 // pred_region
          %v2564 = vld [vmem:[#allocation2] sm:$0xff]
          %v2565 = vld [vmem:[#allocation2 + $0x8] sm:$0xff]
          %v2566 = vld [vmem:[#allocation2 + $0x10] sm:$0xff]
          %v2567 = vld [vmem:[#allocation2 + $0x18] sm:$0xff]
          %v2568 = vld [vmem:[#allocation2 + $0x20] sm:$0xff]
          %v2569 = vld [vmem:[#allocation2 + $0x28] sm:$0xff]
          %v2570 = vld [vmem:[#allocation2 + $0x30] sm:$0xff]
          %v2571 = vld [vmem:[#allocation2 + $0x38] sm:$0xff]
          %v2572 = vld [vmem:[#allocation2 + $0x40] sm:$0xff]
          %v2573 = vld [vmem:[#allocation2 + $0x48] sm:$0xff]
          %v2574 = vld [vmem:[#allocation2 + $0x50] sm:$0xff]
          %v2575 = vld [vmem:[#allocation2 + $0x58] sm:$0xff]
          %v2576 = vld [vmem:[#allocation2 + $0x60] sm:$0xff]
          %v2577 = vld [vmem:[#allocation2 + $0x68] sm:$0xff]
          %v2578 = vld [vmem:[#allocation2 + $0x70] sm:$0xff]
          %v2579 = vld [vmem:[#allocation2 + $0x78] sm:$0xff]
          %v2580 = vld [vmem:[#allocation2 + $0x80] sm:$0xff]
          %v2581 = vld [vmem:[#allocation2 + $0x88] sm:$0xff]
          %v2582 = vld [vmem:[#allocation2 + $0x90] sm:$0xff]
          %v2583 = vld [vmem:[#allocation2 + $0x98] sm:$0xff]
          %v2584 = vld [vmem:[#allocation2 + $0xa0] sm:$0xff]
          %v2585 = vld [vmem:[#allocation2 + $0xa8] sm:$0xff]
          %v2586 = vld [vmem:[#allocation2 + $0xb0] sm:$0xff]
          %v2587 = vld [vmem:[#allocation2 + $0xb8] sm:$0xff]
          %v2588 = vld [vmem:[#allocation2 + $0xc0] sm:$0xff]
          %v2589 = vld [vmem:[#allocation2 + $0xc8] sm:$0xff]
          %v2590 = vld [vmem:[#allocation2 + $0xd0] sm:$0xff]
          %v2591 = vld [vmem:[#allocation2 + $0xd8] sm:$0xff]
          %v2592 = vld [vmem:[#allocation2 + $0xe0] sm:$0xff]
          %v2593 = vld [vmem:[#allocation2 + $0xe8] sm:$0xff]
          %v2594 = vld [vmem:[#allocation2 + $0xf0] sm:$0xff]
          %v2595 = vld [vmem:[#allocation2 + $0xf8] sm:$0xff]
          %v2596 = vld [vmem:[#allocation2 + $0x100] sm:$0xff]
          %v2597 = vld [vmem:[#allocation2 + $0x108] sm:$0xff]
          %v2598 = vld [vmem:[#allocation2 + $0x110] sm:$0xff]
          %v2599 = vld [vmem:[#allocation2 + $0x118] sm:$0xff]
          %v2600 = vld [vmem:[#allocation2 + $0x120] sm:$0xff]
          %v2601 = vld [vmem:[#allocation2 + $0x128] sm:$0xff]
          %v2602 = vld [vmem:[#allocation2 + $0x130] sm:$0xff]
          %v2603 = vld [vmem:[#allocation2 + $0x138] sm:$0xff]
          %v2604 = vld [vmem:[#allocation2 + $0x140] sm:$0xff]
          %v2605 = vld [vmem:[#allocation2 + $0x148] sm:$0xff]
          %v2606 = vld [vmem:[#allocation2 + $0x150] sm:$0xff]
          %v2607 = vld [vmem:[#allocation2 + $0x158] sm:$0xff]
          %v2608 = vld [vmem:[#allocation2 + $0x160] sm:$0xff]
          %v2609 = vld [vmem:[#allocation2 + $0x168] sm:$0xff]
          %v2610 = vld [vmem:[#allocation2 + $0x170] sm:$0xff]
          %v2611 = vld [vmem:[#allocation2 + $0x178] sm:$0xff]
          %v2612 = vld [vmem:[#allocation2 + $0x180] sm:$0xff]
          %v2613 = vld [vmem:[#allocation2 + $0x188] sm:$0xff]
          %v2614 = vld [vmem:[#allocation2 + $0x190] sm:$0xff]
          %v2615 = vld [vmem:[#allocation2 + $0x198] sm:$0xff]
          %v2616 = vld [vmem:[#allocation2 + $0x1a0] sm:$0xff]
          %v2617 = vld [vmem:[#allocation2 + $0x1a8] sm:$0xff]
          %v2618 = vld [vmem:[#allocation2 + $0x1b0] sm:$0xff]
          %v2619 = vld [vmem:[#allocation2 + $0x1b8] sm:$0xff]
          %v2620 = vld [vmem:[#allocation2 + $0x1c0] sm:$0xff]
          %v2621 = vld [vmem:[#allocation2 + $0x1c8] sm:$0xff]
          %v2622 = vld [vmem:[#allocation2 + $0x1d0] sm:$0xff]
          %v2623 = vld [vmem:[#allocation2 + $0x1d8] sm:$0xff]
          %v2624 = vld [vmem:[#allocation2 + $0x1e0] sm:$0xff]
          %v2625 = vld [vmem:[#allocation2 + $0x1e8] sm:$0xff]
          %v2626 = vld [vmem:[#allocation2 + $0x1f0] sm:$0xff]
          %v2627 = vld [vmem:[#allocation2 + $0x1f8] sm:$0xff]
          %v2628 = vld [vmem:[#allocation2 + $0x200] sm:$0xff]
          %v2629 = vld [vmem:[#allocation2 + $0x208] sm:$0xff]
          %v2630 = vld [vmem:[#allocation2 + $0x210] sm:$0xff]
          %v2631 = vld [vmem:[#allocation2 + $0x218] sm:$0xff]
          %v2632 = vld [vmem:[#allocation2 + $0x220] sm:$0xff]
          %v2633 = vld [vmem:[#allocation2 + $0x228] sm:$0xff]
          %v2634 = vld [vmem:[#allocation2 + $0x230] sm:$0xff]
          %v2635 = vld [vmem:[#allocation2 + $0x238] sm:$0xff]
          %v2636 = vld [vmem:[#allocation2 + $0x240] sm:$0xff]
          %v2637 = vld [vmem:[#allocation2 + $0x248] sm:$0xff]
          %v2638 = vld [vmem:[#allocation2 + $0x250] sm:$0xff]
          %v2639 = vld [vmem:[#allocation2 + $0x258] sm:$0xff]
          %v2640 = vld [vmem:[#allocation2 + $0x260] sm:$0xff]
          %v2641 = vld [vmem:[#allocation2 + $0x268] sm:$0xff]
          %v2642 = vld [vmem:[#allocation2 + $0x270] sm:$0xff]
          %v2643 = vld [vmem:[#allocation2 + $0x278] sm:$0xff]
          %v2644 = vld [vmem:[#allocation2 + $0x280] sm:$0xff]
          %v2645 = vld [vmem:[#allocation2 + $0x288] sm:$0xff]
          %v2646 = vld [vmem:[#allocation2 + $0x290] sm:$0xff]
          %v2647 = vld [vmem:[#allocation2 + $0x298] sm:$0xff]
          %v2648 = vld [vmem:[#allocation2 + $0x2a0] sm:$0xff]
          %v2649 = vld [vmem:[#allocation2 + $0x2a8] sm:$0xff]
          %v2650 = vld [vmem:[#allocation2 + $0x2b0] sm:$0xff]
          %v2651 = vld [vmem:[#allocation2 + $0x2b8] sm:$0xff]
          %v2652 = vld [vmem:[#allocation2 + $0x2c0] sm:$0xff]
          %v2653 = vld [vmem:[#allocation2 + $0x2c8] sm:$0xff]
          %v2654 = vld [vmem:[#allocation2 + $0x2d0] sm:$0xff]
          %v2655 = vld [vmem:[#allocation2 + $0x2d8] sm:$0xff]
          %v2656 = vld [vmem:[#allocation2 + $0x2e0] sm:$0xff]
          %v2657 = vld [vmem:[#allocation2 + $0x2e8] sm:$0xff]
          %v2658 = vld [vmem:[#allocation2 + $0x2f0] sm:$0xff]
          %v2659 = vld [vmem:[#allocation2 + $0x2f8] sm:$0xff]
          %v2660 = vld [vmem:[#allocation2 + $0x300] sm:$0xff]
          %v2661 = vld [vmem:[#allocation2 + $0x308] sm:$0xff]
          %v2662 = vld [vmem:[#allocation2 + $0x310] sm:$0xff]
          %v2663 = vld [vmem:[#allocation2 + $0x318] sm:$0xff]
          %v2664 = vld [vmem:[#allocation2 + $0x320] sm:$0xff]
          %v2665 = vld [vmem:[#allocation2 + $0x328] sm:$0xff]
          %v2666 = vld [vmem:[#allocation2 + $0x330] sm:$0xff]
          %v2667 = vld [vmem:[#allocation2 + $0x338] sm:$0xff]
          %v2668 = vld [vmem:[#allocation2 + $0x340] sm:$0xff]
          %v2669 = vld [vmem:[#allocation2 + $0x348] sm:$0xff]
          %v2670 = vld [vmem:[#allocation2 + $0x350] sm:$0xff]
          %v2671 = vld [vmem:[#allocation2 + $0x358] sm:$0xff]
          %v2672 = vld [vmem:[#allocation2 + $0x360] sm:$0xff]
          %v2673 = vld [vmem:[#allocation2 + $0x368] sm:$0xff]
          %v2674 = vld [vmem:[#allocation2 + $0x370] sm:$0xff]
          %v2675 = vld [vmem:[#allocation2 + $0x378] sm:$0xff]
          %v2676 = vld [vmem:[#allocation2 + $0x380] sm:$0xff]
          %v2677 = vld [vmem:[#allocation2 + $0x388] sm:$0xff]
          %v2678 = vld [vmem:[#allocation2 + $0x390] sm:$0xff]
          %v2679 = vld [vmem:[#allocation2 + $0x398] sm:$0xff]
          %v2680 = vld [vmem:[#allocation2 + $0x3a0] sm:$0xff]
          %v2681 = vld [vmem:[#allocation2 + $0x3a8] sm:$0xff]
          %v2682 = vld [vmem:[#allocation2 + $0x3b0] sm:$0xff]
          %v2683 = vld [vmem:[#allocation2 + $0x3b8] sm:$0xff]
          %v2684 = vld [vmem:[#allocation2 + $0x3c0] sm:$0xff]
          %v2685 = vld [vmem:[#allocation2 + $0x3c8] sm:$0xff]
          %v2686 = vld [vmem:[#allocation2 + $0x3d0] sm:$0xff]
          %v2687 = vld [vmem:[#allocation2 + $0x3d8] sm:$0xff]
          %v2688 = vld [vmem:[#allocation2 + $0x3e0] sm:$0xff]
          %v2689 = vld [vmem:[#allocation2 + $0x3e8] sm:$0xff]
          %v2690 = vld [vmem:[#allocation2 + $0x3f0] sm:$0xff]
          %v2691 = vld [vmem:[#allocation2 + $0x3f8] sm:$0xff]
          %v2692 = vld [vmem:[#allocation2 + $0x400] sm:$0xff]
          %v2693 = vld [vmem:[#allocation2 + $0x408] sm:$0xff]
          %v2694 = vld [vmem:[#allocation2 + $0x410] sm:$0xff]
          %v2695 = vld [vmem:[#allocation2 + $0x418] sm:$0xff]
          %v2696 = vld [vmem:[#allocation2 + $0x420] sm:$0xff]
          %v2697 = vld [vmem:[#allocation2 + $0x428] sm:$0xff]
          %v2698 = vld [vmem:[#allocation2 + $0x430] sm:$0xff]
          %v2699 = vld [vmem:[#allocation2 + $0x438] sm:$0xff]
          %v2700 = vld [vmem:[#allocation2 + $0x440] sm:$0xff]
          %v2701 = vld [vmem:[#allocation2 + $0x448] sm:$0xff]
          %v2702 = vld [vmem:[#allocation2 + $0x450] sm:$0xff]
          %v2703 = vld [vmem:[#allocation2 + $0x458] sm:$0xff]
          %v2704 = vld [vmem:[#allocation2 + $0x460] sm:$0xff]
          %v2705 = vld [vmem:[#allocation2 + $0x468] sm:$0xff]
          %v2706 = vld [vmem:[#allocation2 + $0x470] sm:$0xff]
          %v2707 = vld [vmem:[#allocation2 + $0x478] sm:$0xff]
          %v2708 = vld [vmem:[#allocation2 + $0x480] sm:$0xff]
          %v2709 = vld [vmem:[#allocation2 + $0x488] sm:$0xff]
          %v2710 = vld [vmem:[#allocation2 + $0x490] sm:$0xff]
          %v2711 = vld [vmem:[#allocation2 + $0x498] sm:$0xff]
          %v2712 = vld [vmem:[#allocation2 + $0x4a0] sm:$0xff]
          %v2713 = vld [vmem:[#allocation2 + $0x4a8] sm:$0xff]
          %v2714 = vld [vmem:[#allocation2 + $0x4b0] sm:$0xff]
          %v2715 = vld [vmem:[#allocation2 + $0x4b8] sm:$0xff]
          %v2716 = vld [vmem:[#allocation2 + $0x4c0] sm:$0xff]
          %v2717 = vld [vmem:[#allocation2 + $0x4c8] sm:$0xff]
          %v2718 = vld [vmem:[#allocation2 + $0x4d0] sm:$0xff]
          %v2719 = vld [vmem:[#allocation2 + $0x4d8] sm:$0xff]
          %v2720 = vld [vmem:[#allocation2 + $0x4e0] sm:$0xff]
          %v2721 = vld [vmem:[#allocation2 + $0x4e8] sm:$0xff]
          %v2722 = vld [vmem:[#allocation2 + $0x4f0] sm:$0xff]
          %v2723 = vld [vmem:[#allocation2 + $0x4f8] sm:$0xff]
          %v2724 = vld [vmem:[#allocation2 + $0x500] sm:$0xff]
          %v2725 = vld [vmem:[#allocation2 + $0x508] sm:$0xff]
          %v2726 = vld [vmem:[#allocation2 + $0x510] sm:$0xff]
          %v2727 = vld [vmem:[#allocation2 + $0x518] sm:$0xff]
          %v2728 = vld [vmem:[#allocation2 + $0x520] sm:$0xff]
          %v2729 = vld [vmem:[#allocation2 + $0x528] sm:$0xff]
          %v2730 = vld [vmem:[#allocation2 + $0x530] sm:$0xff]
          %v2731 = vld [vmem:[#allocation2 + $0x538] sm:$0xff]
          %v2732 = vld [vmem:[#allocation2 + $0x540] sm:$0xff]
          %v2733 = vld [vmem:[#allocation2 + $0x548] sm:$0xff]
          %v2734 = vld [vmem:[#allocation2 + $0x550] sm:$0xff]
          %v2735 = vld [vmem:[#allocation2 + $0x558] sm:$0xff]
          %v2736 = vld [vmem:[#allocation2 + $0x560] sm:$0xff]
          %v2737 = vld [vmem:[#allocation2 + $0x568] sm:$0xff]
          %v2738 = vld [vmem:[#allocation2 + $0x570] sm:$0xff]
          %v2739 = vld [vmem:[#allocation2 + $0x578] sm:$0xff]
          %v2740 = vld [vmem:[#allocation2 + $0x580] sm:$0xff]
          %v2741 = vld [vmem:[#allocation2 + $0x588] sm:$0xff]
          %v2742 = vld [vmem:[#allocation2 + $0x590] sm:$0xff]
          %v2743 = vld [vmem:[#allocation2 + $0x598] sm:$0xff]
          %v2744 = vld [vmem:[#allocation2 + $0x5a0] sm:$0xff]
          %v2745 = vld [vmem:[#allocation2 + $0x5a8] sm:$0xff]
          %v2746 = vld [vmem:[#allocation2 + $0x5b0] sm:$0xff]
          %v2747 = vld [vmem:[#allocation2 + $0x5b8] sm:$0xff]
          %v2748 = vld [vmem:[#allocation2 + $0x5c0] sm:$0xff]
          %v2749 = vld [vmem:[#allocation2 + $0x5c8] sm:$0xff]
          %v2750 = vld [vmem:[#allocation2 + $0x5d0] sm:$0xff]
          %v2751 = vld [vmem:[#allocation2 + $0x5d8] sm:$0xff]
          %v2752 = vld [vmem:[#allocation2 + $0x5e0] sm:$0xff]
          %v2753 = vld [vmem:[#allocation2 + $0x5e8] sm:$0xff]
          %v2754 = vld [vmem:[#allocation2 + $0x5f0] sm:$0xff]
          %v2755 = vld [vmem:[#allocation2 + $0x5f8] sm:$0xff]
          %v2756 = vld [vmem:[#allocation2 + $0x600] sm:$0xff]
          %v2757 = vld [vmem:[#allocation2 + $0x608] sm:$0xff]
          %v2758 = vld [vmem:[#allocation2 + $0x610] sm:$0xff]
          %v2759 = vld [vmem:[#allocation2 + $0x618] sm:$0xff]
          %v2760 = vld [vmem:[#allocation2 + $0x620] sm:$0xff]
          %v2761 = vld [vmem:[#allocation2 + $0x628] sm:$0xff]
          %v2762 = vld [vmem:[#allocation2 + $0x630] sm:$0xff]
          %v2763 = vld [vmem:[#allocation2 + $0x638] sm:$0xff]
          %v2764 = vld [vmem:[#allocation2 + $0x640] sm:$0xff]
          %v2765 = vld [vmem:[#allocation2 + $0x648] sm:$0xff]
          %v2766 = vld [vmem:[#allocation2 + $0x650] sm:$0xff]
          %v2767 = vld [vmem:[#allocation2 + $0x658] sm:$0xff]
          %v2768 = vld [vmem:[#allocation2 + $0x660] sm:$0xff]
          %v2769 = vld [vmem:[#allocation2 + $0x668] sm:$0xff]
          %v2770 = vld [vmem:[#allocation2 + $0x670] sm:$0xff]
          %v2771 = vld [vmem:[#allocation2 + $0x678] sm:$0xff]
          %v2772 = vld [vmem:[#allocation2 + $0x680] sm:$0xff]
          %v2773 = vld [vmem:[#allocation2 + $0x688] sm:$0xff]
          %v2774 = vld [vmem:[#allocation2 + $0x690] sm:$0xff]
          %v2775 = vld [vmem:[#allocation2 + $0x698] sm:$0xff]
          %v2776 = vld [vmem:[#allocation2 + $0x6a0] sm:$0xff]
          %v2777 = vld [vmem:[#allocation2 + $0x6a8] sm:$0xff]
          %v2778 = vld [vmem:[#allocation2 + $0x6b0] sm:$0xff]
          %v2779 = vld [vmem:[#allocation2 + $0x6b8] sm:$0xff]
          %v2780 = vld [vmem:[#allocation2 + $0x6c0] sm:$0xff]
          %v2781 = vld [vmem:[#allocation2 + $0x6c8] sm:$0xff]
          %v2782 = vld [vmem:[#allocation2 + $0x6d0] sm:$0xff]
          %v2783 = vld [vmem:[#allocation2 + $0x6d8] sm:$0xff]
          %v2784 = vld [vmem:[#allocation2 + $0x6e0] sm:$0xff]
          %v2785 = vld [vmem:[#allocation2 + $0x6e8] sm:$0xff]
          %v2786 = vld [vmem:[#allocation2 + $0x6f0] sm:$0xff]
          %v2787 = vld [vmem:[#allocation2 + $0x6f8] sm:$0xff]
          %2788 = vst [vmem:[%s604] sm:$0xff] %v2564
          %2789 = vst [vmem:[%s604 + $0x8] sm:$0xff] %v2565
          %2790 = vst [vmem:[%s604 + $0x10] sm:$0xff] %v2566
          %2791 = vst [vmem:[%s604 + $0x18] sm:$0xff] %v2567
          %2792 = vst [vmem:[%s604 + $0x20] sm:$0xff] %v2568
          %2793 = vst [vmem:[%s604 + $0x28] sm:$0xff] %v2569
          %2794 = vst [vmem:[%s604 + $0x30] sm:$0xff] %v2570
          %2795 = vst [vmem:[%s604 + $0x38] sm:$0xff] %v2571
          %2796 = vst [vmem:[%s604 + $0x40] sm:$0xff] %v2572
          %2797 = vst [vmem:[%s604 + $0x48] sm:$0xff] %v2573
          %2798 = vst [vmem:[%s604 + $0x50] sm:$0xff] %v2574
          %2799 = vst [vmem:[%s604 + $0x58] sm:$0xff] %v2575
          %2800 = vst [vmem:[%s604 + $0x60] sm:$0xff] %v2576
          %2801 = vst [vmem:[%s604 + $0x68] sm:$0xff] %v2577
          %2802 = vst [vmem:[%s604 + $0x70] sm:$0xff] %v2578
          %2803 = vst [vmem:[%s604 + $0x78] sm:$0xff] %v2579
          %2804 = vst [vmem:[%s604 + $0x80] sm:$0xff] %v2580
          %2805 = vst [vmem:[%s604 + $0x88] sm:$0xff] %v2581
          %2806 = vst [vmem:[%s604 + $0x90] sm:$0xff] %v2582
          %2807 = vst [vmem:[%s604 + $0x98] sm:$0xff] %v2583
          %2808 = vst [vmem:[%s604 + $0xa0] sm:$0xff] %v2584
          %2809 = vst [vmem:[%s604 + $0xa8] sm:$0xff] %v2585
          %2810 = vst [vmem:[%s604 + $0xb0] sm:$0xff] %v2586
          %2811 = vst [vmem:[%s604 + $0xb8] sm:$0xff] %v2587
          %2812 = vst [vmem:[%s604 + $0xc0] sm:$0xff] %v2588
          %2813 = vst [vmem:[%s604 + $0xc8] sm:$0xff] %v2589
          %2814 = vst [vmem:[%s604 + $0xd0] sm:$0xff] %v2590
          %2815 = vst [vmem:[%s604 + $0xd8] sm:$0xff] %v2591
          %2816 = vst [vmem:[%s604 + $0xe0] sm:$0xff] %v2592
          %2817 = vst [vmem:[%s604 + $0xe8] sm:$0xff] %v2593
          %2818 = vst [vmem:[%s604 + $0xf0] sm:$0xff] %v2594
          %2819 = vst [vmem:[%s604 + $0xf8] sm:$0xff] %v2595
          %2820 = vst [vmem:[%s604 + $0x100] sm:$0xff] %v2596
          %2821 = vst [vmem:[%s604 + $0x108] sm:$0xff] %v2597
          %2822 = vst [vmem:[%s604 + $0x110] sm:$0xff] %v2598
          %2823 = vst [vmem:[%s604 + $0x118] sm:$0xff] %v2599
          %2824 = vst [vmem:[%s604 + $0x120] sm:$0xff] %v2600
          %2825 = vst [vmem:[%s604 + $0x128] sm:$0xff] %v2601
          %2826 = vst [vmem:[%s604 + $0x130] sm:$0xff] %v2602
          %2827 = vst [vmem:[%s604 + $0x138] sm:$0xff] %v2603
          %2828 = vst [vmem:[%s604 + $0x140] sm:$0xff] %v2604
          %2829 = vst [vmem:[%s604 + $0x148] sm:$0xff] %v2605
          %2830 = vst [vmem:[%s604 + $0x150] sm:$0xff] %v2606
          %2831 = vst [vmem:[%s604 + $0x158] sm:$0xff] %v2607
          %2832 = vst [vmem:[%s604 + $0x160] sm:$0xff] %v2608
          %2833 = vst [vmem:[%s604 + $0x168] sm:$0xff] %v2609
          %2834 = vst [vmem:[%s604 + $0x170] sm:$0xff] %v2610
          %2835 = vst [vmem:[%s604 + $0x178] sm:$0xff] %v2611
          %2836 = vst [vmem:[%s604 + $0x180] sm:$0xff] %v2612
          %2837 = vst [vmem:[%s604 + $0x188] sm:$0xff] %v2613
          %2838 = vst [vmem:[%s604 + $0x190] sm:$0xff] %v2614
          %2839 = vst [vmem:[%s604 + $0x198] sm:$0xff] %v2615
          %2840 = vst [vmem:[%s604 + $0x1a0] sm:$0xff] %v2616
          %2841 = vst [vmem:[%s604 + $0x1a8] sm:$0xff] %v2617
          %2842 = vst [vmem:[%s604 + $0x1b0] sm:$0xff] %v2618
          %2843 = vst [vmem:[%s604 + $0x1b8] sm:$0xff] %v2619
          %2844 = vst [vmem:[%s604 + $0x1c0] sm:$0xff] %v2620
          %2845 = vst [vmem:[%s604 + $0x1c8] sm:$0xff] %v2621
          %2846 = vst [vmem:[%s604 + $0x1d0] sm:$0xff] %v2622
          %2847 = vst [vmem:[%s604 + $0x1d8] sm:$0xff] %v2623
          %2848 = vst [vmem:[%s604 + $0x1e0] sm:$0xff] %v2624
          %2849 = vst [vmem:[%s604 + $0x1e8] sm:$0xff] %v2625
          %2850 = vst [vmem:[%s604 + $0x1f0] sm:$0xff] %v2626
          %2851 = vst [vmem:[%s604 + $0x1f8] sm:$0xff] %v2627
          %2852 = vst [vmem:[%s604 + $0x200] sm:$0xff] %v2628
          %2853 = vst [vmem:[%s604 + $0x208] sm:$0xff] %v2629
          %2854 = vst [vmem:[%s604 + $0x210] sm:$0xff] %v2630
          %2855 = vst [vmem:[%s604 + $0x218] sm:$0xff] %v2631
          %2856 = vst [vmem:[%s604 + $0x220] sm:$0xff] %v2632
          %2857 = vst [vmem:[%s604 + $0x228] sm:$0xff] %v2633
          %2858 = vst [vmem:[%s604 + $0x230] sm:$0xff] %v2634
          %2859 = vst [vmem:[%s604 + $0x238] sm:$0xff] %v2635
          %2860 = vst [vmem:[%s604 + $0x240] sm:$0xff] %v2636
          %2861 = vst [vmem:[%s604 + $0x248] sm:$0xff] %v2637
          %2862 = vst [vmem:[%s604 + $0x250] sm:$0xff] %v2638
          %2863 = vst [vmem:[%s604 + $0x258] sm:$0xff] %v2639
          %2864 = vst [vmem:[%s604 + $0x260] sm:$0xff] %v2640
          %2865 = vst [vmem:[%s604 + $0x268] sm:$0xff] %v2641
          %2866 = vst [vmem:[%s604 + $0x270] sm:$0xff] %v2642
          %2867 = vst [vmem:[%s604 + $0x278] sm:$0xff] %v2643
          %2868 = vst [vmem:[%s604 + $0x280] sm:$0xff] %v2644
          %2869 = vst [vmem:[%s604 + $0x288] sm:$0xff] %v2645
          %2870 = vst [vmem:[%s604 + $0x290] sm:$0xff] %v2646
          %2871 = vst [vmem:[%s604 + $0x298] sm:$0xff] %v2647
          %2872 = vst [vmem:[%s604 + $0x2a0] sm:$0xff] %v2648
          %2873 = vst [vmem:[%s604 + $0x2a8] sm:$0xff] %v2649
          %2874 = vst [vmem:[%s604 + $0x2b0] sm:$0xff] %v2650
          %2875 = vst [vmem:[%s604 + $0x2b8] sm:$0xff] %v2651
          %2876 = vst [vmem:[%s604 + $0x2c0] sm:$0xff] %v2652
          %2877 = vst [vmem:[%s604 + $0x2c8] sm:$0xff] %v2653
          %2878 = vst [vmem:[%s604 + $0x2d0] sm:$0xff] %v2654
          %2879 = vst [vmem:[%s604 + $0x2d8] sm:$0xff] %v2655
          %2880 = vst [vmem:[%s604 + $0x2e0] sm:$0xff] %v2656
          %2881 = vst [vmem:[%s604 + $0x2e8] sm:$0xff] %v2657
          %2882 = vst [vmem:[%s604 + $0x2f0] sm:$0xff] %v2658
          %2883 = vst [vmem:[%s604 + $0x2f8] sm:$0xff] %v2659
          %2884 = vst [vmem:[%s604 + $0x300] sm:$0xff] %v2660
          %2885 = vst [vmem:[%s604 + $0x308] sm:$0xff] %v2661
          %2886 = vst [vmem:[%s604 + $0x310] sm:$0xff] %v2662
          %2887 = vst [vmem:[%s604 + $0x318] sm:$0xff] %v2663
          %2888 = vst [vmem:[%s604 + $0x320] sm:$0xff] %v2664
          %2889 = vst [vmem:[%s604 + $0x328] sm:$0xff] %v2665
          %2890 = vst [vmem:[%s604 + $0x330] sm:$0xff] %v2666
          %2891 = vst [vmem:[%s604 + $0x338] sm:$0xff] %v2667
          %2892 = vst [vmem:[%s604 + $0x340] sm:$0xff] %v2668
          %2893 = vst [vmem:[%s604 + $0x348] sm:$0xff] %v2669
          %2894 = vst [vmem:[%s604 + $0x350] sm:$0xff] %v2670
          %2895 = vst [vmem:[%s604 + $0x358] sm:$0xff] %v2671
          %2896 = vst [vmem:[%s604 + $0x360] sm:$0xff] %v2672
          %2897 = vst [vmem:[%s604 + $0x368] sm:$0xff] %v2673
          %2898 = vst [vmem:[%s604 + $0x370] sm:$0xff] %v2674
          %2899 = vst [vmem:[%s604 + $0x378] sm:$0xff] %v2675
          %2900 = vst [vmem:[%s604 + $0x380] sm:$0xff] %v2676
          %2901 = vst [vmem:[%s604 + $0x388] sm:$0xff] %v2677
          %2902 = vst [vmem:[%s604 + $0x390] sm:$0xff] %v2678
          %2903 = vst [vmem:[%s604 + $0x398] sm:$0xff] %v2679
          %2904 = vst [vmem:[%s604 + $0x3a0] sm:$0xff] %v2680
          %2905 = vst [vmem:[%s604 + $0x3a8] sm:$0xff] %v2681
          %2906 = vst [vmem:[%s604 + $0x3b0] sm:$0xff] %v2682
          %2907 = vst [vmem:[%s604 + $0x3b8] sm:$0xff] %v2683
          %2908 = vst [vmem:[%s604 + $0x3c0] sm:$0xff] %v2684
          %2909 = vst [vmem:[%s604 + $0x3c8] sm:$0xff] %v2685
          %2910 = vst [vmem:[%s604 + $0x3d0] sm:$0xff] %v2686
          %2911 = vst [vmem:[%s604 + $0x3d8] sm:$0xff] %v2687
          %2912 = vst [vmem:[%s604 + $0x3e0] sm:$0xff] %v2688
          %2913 = vst [vmem:[%s604 + $0x3e8] sm:$0xff] %v2689
          %2914 = vst [vmem:[%s604 + $0x3f0] sm:$0xff] %v2690
          %2915 = vst [vmem:[%s604 + $0x3f8] sm:$0xff] %v2691
          %2916 = vst [vmem:[%s604 + $0x400] sm:$0xff] %v2692
          %2917 = vst [vmem:[%s604 + $0x408] sm:$0xff] %v2693
          %2918 = vst [vmem:[%s604 + $0x410] sm:$0xff] %v2694
          %2919 = vst [vmem:[%s604 + $0x418] sm:$0xff] %v2695
          %2920 = vst [vmem:[%s604 + $0x420] sm:$0xff] %v2696
          %2921 = vst [vmem:[%s604 + $0x428] sm:$0xff] %v2697
          %2922 = vst [vmem:[%s604 + $0x430] sm:$0xff] %v2698
          %2923 = vst [vmem:[%s604 + $0x438] sm:$0xff] %v2699
          %2924 = vst [vmem:[%s604 + $0x440] sm:$0xff] %v2700
          %2925 = vst [vmem:[%s604 + $0x448] sm:$0xff] %v2701
          %2926 = vst [vmem:[%s604 + $0x450] sm:$0xff] %v2702
          %2927 = vst [vmem:[%s604 + $0x458] sm:$0xff] %v2703
          %2928 = vst [vmem:[%s604 + $0x460] sm:$0xff] %v2704
          %2929 = vst [vmem:[%s604 + $0x468] sm:$0xff] %v2705
          %2930 = vst [vmem:[%s604 + $0x470] sm:$0xff] %v2706
          %2931 = vst [vmem:[%s604 + $0x478] sm:$0xff] %v2707
          %2932 = vst [vmem:[%s604 + $0x480] sm:$0xff] %v2708
          %2933 = vst [vmem:[%s604 + $0x488] sm:$0xff] %v2709
          %2934 = vst [vmem:[%s604 + $0x490] sm:$0xff] %v2710
          %2935 = vst [vmem:[%s604 + $0x498] sm:$0xff] %v2711
          %2936 = vst [vmem:[%s604 + $0x4a0] sm:$0xff] %v2712
          %2937 = vst [vmem:[%s604 + $0x4a8] sm:$0xff] %v2713
          %2938 = vst [vmem:[%s604 + $0x4b0] sm:$0xff] %v2714
          %2939 = vst [vmem:[%s604 + $0x4b8] sm:$0xff] %v2715
          %2940 = vst [vmem:[%s604 + $0x4c0] sm:$0xff] %v2716
          %2941 = vst [vmem:[%s604 + $0x4c8] sm:$0xff] %v2717
          %2942 = vst [vmem:[%s604 + $0x4d0] sm:$0xff] %v2718
          %2943 = vst [vmem:[%s604 + $0x4d8] sm:$0xff] %v2719
          %2944 = vst [vmem:[%s604 + $0x4e0] sm:$0xff] %v2720
          %2945 = vst [vmem:[%s604 + $0x4e8] sm:$0xff] %v2721
          %2946 = vst [vmem:[%s604 + $0x4f0] sm:$0xff] %v2722
          %2947 = vst [vmem:[%s604 + $0x4f8] sm:$0xff] %v2723
          %2948 = vst [vmem:[%s604 + $0x500] sm:$0xff] %v2724
          %2949 = vst [vmem:[%s604 + $0x508] sm:$0xff] %v2725
          %2950 = vst [vmem:[%s604 + $0x510] sm:$0xff] %v2726
          %2951 = vst [vmem:[%s604 + $0x518] sm:$0xff] %v2727
          %2952 = vst [vmem:[%s604 + $0x520] sm:$0xff] %v2728
          %2953 = vst [vmem:[%s604 + $0x528] sm:$0xff] %v2729
          %2954 = vst [vmem:[%s604 + $0x530] sm:$0xff] %v2730
          %2955 = vst [vmem:[%s604 + $0x538] sm:$0xff] %v2731
          %2956 = vst [vmem:[%s604 + $0x540] sm:$0xff] %v2732
          %2957 = vst [vmem:[%s604 + $0x548] sm:$0xff] %v2733
          %2958 = vst [vmem:[%s604 + $0x550] sm:$0xff] %v2734
          %2959 = vst [vmem:[%s604 + $0x558] sm:$0xff] %v2735
          %2960 = vst [vmem:[%s604 + $0x560] sm:$0xff] %v2736
          %2961 = vst [vmem:[%s604 + $0x568] sm:$0xff] %v2737
          %2962 = vst [vmem:[%s604 + $0x570] sm:$0xff] %v2738
          %2963 = vst [vmem:[%s604 + $0x578] sm:$0xff] %v2739
          %2964 = vst [vmem:[%s604 + $0x580] sm:$0xff] %v2740
          %2965 = vst [vmem:[%s604 + $0x588] sm:$0xff] %v2741
          %2966 = vst [vmem:[%s604 + $0x590] sm:$0xff] %v2742
          %2967 = vst [vmem:[%s604 + $0x598] sm:$0xff] %v2743
          %2968 = vst [vmem:[%s604 + $0x5a0] sm:$0xff] %v2744
          %2969 = vst [vmem:[%s604 + $0x5a8] sm:$0xff] %v2745
          %2970 = vst [vmem:[%s604 + $0x5b0] sm:$0xff] %v2746
          %2971 = vst [vmem:[%s604 + $0x5b8] sm:$0xff] %v2747
          %2972 = vst [vmem:[%s604 + $0x5c0] sm:$0xff] %v2748
          %2973 = vst [vmem:[%s604 + $0x5c8] sm:$0xff] %v2749
          %2974 = vst [vmem:[%s604 + $0x5d0] sm:$0xff] %v2750
          %2975 = vst [vmem:[%s604 + $0x5d8] sm:$0xff] %v2751
          %2976 = vst [vmem:[%s604 + $0x5e0] sm:$0xff] %v2752
          %2977 = vst [vmem:[%s604 + $0x5e8] sm:$0xff] %v2753
          %2978 = vst [vmem:[%s604 + $0x5f0] sm:$0xff] %v2754
          %2979 = vst [vmem:[%s604 + $0x5f8] sm:$0xff] %v2755
          %2980 = vst [vmem:[%s604 + $0x600] sm:$0xff] %v2756
          %2981 = vst [vmem:[%s604 + $0x608] sm:$0xff] %v2757
          %2982 = vst [vmem:[%s604 + $0x610] sm:$0xff] %v2758
          %2983 = vst [vmem:[%s604 + $0x618] sm:$0xff] %v2759
          %2984 = vst [vmem:[%s604 + $0x620] sm:$0xff] %v2760
          %2985 = vst [vmem:[%s604 + $0x628] sm:$0xff] %v2761
          %2986 = vst [vmem:[%s604 + $0x630] sm:$0xff] %v2762
          %2987 = vst [vmem:[%s604 + $0x638] sm:$0xff] %v2763
          %2988 = vst [vmem:[%s604 + $0x640] sm:$0xff] %v2764
          %2989 = vst [vmem:[%s604 + $0x648] sm:$0xff] %v2765
          %2990 = vst [vmem:[%s604 + $0x650] sm:$0xff] %v2766
          %2991 = vst [vmem:[%s604 + $0x658] sm:$0xff] %v2767
          %2992 = vst [vmem:[%s604 + $0x660] sm:$0xff] %v2768
          %2993 = vst [vmem:[%s604 + $0x668] sm:$0xff] %v2769
          %2994 = vst [vmem:[%s604 + $0x670] sm:$0xff] %v2770
          %2995 = vst [vmem:[%s604 + $0x678] sm:$0xff] %v2771
          %2996 = vst [vmem:[%s604 + $0x680] sm:$0xff] %v2772
          %2997 = vst [vmem:[%s604 + $0x688] sm:$0xff] %v2773
          %2998 = vst [vmem:[%s604 + $0x690] sm:$0xff] %v2774
          %2999 = vst [vmem:[%s604 + $0x698] sm:$0xff] %v2775
          %3000 = vst [vmem:[%s604 + $0x6a0] sm:$0xff] %v2776
          %3001 = vst [vmem:[%s604 + $0x6a8] sm:$0xff] %v2777
          %3002 = vst [vmem:[%s604 + $0x6b0] sm:$0xff] %v2778
          %3003 = vst [vmem:[%s604 + $0x6b8] sm:$0xff] %v2779
          %3004 = vst [vmem:[%s604 + $0x6c0] sm:$0xff] %v2780
          %3005 = vst [vmem:[%s604 + $0x6c8] sm:$0xff] %v2781
          %3006 = vst [vmem:[%s604 + $0x6d0] sm:$0xff] %v2782
          %3007 = vst [vmem:[%s604 + $0x6d8] sm:$0xff] %v2783
          %3008 = vst [vmem:[%s604 + $0x6e0] sm:$0xff] %v2784
          %3009 = vst [vmem:[%s604 + $0x6e8] sm:$0xff] %v2785
          %3010 = vst [vmem:[%s604 + $0x6f0] sm:$0xff] %v2786
          %3011 = vst [vmem:[%s604 + $0x6f8] sm:$0xff] %v2787
        $region102: #{_preprocess.3} parent=89 // pred_fallthru
          _
        %s3012 = sand.u32 %s98, 1
        %s3013 = sand.u32 %s98, 1
        %s3014 = smul.addr %s3013, 1792
        %s3015 = scalar_lea.vmem [#allocation4], %s3014
        // Predicated region
        $region103: #{_preprocess.3} parent=89 // pred_check
          %p3016 = pneg %p108
        $region104: #{_preprocess.3} parent=89 // pred_check_branch
          %3018 = sbr.rel (%p3016) target = $region106
        $region105: #{_preprocess.3} parent=89 // pred_region
          %s3019 = smul.u32 56, %s18
          %s3020 = smul.u32 4, %s19
          %s3021 = ssub.s32 11, %s3020
          %p3022 = scmp.lt.s32.totalorder %s3021, 4
          %s3023 = scalar_select %p3022, %s3021, 4
          %s3024 = smul.u32 7168, %s3023
          %p3025 = scmp.ne.s32.totalorder 0, %s3024
          %s3026 = smul.addr %s3019, 11
          %s3027 = sadd.s32 %s3020, %s3026
          %s3028 = smul.addr %s3027, 8
          %s3029 = scalar_lea.vmem %s2, %s3028
          %s3030 = smul.u32 %s3023, 8
          // Predicated region
          $region107: #{_preprocess.3} parent=105 // pred_check
            %p3031 = pneg %p3025
          $region108: #{_preprocess.3} parent=105 // pred_check_branch
            %3033 = sbr.rel (%p3031) target = $region110
          $region109: #{_preprocess.3} parent=105 // pred_region
            %p3034 = scmp.lt.u32.totalorder %s3030, 8
            %p3035 = pneg %p3034
            // Predicated region
            $region111: #{_preprocess.3} parent=109 // pred_check
              _
            $region112: #{_preprocess.3} parent=109 // pred_check_branch
              %3037 = sbr.rel (%p3034) target = $region114
            $region113: #{_preprocess.3} parent=109 // pred_region
              %s3162 = sand.u32 %s3030, 7
              %p3163 = scmp.eq.s32.totalorder %s3162, 0
              // Predicated region
              $region126: #{_preprocess.3} parent=113 // pred_check
                %p3164 = pneg %p3163
              $region127: #{_preprocess.3} parent=113 // pred_check_branch
                %3166 = sbr.rel (%p3164) target = $region129
              $region128: #{_preprocess.3} parent=113 // pred_region
                %s3167 = sshrl.u32 %s3030, 3
                %s3168 = sshrl.u32 %s3167, 1
                // While loop
                $region130: #{_preprocess.3} parent=128 // loop_pre_header
                  _
                $region131: #{_preprocess.3} parent=128 // loop_header
                  %s3172 = sphi 0, %s3174
                  %p3173 = scmp.ge.s32.totalorder %s3172, %s3168
                  %s3177 = sphi 0, %s3406
                  %s3178 = sphi %s3015, %s3409
                  %s3179 = sphi %s3029, %s3410
                $region132: #{_preprocess.3} parent=128 // loop_header_branch
                  %3176 = sbr.rel (%p3173) target = $region136
                $region133: #{_preprocess.3} parent=128 // loop_body
                  %v3180 = vld [vmem:[%s3178] sm:$0xff]
                  %3181 = vst [vmem:[%s3179] sm:$0xff] %v3180
                  %v3182 = vld [vmem:[%s3178 + $0x8] sm:$0xff]
                  %3183 = vst [vmem:[%s3179 + $0x8] sm:$0xff] %v3182
                  %v3184 = vld [vmem:[%s3178 + $0x20] sm:$0xff]
                  %3185 = vst [vmem:[%s3179 + $0x58] sm:$0xff] %v3184
                  %v3186 = vld [vmem:[%s3178 + $0x28] sm:$0xff]
                  %3187 = vst [vmem:[%s3179 + $0x60] sm:$0xff] %v3186
                  %v3188 = vld [vmem:[%s3178 + $0x40] sm:$0xff]
                  %3189 = vst [vmem:[%s3179 + $0xb0] sm:$0xff] %v3188
                  %v3190 = vld [vmem:[%s3178 + $0x48] sm:$0xff]
                  %3191 = vst [vmem:[%s3179 + $0xb8] sm:$0xff] %v3190
                  %v3192 = vld [vmem:[%s3178 + $0x60] sm:$0xff]
                  %3193 = vst [vmem:[%s3179 + $0x108] sm:$0xff] %v3192
                  %v3194 = vld [vmem:[%s3178 + $0x68] sm:$0xff]
                  %3195 = vst [vmem:[%s3179 + $0x110] sm:$0xff] %v3194
                  %v3196 = vld [vmem:[%s3178 + $0x80] sm:$0xff]
                  %3197 = vst [vmem:[%s3179 + $0x160] sm:$0xff] %v3196
                  %v3198 = vld [vmem:[%s3178 + $0x88] sm:$0xff]
                  %3199 = vst [vmem:[%s3179 + $0x168] sm:$0xff] %v3198
                  %v3200 = vld [vmem:[%s3178 + $0xa0] sm:$0xff]
                  %3201 = vst [vmem:[%s3179 + $0x1b8] sm:$0xff] %v3200
                  %v3202 = vld [vmem:[%s3178 + $0xa8] sm:$0xff]
                  %3203 = vst [vmem:[%s3179 + $0x1c0] sm:$0xff] %v3202
                  %v3204 = vld [vmem:[%s3178 + $0xc0] sm:$0xff]
                  %3205 = vst [vmem:[%s3179 + $0x210] sm:$0xff] %v3204
                  %v3206 = vld [vmem:[%s3178 + $0xc8] sm:$0xff]
                  %3207 = vst [vmem:[%s3179 + $0x218] sm:$0xff] %v3206
                  %v3208 = vld [vmem:[%s3178 + $0xe0] sm:$0xff]
                  %3209 = vst [vmem:[%s3179 + $0x268] sm:$0xff] %v3208
                  %v3210 = vld [vmem:[%s3178 + $0xe8] sm:$0xff]
                  %3211 = vst [vmem:[%s3179 + $0x270] sm:$0xff] %v3210
                  %v3212 = vld [vmem:[%s3178 + $0x100] sm:$0xff]
                  %3213 = vst [vmem:[%s3179 + $0x2c0] sm:$0xff] %v3212
                  %v3214 = vld [vmem:[%s3178 + $0x108] sm:$0xff]
                  %3215 = vst [vmem:[%s3179 + $0x2c8] sm:$0xff] %v3214
                  %v3216 = vld [vmem:[%s3178 + $0x120] sm:$0xff]
                  %3217 = vst [vmem:[%s3179 + $0x318] sm:$0xff] %v3216
                  %v3218 = vld [vmem:[%s3178 + $0x128] sm:$0xff]
                  %3219 = vst [vmem:[%s3179 + $0x320] sm:$0xff] %v3218
                  %v3220 = vld [vmem:[%s3178 + $0x140] sm:$0xff]
                  %3221 = vst [vmem:[%s3179 + $0x370] sm:$0xff] %v3220
                  %v3222 = vld [vmem:[%s3178 + $0x148] sm:$0xff]
                  %3223 = vst [vmem:[%s3179 + $0x378] sm:$0xff] %v3222
                  %v3224 = vld [vmem:[%s3178 + $0x160] sm:$0xff]
                  %3225 = vst [vmem:[%s3179 + $0x3c8] sm:$0xff] %v3224
                  %v3226 = vld [vmem:[%s3178 + $0x168] sm:$0xff]
                  %3227 = vst [vmem:[%s3179 + $0x3d0] sm:$0xff] %v3226
                  %v3228 = vld [vmem:[%s3178 + $0x180] sm:$0xff]
                  %3229 = vst [vmem:[%s3179 + $0x420] sm:$0xff] %v3228
                  %v3230 = vld [vmem:[%s3178 + $0x188] sm:$0xff]
                  %3231 = vst [vmem:[%s3179 + $0x428] sm:$0xff] %v3230
                  %v3232 = vld [vmem:[%s3178 + $0x1a0] sm:$0xff]
                  %3233 = vst [vmem:[%s3179 + $0x478] sm:$0xff] %v3232
                  %v3234 = vld [vmem:[%s3178 + $0x1a8] sm:$0xff]
                  %3235 = vst [vmem:[%s3179 + $0x480] sm:$0xff] %v3234
                  %v3236 = vld [vmem:[%s3178 + $0x1c0] sm:$0xff]
                  %3237 = vst [vmem:[%s3179 + $0x4d0] sm:$0xff] %v3236
                  %v3238 = vld [vmem:[%s3178 + $0x1c8] sm:$0xff]
                  %3239 = vst [vmem:[%s3179 + $0x4d8] sm:$0xff] %v3238
                  %v3240 = vld [vmem:[%s3178 + $0x1e0] sm:$0xff]
                  %3241 = vst [vmem:[%s3179 + $0x528] sm:$0xff] %v3240
                  %v3242 = vld [vmem:[%s3178 + $0x1e8] sm:$0xff]
                  %3243 = vst [vmem:[%s3179 + $0x530] sm:$0xff] %v3242
                  %v3244 = vld [vmem:[%s3178 + $0x200] sm:$0xff]
                  %3245 = vst [vmem:[%s3179 + $0x580] sm:$0xff] %v3244
                  %v3246 = vld [vmem:[%s3178 + $0x208] sm:$0xff]
                  %3247 = vst [vmem:[%s3179 + $0x588] sm:$0xff] %v3246
                  %v3248 = vld [vmem:[%s3178 + $0x220] sm:$0xff]
                  %3249 = vst [vmem:[%s3179 + $0x5d8] sm:$0xff] %v3248
                  %v3250 = vld [vmem:[%s3178 + $0x228] sm:$0xff]
                  %3251 = vst [vmem:[%s3179 + $0x5e0] sm:$0xff] %v3250
                  %v3252 = vld [vmem:[%s3178 + $0x240] sm:$0xff]
                  %3253 = vst [vmem:[%s3179 + $0x630] sm:$0xff] %v3252
                  %v3254 = vld [vmem:[%s3178 + $0x248] sm:$0xff]
                  %3255 = vst [vmem:[%s3179 + $0x638] sm:$0xff] %v3254
                  %v3256 = vld [vmem:[%s3178 + $0x260] sm:$0xff]
                  %3257 = vst [vmem:[%s3179 + $0x688] sm:$0xff] %v3256
                  %v3258 = vld [vmem:[%s3178 + $0x268] sm:$0xff]
                  %3259 = vst [vmem:[%s3179 + $0x690] sm:$0xff] %v3258
                  %v3260 = vld [vmem:[%s3178 + $0x280] sm:$0xff]
                  %3261 = vst [vmem:[%s3179 + $0x6e0] sm:$0xff] %v3260
                  %v3262 = vld [vmem:[%s3178 + $0x288] sm:$0xff]
                  %3263 = vst [vmem:[%s3179 + $0x6e8] sm:$0xff] %v3262
                  %v3264 = vld [vmem:[%s3178 + $0x2a0] sm:$0xff]
                  %3265 = vst [vmem:[%s3179 + $0x738] sm:$0xff] %v3264
                  %v3266 = vld [vmem:[%s3178 + $0x2a8] sm:$0xff]
                  %3267 = vst [vmem:[%s3179 + $0x740] sm:$0xff] %v3266
                  %v3268 = vld [vmem:[%s3178 + $0x2c0] sm:$0xff]
                  %3269 = vst [vmem:[%s3179 + $0x790] sm:$0xff] %v3268
                  %v3270 = vld [vmem:[%s3178 + $0x2c8] sm:$0xff]
                  %3271 = vst [vmem:[%s3179 + $0x798] sm:$0xff] %v3270
                  %v3272 = vld [vmem:[%s3178 + $0x2e0] sm:$0xff]
                  %3273 = vst [vmem:[%s3179 + $0x7e8] sm:$0xff] %v3272
                  %v3274 = vld [vmem:[%s3178 + $0x2e8] sm:$0xff]
                  %3275 = vst [vmem:[%s3179 + $0x7f0] sm:$0xff] %v3274
                  %v3276 = vld [vmem:[%s3178 + $0x300] sm:$0xff]
                  %3277 = vst [vmem:[%s3179 + $0x840] sm:$0xff] %v3276
                  %v3278 = vld [vmem:[%s3178 + $0x308] sm:$0xff]
                  %3279 = vst [vmem:[%s3179 + $0x848] sm:$0xff] %v3278
                  %v3280 = vld [vmem:[%s3178 + $0x320] sm:$0xff]
                  %3281 = vst [vmem:[%s3179 + $0x898] sm:$0xff] %v3280
                  %v3282 = vld [vmem:[%s3178 + $0x328] sm:$0xff]
                  %3283 = vst [vmem:[%s3179 + $0x8a0] sm:$0xff] %v3282
                  %v3284 = vld [vmem:[%s3178 + $0x340] sm:$0xff]
                  %3285 = vst [vmem:[%s3179 + $0x8f0] sm:$0xff] %v3284
                  %v3286 = vld [vmem:[%s3178 + $0x348] sm:$0xff]
                  %3287 = vst [vmem:[%s3179 + $0x8f8] sm:$0xff] %v3286
                  %v3288 = vld [vmem:[%s3178 + $0x360] sm:$0xff]
                  %3289 = vst [vmem:[%s3179 + $0x948] sm:$0xff] %v3288
                  %v3290 = vld [vmem:[%s3178 + $0x368] sm:$0xff]
                  %3291 = vst [vmem:[%s3179 + $0x950] sm:$0xff] %v3290
                  %v3292 = vld [vmem:[%s3178 + $0x380] sm:$0xff]
                  %3293 = vst [vmem:[%s3179 + $0x9a0] sm:$0xff] %v3292
                  %v3294 = vld [vmem:[%s3178 + $0x388] sm:$0xff]
                  %3295 = vst [vmem:[%s3179 + $0x9a8] sm:$0xff] %v3294
                  %v3296 = vld [vmem:[%s3178 + $0x3a0] sm:$0xff]
                  %3297 = vst [vmem:[%s3179 + $0x9f8] sm:$0xff] %v3296
                  %v3298 = vld [vmem:[%s3178 + $0x3a8] sm:$0xff]
                  %3299 = vst [vmem:[%s3179 + $0xa00] sm:$0xff] %v3298
                  %v3300 = vld [vmem:[%s3178 + $0x3c0] sm:$0xff]
                  %3301 = vst [vmem:[%s3179 + $0xa50] sm:$0xff] %v3300
                  %v3302 = vld [vmem:[%s3178 + $0x3c8] sm:$0xff]
                  %3303 = vst [vmem:[%s3179 + $0xa58] sm:$0xff] %v3302
                  %v3304 = vld [vmem:[%s3178 + $0x3e0] sm:$0xff]
                  %3305 = vst [vmem:[%s3179 + $0xaa8] sm:$0xff] %v3304
                  %v3306 = vld [vmem:[%s3178 + $0x3e8] sm:$0xff]
                  %3307 = vst [vmem:[%s3179 + $0xab0] sm:$0xff] %v3306
                  %v3308 = vld [vmem:[%s3178 + $0x400] sm:$0xff]
                  %3309 = vst [vmem:[%s3179 + $0xb00] sm:$0xff] %v3308
                  %v3310 = vld [vmem:[%s3178 + $0x408] sm:$0xff]
                  %3311 = vst [vmem:[%s3179 + $0xb08] sm:$0xff] %v3310
                  %v3312 = vld [vmem:[%s3178 + $0x420] sm:$0xff]
                  %3313 = vst [vmem:[%s3179 + $0xb58] sm:$0xff] %v3312
                  %v3314 = vld [vmem:[%s3178 + $0x428] sm:$0xff]
                  %3315 = vst [vmem:[%s3179 + $0xb60] sm:$0xff] %v3314
                  %v3316 = vld [vmem:[%s3178 + $0x440] sm:$0xff]
                  %3317 = vst [vmem:[%s3179 + $0xbb0] sm:$0xff] %v3316
                  %v3318 = vld [vmem:[%s3178 + $0x448] sm:$0xff]
                  %3319 = vst [vmem:[%s3179 + $0xbb8] sm:$0xff] %v3318
                  %v3320 = vld [vmem:[%s3178 + $0x460] sm:$0xff]
                  %3321 = vst [vmem:[%s3179 + $0xc08] sm:$0xff] %v3320
                  %v3322 = vld [vmem:[%s3178 + $0x468] sm:$0xff]
                  %3323 = vst [vmem:[%s3179 + $0xc10] sm:$0xff] %v3322
                  %v3324 = vld [vmem:[%s3178 + $0x480] sm:$0xff]
                  %3325 = vst [vmem:[%s3179 + $0xc60] sm:$0xff] %v3324
                  %v3326 = vld [vmem:[%s3178 + $0x488] sm:$0xff]
                  %3327 = vst [vmem:[%s3179 + $0xc68] sm:$0xff] %v3326
                  %v3328 = vld [vmem:[%s3178 + $0x4a0] sm:$0xff]
                  %3329 = vst [vmem:[%s3179 + $0xcb8] sm:$0xff] %v3328
                  %v3330 = vld [vmem:[%s3178 + $0x4a8] sm:$0xff]
                  %3331 = vst [vmem:[%s3179 + $0xcc0] sm:$0xff] %v3330
                  %v3332 = vld [vmem:[%s3178 + $0x4c0] sm:$0xff]
                  %3333 = vst [vmem:[%s3179 + $0xd10] sm:$0xff] %v3332
                  %v3334 = vld [vmem:[%s3178 + $0x4c8] sm:$0xff]
                  %3335 = vst [vmem:[%s3179 + $0xd18] sm:$0xff] %v3334
                  %v3336 = vld [vmem:[%s3178 + $0x4e0] sm:$0xff]
                  %3337 = vst [vmem:[%s3179 + $0xd68] sm:$0xff] %v3336
                  %v3338 = vld [vmem:[%s3178 + $0x4e8] sm:$0xff]
                  %3339 = vst [vmem:[%s3179 + $0xd70] sm:$0xff] %v3338
                  %v3340 = vld [vmem:[%s3178 + $0x500] sm:$0xff]
                  %3341 = vst [vmem:[%s3179 + $0xdc0] sm:$0xff] %v3340
                  %v3342 = vld [vmem:[%s3178 + $0x508] sm:$0xff]
                  %3343 = vst [vmem:[%s3179 + $0xdc8] sm:$0xff] %v3342
                  %v3344 = vld [vmem:[%s3178 + $0x520] sm:$0xff]
                  %3345 = vst [vmem:[%s3179 + $0xe18] sm:$0xff] %v3344
                  %v3346 = vld [vmem:[%s3178 + $0x528] sm:$0xff]
                  %3347 = vst [vmem:[%s3179 + $0xe20] sm:$0xff] %v3346
                  %v3348 = vld [vmem:[%s3178 + $0x540] sm:$0xff]
                  %3349 = vst [vmem:[%s3179 + $0xe70] sm:$0xff] %v3348
                  %v3350 = vld [vmem:[%s3178 + $0x548] sm:$0xff]
                  %3351 = vst [vmem:[%s3179 + $0xe78] sm:$0xff] %v3350
                  %v3352 = vld [vmem:[%s3178 + $0x560] sm:$0xff]
                  %3353 = vst [vmem:[%s3179 + $0xec8] sm:$0xff] %v3352
                  %v3354 = vld [vmem:[%s3178 + $0x568] sm:$0xff]
                  %3355 = vst [vmem:[%s3179 + $0xed0] sm:$0xff] %v3354
                  %v3356 = vld [vmem:[%s3178 + $0x580] sm:$0xff]
                  %3357 = vst [vmem:[%s3179 + $0xf20] sm:$0xff] %v3356
                  %v3358 = vld [vmem:[%s3178 + $0x588] sm:$0xff]
                  %3359 = vst [vmem:[%s3179 + $0xf28] sm:$0xff] %v3358
                  %v3360 = vld [vmem:[%s3178 + $0x5a0] sm:$0xff]
                  %3361 = vst [vmem:[%s3179 + $0xf78] sm:$0xff] %v3360
                  %v3362 = vld [vmem:[%s3178 + $0x5a8] sm:$0xff]
                  %3363 = vst [vmem:[%s3179 + $0xf80] sm:$0xff] %v3362
                  %v3364 = vld [vmem:[%s3178 + $0x5c0] sm:$0xff]
                  %3365 = vst [vmem:[%s3179 + $0xfd0] sm:$0xff] %v3364
                  %v3366 = vld [vmem:[%s3178 + $0x5c8] sm:$0xff]
                  %3367 = vst [vmem:[%s3179 + $0xfd8] sm:$0xff] %v3366
                  %v3368 = vld [vmem:[%s3178 + $0x5e0] sm:$0xff]
                  %3369 = vst [vmem:[%s3179 + $0x1028] sm:$0xff] %v3368
                  %v3370 = vld [vmem:[%s3178 + $0x5e8] sm:$0xff]
                  %3371 = vst [vmem:[%s3179 + $0x1030] sm:$0xff] %v3370
                  %v3372 = vld [vmem:[%s3178 + $0x600] sm:$0xff]
                  %3373 = vst [vmem:[%s3179 + $0x1080] sm:$0xff] %v3372
                  %v3374 = vld [vmem:[%s3178 + $0x608] sm:$0xff]
                  %3375 = vst [vmem:[%s3179 + $0x1088] sm:$0xff] %v3374
                  %v3376 = vld [vmem:[%s3178 + $0x620] sm:$0xff]
                  %3377 = vst [vmem:[%s3179 + $0x10d8] sm:$0xff] %v3376
                  %v3378 = vld [vmem:[%s3178 + $0x628] sm:$0xff]
                  %3379 = vst [vmem:[%s3179 + $0x10e0] sm:$0xff] %v3378
                  %v3380 = vld [vmem:[%s3178 + $0x640] sm:$0xff]
                  %3381 = vst [vmem:[%s3179 + $0x1130] sm:$0xff] %v3380
                  %v3382 = vld [vmem:[%s3178 + $0x648] sm:$0xff]
                  %3383 = vst [vmem:[%s3179 + $0x1138] sm:$0xff] %v3382
                  %v3384 = vld [vmem:[%s3178 + $0x660] sm:$0xff]
                  %3385 = vst [vmem:[%s3179 + $0x1188] sm:$0xff] %v3384
                  %v3386 = vld [vmem:[%s3178 + $0x668] sm:$0xff]
                  %3387 = vst [vmem:[%s3179 + $0x1190] sm:$0xff] %v3386
                  %v3388 = vld [vmem:[%s3178 + $0x680] sm:$0xff]
                  %3389 = vst [vmem:[%s3179 + $0x11e0] sm:$0xff] %v3388
                  %v3390 = vld [vmem:[%s3178 + $0x688] sm:$0xff]
                  %3391 = vst [vmem:[%s3179 + $0x11e8] sm:$0xff] %v3390
                  %v3392 = vld [vmem:[%s3178 + $0x6a0] sm:$0xff]
                  %3393 = vst [vmem:[%s3179 + $0x1238] sm:$0xff] %v3392
                  %v3394 = vld [vmem:[%s3178 + $0x6a8] sm:$0xff]
                  %3395 = vst [vmem:[%s3179 + $0x1240] sm:$0xff] %v3394
                  %v3396 = vld [vmem:[%s3178 + $0x6c0] sm:$0xff]
                  %3397 = vst [vmem:[%s3179 + $0x1290] sm:$0xff] %v3396
                  %v3398 = vld [vmem:[%s3178 + $0x6c8] sm:$0xff]
                  %3399 = vst [vmem:[%s3179 + $0x1298] sm:$0xff] %v3398
                  %v3400 = vld [vmem:[%s3178 + $0x6e0] sm:$0xff]
                  %3401 = vst [vmem:[%s3179 + $0x12e8] sm:$0xff] %v3400
                  %v3402 = vld [vmem:[%s3178 + $0x6e8] sm:$0xff]
                  %3403 = vst [vmem:[%s3179 + $0x12f0] sm:$0xff] %v3402
                  %s3404 = sadd.s32 1, %s3177
                  %p3405 = scmp.ge.s32.totalorder %s3404, %s3168
                  %s3406 = scalar_select %p3405, 0, %s3404
                  %s3407 = smul.u32 %s3406, 16
                  %s3408 = smul.u32 %s3406, 16
                  %s3409 = scalar_lea.vmem %s3015, %s3407 [#allocation4]
                  %s3410 = scalar_lea.vmem %s3029, %s3408
                $region134: #{_preprocess.3} parent=128 // loop_footer
                  %s3174 = sadd.s32 %s3172, 1
                $region135: #{_preprocess.3} parent=128 // loop_footer_branch
                  %3171 = sbr.rel target = $region131
                $region136: #{_preprocess.3} parent=128 // loop_exit
                  _
                %s3411 = sshrl.u32 %s3167, 1
                %s3412 = sand.u32 %s3167, 1
                %s3413 = smul.u32 %s3411, 2
                %s3414 = smul.u32 128, %s3413
                %s3415 = sshra.s32 %s3414, 4
                %s3416 = scalar_lea.vmem %s3015, %s3415 [#allocation4]
                %s3417 = smul.u32 128, %s3413
                %s3418 = sshra.s32 %s3417, 4
                %s3419 = scalar_lea.vmem %s3029, %s3418
                // While loop
                $region137: #{_preprocess.3} parent=128 // loop_pre_header
                  _
                $region138: #{_preprocess.3} parent=128 // loop_header
                  %s3423 = sphi 0, %s3425
                  %p3424 = scmp.ge.s32.totalorder %s3423, %s3412
                  %s3428 = sphi 0, %s3545
                  %s3429 = sphi %s3416, %s3548
                  %s3430 = sphi %s3419, %s3549
                $region139: #{_preprocess.3} parent=128 // loop_header_branch
                  %3427 = sbr.rel (%p3424) target = $region143
                $region140: #{_preprocess.3} parent=128 // loop_body
                  %v3431 = vld [vmem:[%s3429] sm:$0xff]
                  %3432 = vst [vmem:[%s3430] sm:$0xff] %v3431
                  %v3433 = vld [vmem:[%s3429 + $0x20] sm:$0xff]
                  %3434 = vst [vmem:[%s3430 + $0x58] sm:$0xff] %v3433
                  %v3435 = vld [vmem:[%s3429 + $0x40] sm:$0xff]
                  %3436 = vst [vmem:[%s3430 + $0xb0] sm:$0xff] %v3435
                  %v3437 = vld [vmem:[%s3429 + $0x60] sm:$0xff]
                  %3438 = vst [vmem:[%s3430 + $0x108] sm:$0xff] %v3437
                  %v3439 = vld [vmem:[%s3429 + $0x80] sm:$0xff]
                  %3440 = vst [vmem:[%s3430 + $0x160] sm:$0xff] %v3439
                  %v3441 = vld [vmem:[%s3429 + $0xa0] sm:$0xff]
                  %3442 = vst [vmem:[%s3430 + $0x1b8] sm:$0xff] %v3441
                  %v3443 = vld [vmem:[%s3429 + $0xc0] sm:$0xff]
                  %3444 = vst [vmem:[%s3430 + $0x210] sm:$0xff] %v3443
                  %v3445 = vld [vmem:[%s3429 + $0xe0] sm:$0xff]
                  %3446 = vst [vmem:[%s3430 + $0x268] sm:$0xff] %v3445
                  %v3447 = vld [vmem:[%s3429 + $0x100] sm:$0xff]
                  %3448 = vst [vmem:[%s3430 + $0x2c0] sm:$0xff] %v3447
                  %v3449 = vld [vmem:[%s3429 + $0x120] sm:$0xff]
                  %3450 = vst [vmem:[%s3430 + $0x318] sm:$0xff] %v3449
                  %v3451 = vld [vmem:[%s3429 + $0x140] sm:$0xff]
                  %3452 = vst [vmem:[%s3430 + $0x370] sm:$0xff] %v3451
                  %v3453 = vld [vmem:[%s3429 + $0x160] sm:$0xff]
                  %3454 = vst [vmem:[%s3430 + $0x3c8] sm:$0xff] %v3453
                  %v3455 = vld [vmem:[%s3429 + $0x180] sm:$0xff]
                  %3456 = vst [vmem:[%s3430 + $0x420] sm:$0xff] %v3455
                  %v3457 = vld [vmem:[%s3429 + $0x1a0] sm:$0xff]
                  %3458 = vst [vmem:[%s3430 + $0x478] sm:$0xff] %v3457
                  %v3459 = vld [vmem:[%s3429 + $0x1c0] sm:$0xff]
                  %3460 = vst [vmem:[%s3430 + $0x4d0] sm:$0xff] %v3459
                  %v3461 = vld [vmem:[%s3429 + $0x1e0] sm:$0xff]
                  %3462 = vst [vmem:[%s3430 + $0x528] sm:$0xff] %v3461
                  %v3463 = vld [vmem:[%s3429 + $0x200] sm:$0xff]
                  %3464 = vst [vmem:[%s3430 + $0x580] sm:$0xff] %v3463
                  %v3465 = vld [vmem:[%s3429 + $0x220] sm:$0xff]
                  %3466 = vst [vmem:[%s3430 + $0x5d8] sm:$0xff] %v3465
                  %v3467 = vld [vmem:[%s3429 + $0x240] sm:$0xff]
                  %3468 = vst [vmem:[%s3430 + $0x630] sm:$0xff] %v3467
                  %v3469 = vld [vmem:[%s3429 + $0x260] sm:$0xff]
                  %3470 = vst [vmem:[%s3430 + $0x688] sm:$0xff] %v3469
                  %v3471 = vld [vmem:[%s3429 + $0x280] sm:$0xff]
                  %3472 = vst [vmem:[%s3430 + $0x6e0] sm:$0xff] %v3471
                  %v3473 = vld [vmem:[%s3429 + $0x2a0] sm:$0xff]
                  %3474 = vst [vmem:[%s3430 + $0x738] sm:$0xff] %v3473
                  %v3475 = vld [vmem:[%s3429 + $0x2c0] sm:$0xff]
                  %3476 = vst [vmem:[%s3430 + $0x790] sm:$0xff] %v3475
                  %v3477 = vld [vmem:[%s3429 + $0x2e0] sm:$0xff]
                  %3478 = vst [vmem:[%s3430 + $0x7e8] sm:$0xff] %v3477
                  %v3479 = vld [vmem:[%s3429 + $0x300] sm:$0xff]
                  %3480 = vst [vmem:[%s3430 + $0x840] sm:$0xff] %v3479
                  %v3481 = vld [vmem:[%s3429 + $0x320] sm:$0xff]
                  %3482 = vst [vmem:[%s3430 + $0x898] sm:$0xff] %v3481
                  %v3483 = vld [vmem:[%s3429 + $0x340] sm:$0xff]
                  %3484 = vst [vmem:[%s3430 + $0x8f0] sm:$0xff] %v3483
                  %v3485 = vld [vmem:[%s3429 + $0x360] sm:$0xff]
                  %3486 = vst [vmem:[%s3430 + $0x948] sm:$0xff] %v3485
                  %v3487 = vld [vmem:[%s3429 + $0x380] sm:$0xff]
                  %3488 = vst [vmem:[%s3430 + $0x9a0] sm:$0xff] %v3487
                  %v3489 = vld [vmem:[%s3429 + $0x3a0] sm:$0xff]
                  %3490 = vst [vmem:[%s3430 + $0x9f8] sm:$0xff] %v3489
                  %v3491 = vld [vmem:[%s3429 + $0x3c0] sm:$0xff]
                  %3492 = vst [vmem:[%s3430 + $0xa50] sm:$0xff] %v3491
                  %v3493 = vld [vmem:[%s3429 + $0x3e0] sm:$0xff]
                  %3494 = vst [vmem:[%s3430 + $0xaa8] sm:$0xff] %v3493
                  %v3495 = vld [vmem:[%s3429 + $0x400] sm:$0xff]
                  %3496 = vst [vmem:[%s3430 + $0xb00] sm:$0xff] %v3495
                  %v3497 = vld [vmem:[%s3429 + $0x420] sm:$0xff]
                  %3498 = vst [vmem:[%s3430 + $0xb58] sm:$0xff] %v3497
                  %v3499 = vld [vmem:[%s3429 + $0x440] sm:$0xff]
                  %3500 = vst [vmem:[%s3430 + $0xbb0] sm:$0xff] %v3499
                  %v3501 = vld [vmem:[%s3429 + $0x460] sm:$0xff]
                  %3502 = vst [vmem:[%s3430 + $0xc08] sm:$0xff] %v3501
                  %v3503 = vld [vmem:[%s3429 + $0x480] sm:$0xff]
                  %3504 = vst [vmem:[%s3430 + $0xc60] sm:$0xff] %v3503
                  %v3505 = vld [vmem:[%s3429 + $0x4a0] sm:$0xff]
                  %3506 = vst [vmem:[%s3430 + $0xcb8] sm:$0xff] %v3505
                  %v3507 = vld [vmem:[%s3429 + $0x4c0] sm:$0xff]
                  %3508 = vst [vmem:[%s3430 + $0xd10] sm:$0xff] %v3507
                  %v3509 = vld [vmem:[%s3429 + $0x4e0] sm:$0xff]
                  %3510 = vst [vmem:[%s3430 + $0xd68] sm:$0xff] %v3509
                  %v3511 = vld [vmem:[%s3429 + $0x500] sm:$0xff]
                  %3512 = vst [vmem:[%s3430 + $0xdc0] sm:$0xff] %v3511
                  %v3513 = vld [vmem:[%s3429 + $0x520] sm:$0xff]
                  %3514 = vst [vmem:[%s3430 + $0xe18] sm:$0xff] %v3513
                  %v3515 = vld [vmem:[%s3429 + $0x540] sm:$0xff]
                  %3516 = vst [vmem:[%s3430 + $0xe70] sm:$0xff] %v3515
                  %v3517 = vld [vmem:[%s3429 + $0x560] sm:$0xff]
                  %3518 = vst [vmem:[%s3430 + $0xec8] sm:$0xff] %v3517
                  %v3519 = vld [vmem:[%s3429 + $0x580] sm:$0xff]
                  %3520 = vst [vmem:[%s3430 + $0xf20] sm:$0xff] %v3519
                  %v3521 = vld [vmem:[%s3429 + $0x5a0] sm:$0xff]
                  %3522 = vst [vmem:[%s3430 + $0xf78] sm:$0xff] %v3521
                  %v3523 = vld [vmem:[%s3429 + $0x5c0] sm:$0xff]
                  %3524 = vst [vmem:[%s3430 + $0xfd0] sm:$0xff] %v3523
                  %v3525 = vld [vmem:[%s3429 + $0x5e0] sm:$0xff]
                  %3526 = vst [vmem:[%s3430 + $0x1028] sm:$0xff] %v3525
                  %v3527 = vld [vmem:[%s3429 + $0x600] sm:$0xff]
                  %3528 = vst [vmem:[%s3430 + $0x1080] sm:$0xff] %v3527
                  %v3529 = vld [vmem:[%s3429 + $0x620] sm:$0xff]
                  %3530 = vst [vmem:[%s3430 + $0x10d8] sm:$0xff] %v3529
                  %v3531 = vld [vmem:[%s3429 + $0x640] sm:$0xff]
                  %3532 = vst [vmem:[%s3430 + $0x1130] sm:$0xff] %v3531
                  %v3533 = vld [vmem:[%s3429 + $0x660] sm:$0xff]
                  %3534 = vst [vmem:[%s3430 + $0x1188] sm:$0xff] %v3533
                  %v3535 = vld [vmem:[%s3429 + $0x680] sm:$0xff]
                  %3536 = vst [vmem:[%s3430 + $0x11e0] sm:$0xff] %v3535
                  %v3537 = vld [vmem:[%s3429 + $0x6a0] sm:$0xff]
                  %3538 = vst [vmem:[%s3430 + $0x1238] sm:$0xff] %v3537
                  %v3539 = vld [vmem:[%s3429 + $0x6c0] sm:$0xff]
                  %3540 = vst [vmem:[%s3430 + $0x1290] sm:$0xff] %v3539
                  %v3541 = vld [vmem:[%s3429 + $0x6e0] sm:$0xff]
                  %3542 = vst [vmem:[%s3430 + $0x12e8] sm:$0xff] %v3541
                  %s3543 = sadd.s32 1, %s3428
                  %p3544 = scmp.ge.s32.totalorder %s3543, %s3412
                  %s3545 = scalar_select %p3544, 0, %s3543
                  %s3546 = smul.u32 %s3545, 8
                  %s3547 = smul.u32 %s3545, 8
                  %s3548 = scalar_lea.vmem %s3416, %s3546 [#allocation4]
                  %s3549 = scalar_lea.vmem %s3419, %s3547
                $region141: #{_preprocess.3} parent=128 // loop_footer
                  %s3425 = sadd.s32 %s3423, 1
                $region142: #{_preprocess.3} parent=128 // loop_footer_branch
                  %3422 = sbr.rel target = $region138
                $region143: #{_preprocess.3} parent=128 // loop_exit
                  _
              $region129: #{_preprocess.3} parent=113 // pred_fallthru
                _
              %p3550 = pneg %p3163
              // Predicated region
              $region144: #{_preprocess.3} parent=113 // pred_check
                _
              $region145: #{_preprocess.3} parent=113 // pred_check_branch
                %3552 = sbr.rel (%p3163) target = $region147
              $region146: #{_preprocess.3} parent=113 // pred_region
                %s3553 = sand.u32 %s3030, 7
                %s3554 = ssub.s32 %s3030, %s3553
                %s3555 = scalar_lea.vmem %s3015, %s3554 [#allocation4]
                %s3556 = ssub.s32 %s3030, %s3553
                %s3557 = scalar_lea.vmem %s3029, %s3556
                %s3558 = sshrl.u32 %s3030, 3
                %s3559 = sshrl.u32 %s3558, 1
                // While loop
                $region148: #{_preprocess.3} parent=146 // loop_pre_header
                  _
                $region149: #{_preprocess.3} parent=146 // loop_header
                  %s3563 = sphi 0, %s3565
                  %p3564 = scmp.ge.s32.totalorder %s3563, %s3559
                  %s3568 = sphi 0, %s3797
                  %s3569 = sphi %s3015, %s3800
                  %s3570 = sphi %s3029, %s3801
                $region150: #{_preprocess.3} parent=146 // loop_header_branch
                  %3567 = sbr.rel (%p3564) target = $region154
                $region151: #{_preprocess.3} parent=146 // loop_body
                  %v3571 = vld [vmem:[%s3569] sm:$0xff]
                  %3572 = vst [vmem:[%s3570] sm:$0xff] %v3571
                  %v3573 = vld [vmem:[%s3569 + $0x8] sm:$0xff]
                  %3574 = vst [vmem:[%s3570 + $0x8] sm:$0xff] %v3573
                  %v3575 = vld [vmem:[%s3569 + $0x20] sm:$0xff]
                  %3576 = vst [vmem:[%s3570 + $0x58] sm:$0xff] %v3575
                  %v3577 = vld [vmem:[%s3569 + $0x28] sm:$0xff]
                  %3578 = vst [vmem:[%s3570 + $0x60] sm:$0xff] %v3577
                  %v3579 = vld [vmem:[%s3569 + $0x40] sm:$0xff]
                  %3580 = vst [vmem:[%s3570 + $0xb0] sm:$0xff] %v3579
                  %v3581 = vld [vmem:[%s3569 + $0x48] sm:$0xff]
                  %3582 = vst [vmem:[%s3570 + $0xb8] sm:$0xff] %v3581
                  %v3583 = vld [vmem:[%s3569 + $0x60] sm:$0xff]
                  %3584 = vst [vmem:[%s3570 + $0x108] sm:$0xff] %v3583
                  %v3585 = vld [vmem:[%s3569 + $0x68] sm:$0xff]
                  %3586 = vst [vmem:[%s3570 + $0x110] sm:$0xff] %v3585
                  %v3587 = vld [vmem:[%s3569 + $0x80] sm:$0xff]
                  %3588 = vst [vmem:[%s3570 + $0x160] sm:$0xff] %v3587
                  %v3589 = vld [vmem:[%s3569 + $0x88] sm:$0xff]
                  %3590 = vst [vmem:[%s3570 + $0x168] sm:$0xff] %v3589
                  %v3591 = vld [vmem:[%s3569 + $0xa0] sm:$0xff]
                  %3592 = vst [vmem:[%s3570 + $0x1b8] sm:$0xff] %v3591
                  %v3593 = vld [vmem:[%s3569 + $0xa8] sm:$0xff]
                  %3594 = vst [vmem:[%s3570 + $0x1c0] sm:$0xff] %v3593
                  %v3595 = vld [vmem:[%s3569 + $0xc0] sm:$0xff]
                  %3596 = vst [vmem:[%s3570 + $0x210] sm:$0xff] %v3595
                  %v3597 = vld [vmem:[%s3569 + $0xc8] sm:$0xff]
                  %3598 = vst [vmem:[%s3570 + $0x218] sm:$0xff] %v3597
                  %v3599 = vld [vmem:[%s3569 + $0xe0] sm:$0xff]
                  %3600 = vst [vmem:[%s3570 + $0x268] sm:$0xff] %v3599
                  %v3601 = vld [vmem:[%s3569 + $0xe8] sm:$0xff]
                  %3602 = vst [vmem:[%s3570 + $0x270] sm:$0xff] %v3601
                  %v3603 = vld [vmem:[%s3569 + $0x100] sm:$0xff]
                  %3604 = vst [vmem:[%s3570 + $0x2c0] sm:$0xff] %v3603
                  %v3605 = vld [vmem:[%s3569 + $0x108] sm:$0xff]
                  %3606 = vst [vmem:[%s3570 + $0x2c8] sm:$0xff] %v3605
                  %v3607 = vld [vmem:[%s3569 + $0x120] sm:$0xff]
                  %3608 = vst [vmem:[%s3570 + $0x318] sm:$0xff] %v3607
                  %v3609 = vld [vmem:[%s3569 + $0x128] sm:$0xff]
                  %3610 = vst [vmem:[%s3570 + $0x320] sm:$0xff] %v3609
                  %v3611 = vld [vmem:[%s3569 + $0x140] sm:$0xff]
                  %3612 = vst [vmem:[%s3570 + $0x370] sm:$0xff] %v3611
                  %v3613 = vld [vmem:[%s3569 + $0x148] sm:$0xff]
                  %3614 = vst [vmem:[%s3570 + $0x378] sm:$0xff] %v3613
                  %v3615 = vld [vmem:[%s3569 + $0x160] sm:$0xff]
                  %3616 = vst [vmem:[%s3570 + $0x3c8] sm:$0xff] %v3615
                  %v3617 = vld [vmem:[%s3569 + $0x168] sm:$0xff]
                  %3618 = vst [vmem:[%s3570 + $0x3d0] sm:$0xff] %v3617
                  %v3619 = vld [vmem:[%s3569 + $0x180] sm:$0xff]
                  %3620 = vst [vmem:[%s3570 + $0x420] sm:$0xff] %v3619
                  %v3621 = vld [vmem:[%s3569 + $0x188] sm:$0xff]
                  %3622 = vst [vmem:[%s3570 + $0x428] sm:$0xff] %v3621
                  %v3623 = vld [vmem:[%s3569 + $0x1a0] sm:$0xff]
                  %3624 = vst [vmem:[%s3570 + $0x478] sm:$0xff] %v3623
                  %v3625 = vld [vmem:[%s3569 + $0x1a8] sm:$0xff]
                  %3626 = vst [vmem:[%s3570 + $0x480] sm:$0xff] %v3625
                  %v3627 = vld [vmem:[%s3569 + $0x1c0] sm:$0xff]
                  %3628 = vst [vmem:[%s3570 + $0x4d0] sm:$0xff] %v3627
                  %v3629 = vld [vmem:[%s3569 + $0x1c8] sm:$0xff]
                  %3630 = vst [vmem:[%s3570 + $0x4d8] sm:$0xff] %v3629
                  %v3631 = vld [vmem:[%s3569 + $0x1e0] sm:$0xff]
                  %3632 = vst [vmem:[%s3570 + $0x528] sm:$0xff] %v3631
                  %v3633 = vld [vmem:[%s3569 + $0x1e8] sm:$0xff]
                  %3634 = vst [vmem:[%s3570 + $0x530] sm:$0xff] %v3633
                  %v3635 = vld [vmem:[%s3569 + $0x200] sm:$0xff]
                  %3636 = vst [vmem:[%s3570 + $0x580] sm:$0xff] %v3635
                  %v3637 = vld [vmem:[%s3569 + $0x208] sm:$0xff]
                  %3638 = vst [vmem:[%s3570 + $0x588] sm:$0xff] %v3637
                  %v3639 = vld [vmem:[%s3569 + $0x220] sm:$0xff]
                  %3640 = vst [vmem:[%s3570 + $0x5d8] sm:$0xff] %v3639
                  %v3641 = vld [vmem:[%s3569 + $0x228] sm:$0xff]
                  %3642 = vst [vmem:[%s3570 + $0x5e0] sm:$0xff] %v3641
                  %v3643 = vld [vmem:[%s3569 + $0x240] sm:$0xff]
                  %3644 = vst [vmem:[%s3570 + $0x630] sm:$0xff] %v3643
                  %v3645 = vld [vmem:[%s3569 + $0x248] sm:$0xff]
                  %3646 = vst [vmem:[%s3570 + $0x638] sm:$0xff] %v3645
                  %v3647 = vld [vmem:[%s3569 + $0x260] sm:$0xff]
                  %3648 = vst [vmem:[%s3570 + $0x688] sm:$0xff] %v3647
                  %v3649 = vld [vmem:[%s3569 + $0x268] sm:$0xff]
                  %3650 = vst [vmem:[%s3570 + $0x690] sm:$0xff] %v3649
                  %v3651 = vld [vmem:[%s3569 + $0x280] sm:$0xff]
                  %3652 = vst [vmem:[%s3570 + $0x6e0] sm:$0xff] %v3651
                  %v3653 = vld [vmem:[%s3569 + $0x288] sm:$0xff]
                  %3654 = vst [vmem:[%s3570 + $0x6e8] sm:$0xff] %v3653
                  %v3655 = vld [vmem:[%s3569 + $0x2a0] sm:$0xff]
                  %3656 = vst [vmem:[%s3570 + $0x738] sm:$0xff] %v3655
                  %v3657 = vld [vmem:[%s3569 + $0x2a8] sm:$0xff]
                  %3658 = vst [vmem:[%s3570 + $0x740] sm:$0xff] %v3657
                  %v3659 = vld [vmem:[%s3569 + $0x2c0] sm:$0xff]
                  %3660 = vst [vmem:[%s3570 + $0x790] sm:$0xff] %v3659
                  %v3661 = vld [vmem:[%s3569 + $0x2c8] sm:$0xff]
                  %3662 = vst [vmem:[%s3570 + $0x798] sm:$0xff] %v3661
                  %v3663 = vld [vmem:[%s3569 + $0x2e0] sm:$0xff]
                  %3664 = vst [vmem:[%s3570 + $0x7e8] sm:$0xff] %v3663
                  %v3665 = vld [vmem:[%s3569 + $0x2e8] sm:$0xff]
                  %3666 = vst [vmem:[%s3570 + $0x7f0] sm:$0xff] %v3665
                  %v3667 = vld [vmem:[%s3569 + $0x300] sm:$0xff]
                  %3668 = vst [vmem:[%s3570 + $0x840] sm:$0xff] %v3667
                  %v3669 = vld [vmem:[%s3569 + $0x308] sm:$0xff]
                  %3670 = vst [vmem:[%s3570 + $0x848] sm:$0xff] %v3669
                  %v3671 = vld [vmem:[%s3569 + $0x320] sm:$0xff]
                  %3672 = vst [vmem:[%s3570 + $0x898] sm:$0xff] %v3671
                  %v3673 = vld [vmem:[%s3569 + $0x328] sm:$0xff]
                  %3674 = vst [vmem:[%s3570 + $0x8a0] sm:$0xff] %v3673
                  %v3675 = vld [vmem:[%s3569 + $0x340] sm:$0xff]
                  %3676 = vst [vmem:[%s3570 + $0x8f0] sm:$0xff] %v3675
                  %v3677 = vld [vmem:[%s3569 + $0x348] sm:$0xff]
                  %3678 = vst [vmem:[%s3570 + $0x8f8] sm:$0xff] %v3677
                  %v3679 = vld [vmem:[%s3569 + $0x360] sm:$0xff]
                  %3680 = vst [vmem:[%s3570 + $0x948] sm:$0xff] %v3679
                  %v3681 = vld [vmem:[%s3569 + $0x368] sm:$0xff]
                  %3682 = vst [vmem:[%s3570 + $0x950] sm:$0xff] %v3681
                  %v3683 = vld [vmem:[%s3569 + $0x380] sm:$0xff]
                  %3684 = vst [vmem:[%s3570 + $0x9a0] sm:$0xff] %v3683
                  %v3685 = vld [vmem:[%s3569 + $0x388] sm:$0xff]
                  %3686 = vst [vmem:[%s3570 + $0x9a8] sm:$0xff] %v3685
                  %v3687 = vld [vmem:[%s3569 + $0x3a0] sm:$0xff]
                  %3688 = vst [vmem:[%s3570 + $0x9f8] sm:$0xff] %v3687
                  %v3689 = vld [vmem:[%s3569 + $0x3a8] sm:$0xff]
                  %3690 = vst [vmem:[%s3570 + $0xa00] sm:$0xff] %v3689
                  %v3691 = vld [vmem:[%s3569 + $0x3c0] sm:$0xff]
                  %3692 = vst [vmem:[%s3570 + $0xa50] sm:$0xff] %v3691
                  %v3693 = vld [vmem:[%s3569 + $0x3c8] sm:$0xff]
                  %3694 = vst [vmem:[%s3570 + $0xa58] sm:$0xff] %v3693
                  %v3695 = vld [vmem:[%s3569 + $0x3e0] sm:$0xff]
                  %3696 = vst [vmem:[%s3570 + $0xaa8] sm:$0xff] %v3695
                  %v3697 = vld [vmem:[%s3569 + $0x3e8] sm:$0xff]
                  %3698 = vst [vmem:[%s3570 + $0xab0] sm:$0xff] %v3697
                  %v3699 = vld [vmem:[%s3569 + $0x400] sm:$0xff]
                  %3700 = vst [vmem:[%s3570 + $0xb00] sm:$0xff] %v3699
                  %v3701 = vld [vmem:[%s3569 + $0x408] sm:$0xff]
                  %3702 = vst [vmem:[%s3570 + $0xb08] sm:$0xff] %v3701
                  %v3703 = vld [vmem:[%s3569 + $0x420] sm:$0xff]
                  %3704 = vst [vmem:[%s3570 + $0xb58] sm:$0xff] %v3703
                  %v3705 = vld [vmem:[%s3569 + $0x428] sm:$0xff]
                  %3706 = vst [vmem:[%s3570 + $0xb60] sm:$0xff] %v3705
                  %v3707 = vld [vmem:[%s3569 + $0x440] sm:$0xff]
                  %3708 = vst [vmem:[%s3570 + $0xbb0] sm:$0xff] %v3707
                  %v3709 = vld [vmem:[%s3569 + $0x448] sm:$0xff]
                  %3710 = vst [vmem:[%s3570 + $0xbb8] sm:$0xff] %v3709
                  %v3711 = vld [vmem:[%s3569 + $0x460] sm:$0xff]
                  %3712 = vst [vmem:[%s3570 + $0xc08] sm:$0xff] %v3711
                  %v3713 = vld [vmem:[%s3569 + $0x468] sm:$0xff]
                  %3714 = vst [vmem:[%s3570 + $0xc10] sm:$0xff] %v3713
                  %v3715 = vld [vmem:[%s3569 + $0x480] sm:$0xff]
                  %3716 = vst [vmem:[%s3570 + $0xc60] sm:$0xff] %v3715
                  %v3717 = vld [vmem:[%s3569 + $0x488] sm:$0xff]
                  %3718 = vst [vmem:[%s3570 + $0xc68] sm:$0xff] %v3717
                  %v3719 = vld [vmem:[%s3569 + $0x4a0] sm:$0xff]
                  %3720 = vst [vmem:[%s3570 + $0xcb8] sm:$0xff] %v3719
                  %v3721 = vld [vmem:[%s3569 + $0x4a8] sm:$0xff]
                  %3722 = vst [vmem:[%s3570 + $0xcc0] sm:$0xff] %v3721
                  %v3723 = vld [vmem:[%s3569 + $0x4c0] sm:$0xff]
                  %3724 = vst [vmem:[%s3570 + $0xd10] sm:$0xff] %v3723
                  %v3725 = vld [vmem:[%s3569 + $0x4c8] sm:$0xff]
                  %3726 = vst [vmem:[%s3570 + $0xd18] sm:$0xff] %v3725
                  %v3727 = vld [vmem:[%s3569 + $0x4e0] sm:$0xff]
                  %3728 = vst [vmem:[%s3570 + $0xd68] sm:$0xff] %v3727
                  %v3729 = vld [vmem:[%s3569 + $0x4e8] sm:$0xff]
                  %3730 = vst [vmem:[%s3570 + $0xd70] sm:$0xff] %v3729
                  %v3731 = vld [vmem:[%s3569 + $0x500] sm:$0xff]
                  %3732 = vst [vmem:[%s3570 + $0xdc0] sm:$0xff] %v3731
                  %v3733 = vld [vmem:[%s3569 + $0x508] sm:$0xff]
                  %3734 = vst [vmem:[%s3570 + $0xdc8] sm:$0xff] %v3733
                  %v3735 = vld [vmem:[%s3569 + $0x520] sm:$0xff]
                  %3736 = vst [vmem:[%s3570 + $0xe18] sm:$0xff] %v3735
                  %v3737 = vld [vmem:[%s3569 + $0x528] sm:$0xff]
                  %3738 = vst [vmem:[%s3570 + $0xe20] sm:$0xff] %v3737
                  %v3739 = vld [vmem:[%s3569 + $0x540] sm:$0xff]
                  %3740 = vst [vmem:[%s3570 + $0xe70] sm:$0xff] %v3739
                  %v3741 = vld [vmem:[%s3569 + $0x548] sm:$0xff]
                  %3742 = vst [vmem:[%s3570 + $0xe78] sm:$0xff] %v3741
                  %v3743 = vld [vmem:[%s3569 + $0x560] sm:$0xff]
                  %3744 = vst [vmem:[%s3570 + $0xec8] sm:$0xff] %v3743
                  %v3745 = vld [vmem:[%s3569 + $0x568] sm:$0xff]
                  %3746 = vst [vmem:[%s3570 + $0xed0] sm:$0xff] %v3745
                  %v3747 = vld [vmem:[%s3569 + $0x580] sm:$0xff]
                  %3748 = vst [vmem:[%s3570 + $0xf20] sm:$0xff] %v3747
                  %v3749 = vld [vmem:[%s3569 + $0x588] sm:$0xff]
                  %3750 = vst [vmem:[%s3570 + $0xf28] sm:$0xff] %v3749
                  %v3751 = vld [vmem:[%s3569 + $0x5a0] sm:$0xff]
                  %3752 = vst [vmem:[%s3570 + $0xf78] sm:$0xff] %v3751
                  %v3753 = vld [vmem:[%s3569 + $0x5a8] sm:$0xff]
                  %3754 = vst [vmem:[%s3570 + $0xf80] sm:$0xff] %v3753
                  %v3755 = vld [vmem:[%s3569 + $0x5c0] sm:$0xff]
                  %3756 = vst [vmem:[%s3570 + $0xfd0] sm:$0xff] %v3755
                  %v3757 = vld [vmem:[%s3569 + $0x5c8] sm:$0xff]
                  %3758 = vst [vmem:[%s3570 + $0xfd8] sm:$0xff] %v3757
                  %v3759 = vld [vmem:[%s3569 + $0x5e0] sm:$0xff]
                  %3760 = vst [vmem:[%s3570 + $0x1028] sm:$0xff] %v3759
                  %v3761 = vld [vmem:[%s3569 + $0x5e8] sm:$0xff]
                  %3762 = vst [vmem:[%s3570 + $0x1030] sm:$0xff] %v3761
                  %v3763 = vld [vmem:[%s3569 + $0x600] sm:$0xff]
                  %3764 = vst [vmem:[%s3570 + $0x1080] sm:$0xff] %v3763
                  %v3765 = vld [vmem:[%s3569 + $0x608] sm:$0xff]
                  %3766 = vst [vmem:[%s3570 + $0x1088] sm:$0xff] %v3765
                  %v3767 = vld [vmem:[%s3569 + $0x620] sm:$0xff]
                  %3768 = vst [vmem:[%s3570 + $0x10d8] sm:$0xff] %v3767
                  %v3769 = vld [vmem:[%s3569 + $0x628] sm:$0xff]
                  %3770 = vst [vmem:[%s3570 + $0x10e0] sm:$0xff] %v3769
                  %v3771 = vld [vmem:[%s3569 + $0x640] sm:$0xff]
                  %3772 = vst [vmem:[%s3570 + $0x1130] sm:$0xff] %v3771
                  %v3773 = vld [vmem:[%s3569 + $0x648] sm:$0xff]
                  %3774 = vst [vmem:[%s3570 + $0x1138] sm:$0xff] %v3773
                  %v3775 = vld [vmem:[%s3569 + $0x660] sm:$0xff]
                  %3776 = vst [vmem:[%s3570 + $0x1188] sm:$0xff] %v3775
                  %v3777 = vld [vmem:[%s3569 + $0x668] sm:$0xff]
                  %3778 = vst [vmem:[%s3570 + $0x1190] sm:$0xff] %v3777
                  %v3779 = vld [vmem:[%s3569 + $0x680] sm:$0xff]
                  %3780 = vst [vmem:[%s3570 + $0x11e0] sm:$0xff] %v3779
                  %v3781 = vld [vmem:[%s3569 + $0x688] sm:$0xff]
                  %3782 = vst [vmem:[%s3570 + $0x11e8] sm:$0xff] %v3781
                  %v3783 = vld [vmem:[%s3569 + $0x6a0] sm:$0xff]
                  %3784 = vst [vmem:[%s3570 + $0x1238] sm:$0xff] %v3783
                  %v3785 = vld [vmem:[%s3569 + $0x6a8] sm:$0xff]
                  %3786 = vst [vmem:[%s3570 + $0x1240] sm:$0xff] %v3785
                  %v3787 = vld [vmem:[%s3569 + $0x6c0] sm:$0xff]
                  %3788 = vst [vmem:[%s3570 + $0x1290] sm:$0xff] %v3787
                  %v3789 = vld [vmem:[%s3569 + $0x6c8] sm:$0xff]
                  %3790 = vst [vmem:[%s3570 + $0x1298] sm:$0xff] %v3789
                  %v3791 = vld [vmem:[%s3569 + $0x6e0] sm:$0xff]
                  %3792 = vst [vmem:[%s3570 + $0x12e8] sm:$0xff] %v3791
                  %v3793 = vld [vmem:[%s3569 + $0x6e8] sm:$0xff]
                  %3794 = vst [vmem:[%s3570 + $0x12f0] sm:$0xff] %v3793
                  %s3795 = sadd.s32 1, %s3568
                  %p3796 = scmp.ge.s32.totalorder %s3795, %s3559
                  %s3797 = scalar_select %p3796, 0, %s3795
                  %s3798 = smul.u32 %s3797, 16
                  %s3799 = smul.u32 %s3797, 16
                  %s3800 = scalar_lea.vmem %s3015, %s3798 [#allocation4]
                  %s3801 = scalar_lea.vmem %s3029, %s3799
                $region152: #{_preprocess.3} parent=146 // loop_footer
                  %s3565 = sadd.s32 %s3563, 1
                $region153: #{_preprocess.3} parent=146 // loop_footer_branch
                  %3562 = sbr.rel target = $region149
                $region154: #{_preprocess.3} parent=146 // loop_exit
                  _
                %s3802 = sshrl.u32 %s3558, 1
                %s3803 = sand.u32 %s3558, 1
                %s3804 = smul.u32 %s3802, 2
                %s3805 = smul.u32 128, %s3804
                %s3806 = sshra.s32 %s3805, 4
                %s3807 = scalar_lea.vmem %s3015, %s3806 [#allocation4]
                %s3808 = smul.u32 128, %s3804
                %s3809 = sshra.s32 %s3808, 4
                %s3810 = scalar_lea.vmem %s3029, %s3809
                // While loop
                $region155: #{_preprocess.3} parent=146 // loop_pre_header
                  _
                $region156: #{_preprocess.3} parent=146 // loop_header
                  %s3814 = sphi 0, %s3816
                  %p3815 = scmp.ge.s32.totalorder %s3814, %s3803
                  %s3819 = sphi 0, %s3936
                  %s3820 = sphi %s3807, %s3939
                  %s3821 = sphi %s3810, %s3940
                $region157: #{_preprocess.3} parent=146 // loop_header_branch
                  %3818 = sbr.rel (%p3815) target = $region161
                $region158: #{_preprocess.3} parent=146 // loop_body
                  %v3822 = vld [vmem:[%s3820] sm:$0xff]
                  %3823 = vst [vmem:[%s3821] sm:$0xff] %v3822
                  %v3824 = vld [vmem:[%s3820 + $0x20] sm:$0xff]
                  %3825 = vst [vmem:[%s3821 + $0x58] sm:$0xff] %v3824
                  %v3826 = vld [vmem:[%s3820 + $0x40] sm:$0xff]
                  %3827 = vst [vmem:[%s3821 + $0xb0] sm:$0xff] %v3826
                  %v3828 = vld [vmem:[%s3820 + $0x60] sm:$0xff]
                  %3829 = vst [vmem:[%s3821 + $0x108] sm:$0xff] %v3828
                  %v3830 = vld [vmem:[%s3820 + $0x80] sm:$0xff]
                  %3831 = vst [vmem:[%s3821 + $0x160] sm:$0xff] %v3830
                  %v3832 = vld [vmem:[%s3820 + $0xa0] sm:$0xff]
                  %3833 = vst [vmem:[%s3821 + $0x1b8] sm:$0xff] %v3832
                  %v3834 = vld [vmem:[%s3820 + $0xc0] sm:$0xff]
                  %3835 = vst [vmem:[%s3821 + $0x210] sm:$0xff] %v3834
                  %v3836 = vld [vmem:[%s3820 + $0xe0] sm:$0xff]
                  %3837 = vst [vmem:[%s3821 + $0x268] sm:$0xff] %v3836
                  %v3838 = vld [vmem:[%s3820 + $0x100] sm:$0xff]
                  %3839 = vst [vmem:[%s3821 + $0x2c0] sm:$0xff] %v3838
                  %v3840 = vld [vmem:[%s3820 + $0x120] sm:$0xff]
                  %3841 = vst [vmem:[%s3821 + $0x318] sm:$0xff] %v3840
                  %v3842 = vld [vmem:[%s3820 + $0x140] sm:$0xff]
                  %3843 = vst [vmem:[%s3821 + $0x370] sm:$0xff] %v3842
                  %v3844 = vld [vmem:[%s3820 + $0x160] sm:$0xff]
                  %3845 = vst [vmem:[%s3821 + $0x3c8] sm:$0xff] %v3844
                  %v3846 = vld [vmem:[%s3820 + $0x180] sm:$0xff]
                  %3847 = vst [vmem:[%s3821 + $0x420] sm:$0xff] %v3846
                  %v3848 = vld [vmem:[%s3820 + $0x1a0] sm:$0xff]
                  %3849 = vst [vmem:[%s3821 + $0x478] sm:$0xff] %v3848
                  %v3850 = vld [vmem:[%s3820 + $0x1c0] sm:$0xff]
                  %3851 = vst [vmem:[%s3821 + $0x4d0] sm:$0xff] %v3850
                  %v3852 = vld [vmem:[%s3820 + $0x1e0] sm:$0xff]
                  %3853 = vst [vmem:[%s3821 + $0x528] sm:$0xff] %v3852
                  %v3854 = vld [vmem:[%s3820 + $0x200] sm:$0xff]
                  %3855 = vst [vmem:[%s3821 + $0x580] sm:$0xff] %v3854
                  %v3856 = vld [vmem:[%s3820 + $0x220] sm:$0xff]
                  %3857 = vst [vmem:[%s3821 + $0x5d8] sm:$0xff] %v3856
                  %v3858 = vld [vmem:[%s3820 + $0x240] sm:$0xff]
                  %3859 = vst [vmem:[%s3821 + $0x630] sm:$0xff] %v3858
                  %v3860 = vld [vmem:[%s3820 + $0x260] sm:$0xff]
                  %3861 = vst [vmem:[%s3821 + $0x688] sm:$0xff] %v3860
                  %v3862 = vld [vmem:[%s3820 + $0x280] sm:$0xff]
                  %3863 = vst [vmem:[%s3821 + $0x6e0] sm:$0xff] %v3862
                  %v3864 = vld [vmem:[%s3820 + $0x2a0] sm:$0xff]
                  %3865 = vst [vmem:[%s3821 + $0x738] sm:$0xff] %v3864
                  %v3866 = vld [vmem:[%s3820 + $0x2c0] sm:$0xff]
                  %3867 = vst [vmem:[%s3821 + $0x790] sm:$0xff] %v3866
                  %v3868 = vld [vmem:[%s3820 + $0x2e0] sm:$0xff]
                  %3869 = vst [vmem:[%s3821 + $0x7e8] sm:$0xff] %v3868
                  %v3870 = vld [vmem:[%s3820 + $0x300] sm:$0xff]
                  %3871 = vst [vmem:[%s3821 + $0x840] sm:$0xff] %v3870
                  %v3872 = vld [vmem:[%s3820 + $0x320] sm:$0xff]
                  %3873 = vst [vmem:[%s3821 + $0x898] sm:$0xff] %v3872
                  %v3874 = vld [vmem:[%s3820 + $0x340] sm:$0xff]
                  %3875 = vst [vmem:[%s3821 + $0x8f0] sm:$0xff] %v3874
                  %v3876 = vld [vmem:[%s3820 + $0x360] sm:$0xff]
                  %3877 = vst [vmem:[%s3821 + $0x948] sm:$0xff] %v3876
                  %v3878 = vld [vmem:[%s3820 + $0x380] sm:$0xff]
                  %3879 = vst [vmem:[%s3821 + $0x9a0] sm:$0xff] %v3878
                  %v3880 = vld [vmem:[%s3820 + $0x3a0] sm:$0xff]
                  %3881 = vst [vmem:[%s3821 + $0x9f8] sm:$0xff] %v3880
                  %v3882 = vld [vmem:[%s3820 + $0x3c0] sm:$0xff]
                  %3883 = vst [vmem:[%s3821 + $0xa50] sm:$0xff] %v3882
                  %v3884 = vld [vmem:[%s3820 + $0x3e0] sm:$0xff]
                  %3885 = vst [vmem:[%s3821 + $0xaa8] sm:$0xff] %v3884
                  %v3886 = vld [vmem:[%s3820 + $0x400] sm:$0xff]
                  %3887 = vst [vmem:[%s3821 + $0xb00] sm:$0xff] %v3886
                  %v3888 = vld [vmem:[%s3820 + $0x420] sm:$0xff]
                  %3889 = vst [vmem:[%s3821 + $0xb58] sm:$0xff] %v3888
                  %v3890 = vld [vmem:[%s3820 + $0x440] sm:$0xff]
                  %3891 = vst [vmem:[%s3821 + $0xbb0] sm:$0xff] %v3890
                  %v3892 = vld [vmem:[%s3820 + $0x460] sm:$0xff]
                  %3893 = vst [vmem:[%s3821 + $0xc08] sm:$0xff] %v3892
                  %v3894 = vld [vmem:[%s3820 + $0x480] sm:$0xff]
                  %3895 = vst [vmem:[%s3821 + $0xc60] sm:$0xff] %v3894
                  %v3896 = vld [vmem:[%s3820 + $0x4a0] sm:$0xff]
                  %3897 = vst [vmem:[%s3821 + $0xcb8] sm:$0xff] %v3896
                  %v3898 = vld [vmem:[%s3820 + $0x4c0] sm:$0xff]
                  %3899 = vst [vmem:[%s3821 + $0xd10] sm:$0xff] %v3898
                  %v3900 = vld [vmem:[%s3820 + $0x4e0] sm:$0xff]
                  %3901 = vst [vmem:[%s3821 + $0xd68] sm:$0xff] %v3900
                  %v3902 = vld [vmem:[%s3820 + $0x500] sm:$0xff]
                  %3903 = vst [vmem:[%s3821 + $0xdc0] sm:$0xff] %v3902
                  %v3904 = vld [vmem:[%s3820 + $0x520] sm:$0xff]
                  %3905 = vst [vmem:[%s3821 + $0xe18] sm:$0xff] %v3904
                  %v3906 = vld [vmem:[%s3820 + $0x540] sm:$0xff]
                  %3907 = vst [vmem:[%s3821 + $0xe70] sm:$0xff] %v3906
                  %v3908 = vld [vmem:[%s3820 + $0x560] sm:$0xff]
                  %3909 = vst [vmem:[%s3821 + $0xec8] sm:$0xff] %v3908
                  %v3910 = vld [vmem:[%s3820 + $0x580] sm:$0xff]
                  %3911 = vst [vmem:[%s3821 + $0xf20] sm:$0xff] %v3910
                  %v3912 = vld [vmem:[%s3820 + $0x5a0] sm:$0xff]
                  %3913 = vst [vmem:[%s3821 + $0xf78] sm:$0xff] %v3912
                  %v3914 = vld [vmem:[%s3820 + $0x5c0] sm:$0xff]
                  %3915 = vst [vmem:[%s3821 + $0xfd0] sm:$0xff] %v3914
                  %v3916 = vld [vmem:[%s3820 + $0x5e0] sm:$0xff]
                  %3917 = vst [vmem:[%s3821 + $0x1028] sm:$0xff] %v3916
                  %v3918 = vld [vmem:[%s3820 + $0x600] sm:$0xff]
                  %3919 = vst [vmem:[%s3821 + $0x1080] sm:$0xff] %v3918
                  %v3920 = vld [vmem:[%s3820 + $0x620] sm:$0xff]
                  %3921 = vst [vmem:[%s3821 + $0x10d8] sm:$0xff] %v3920
                  %v3922 = vld [vmem:[%s3820 + $0x640] sm:$0xff]
                  %3923 = vst [vmem:[%s3821 + $0x1130] sm:$0xff] %v3922
                  %v3924 = vld [vmem:[%s3820 + $0x660] sm:$0xff]
                  %3925 = vst [vmem:[%s3821 + $0x1188] sm:$0xff] %v3924
                  %v3926 = vld [vmem:[%s3820 + $0x680] sm:$0xff]
                  %3927 = vst [vmem:[%s3821 + $0x11e0] sm:$0xff] %v3926
                  %v3928 = vld [vmem:[%s3820 + $0x6a0] sm:$0xff]
                  %3929 = vst [vmem:[%s3821 + $0x1238] sm:$0xff] %v3928
                  %v3930 = vld [vmem:[%s3820 + $0x6c0] sm:$0xff]
                  %3931 = vst [vmem:[%s3821 + $0x1290] sm:$0xff] %v3930
                  %v3932 = vld [vmem:[%s3820 + $0x6e0] sm:$0xff]
                  %3933 = vst [vmem:[%s3821 + $0x12e8] sm:$0xff] %v3932
                  %s3934 = sadd.s32 1, %s3819
                  %p3935 = scmp.ge.s32.totalorder %s3934, %s3803
                  %s3936 = scalar_select %p3935, 0, %s3934
                  %s3937 = smul.u32 %s3936, 8
                  %s3938 = smul.u32 %s3936, 8
                  %s3939 = scalar_lea.vmem %s3807, %s3937 [#allocation4]
                  %s3940 = scalar_lea.vmem %s3810, %s3938
                $region159: #{_preprocess.3} parent=146 // loop_footer
                  %s3816 = sadd.s32 %s3814, 1
                $region160: #{_preprocess.3} parent=146 // loop_footer_branch
                  %3813 = sbr.rel target = $region156
                $region161: #{_preprocess.3} parent=146 // loop_exit
                  _
                %s3941 = sshllo.u32 0, %s3553
                loop: start=0, step=1, limit=1
                $region162: #{_preprocess.3} parent=146 // loop_pre_header
                  _
                $region163: #{_preprocess.3} parent=146 // loop_header
                  %s3943 = sphi 0, %s3947
                  %p3944 = scmp.ge.s32.totalorder %s3943, 1
                  %s3948 = sphi %s3555, %s3555
                  %s3949 = sphi %s3557, %s3557
                $region164: #{_preprocess.3} parent=146 // loop_header_branch
                  %3946 = sbr.rel (%p3944) target = $region168
                $region165: #{_preprocess.3} parent=146 // loop_body
                  %v3950 = vld [vmem:[%s3948] sm:%s3941]
                  %3951 = vst [vmem:[%s3949] sm:%s3941] %v3950
                  %v3952 = vld [vmem:[%s3948 + $0x20] sm:%s3941]
                  %3953 = vst [vmem:[%s3949 + $0x58] sm:%s3941] %v3952
                  %v3954 = vld [vmem:[%s3948 + $0x40] sm:%s3941]
                  %3955 = vst [vmem:[%s3949 + $0xb0] sm:%s3941] %v3954
                  %v3956 = vld [vmem:[%s3948 + $0x60] sm:%s3941]
                  %3957 = vst [vmem:[%s3949 + $0x108] sm:%s3941] %v3956
                  %v3958 = vld [vmem:[%s3948 + $0x80] sm:%s3941]
                  %3959 = vst [vmem:[%s3949 + $0x160] sm:%s3941] %v3958
                  %v3960 = vld [vmem:[%s3948 + $0xa0] sm:%s3941]
                  %3961 = vst [vmem:[%s3949 + $0x1b8] sm:%s3941] %v3960
                  %v3962 = vld [vmem:[%s3948 + $0xc0] sm:%s3941]
                  %3963 = vst [vmem:[%s3949 + $0x210] sm:%s3941] %v3962
                  %v3964 = vld [vmem:[%s3948 + $0xe0] sm:%s3941]
                  %3965 = vst [vmem:[%s3949 + $0x268] sm:%s3941] %v3964
                  %v3966 = vld [vmem:[%s3948 + $0x100] sm:%s3941]
                  %3967 = vst [vmem:[%s3949 + $0x2c0] sm:%s3941] %v3966
                  %v3968 = vld [vmem:[%s3948 + $0x120] sm:%s3941]
                  %3969 = vst [vmem:[%s3949 + $0x318] sm:%s3941] %v3968
                  %v3970 = vld [vmem:[%s3948 + $0x140] sm:%s3941]
                  %3971 = vst [vmem:[%s3949 + $0x370] sm:%s3941] %v3970
                  %v3972 = vld [vmem:[%s3948 + $0x160] sm:%s3941]
                  %3973 = vst [vmem:[%s3949 + $0x3c8] sm:%s3941] %v3972
                  %v3974 = vld [vmem:[%s3948 + $0x180] sm:%s3941]
                  %3975 = vst [vmem:[%s3949 + $0x420] sm:%s3941] %v3974
                  %v3976 = vld [vmem:[%s3948 + $0x1a0] sm:%s3941]
                  %3977 = vst [vmem:[%s3949 + $0x478] sm:%s3941] %v3976
                  %v3978 = vld [vmem:[%s3948 + $0x1c0] sm:%s3941]
                  %3979 = vst [vmem:[%s3949 + $0x4d0] sm:%s3941] %v3978
                  %v3980 = vld [vmem:[%s3948 + $0x1e0] sm:%s3941]
                  %3981 = vst [vmem:[%s3949 + $0x528] sm:%s3941] %v3980
                  %v3982 = vld [vmem:[%s3948 + $0x200] sm:%s3941]
                  %3983 = vst [vmem:[%s3949 + $0x580] sm:%s3941] %v3982
                  %v3984 = vld [vmem:[%s3948 + $0x220] sm:%s3941]
                  %3985 = vst [vmem:[%s3949 + $0x5d8] sm:%s3941] %v3984
                  %v3986 = vld [vmem:[%s3948 + $0x240] sm:%s3941]
                  %3987 = vst [vmem:[%s3949 + $0x630] sm:%s3941] %v3986
                  %v3988 = vld [vmem:[%s3948 + $0x260] sm:%s3941]
                  %3989 = vst [vmem:[%s3949 + $0x688] sm:%s3941] %v3988
                  %v3990 = vld [vmem:[%s3948 + $0x280] sm:%s3941]
                  %3991 = vst [vmem:[%s3949 + $0x6e0] sm:%s3941] %v3990
                  %v3992 = vld [vmem:[%s3948 + $0x2a0] sm:%s3941]
                  %3993 = vst [vmem:[%s3949 + $0x738] sm:%s3941] %v3992
                  %v3994 = vld [vmem:[%s3948 + $0x2c0] sm:%s3941]
                  %3995 = vst [vmem:[%s3949 + $0x790] sm:%s3941] %v3994
                  %v3996 = vld [vmem:[%s3948 + $0x2e0] sm:%s3941]
                  %3997 = vst [vmem:[%s3949 + $0x7e8] sm:%s3941] %v3996
                  %v3998 = vld [vmem:[%s3948 + $0x300] sm:%s3941]
                  %3999 = vst [vmem:[%s3949 + $0x840] sm:%s3941] %v3998
                  %v4000 = vld [vmem:[%s3948 + $0x320] sm:%s3941]
                  %4001 = vst [vmem:[%s3949 + $0x898] sm:%s3941] %v4000
                  %v4002 = vld [vmem:[%s3948 + $0x340] sm:%s3941]
                  %4003 = vst [vmem:[%s3949 + $0x8f0] sm:%s3941] %v4002
                  %v4004 = vld [vmem:[%s3948 + $0x360] sm:%s3941]
                  %4005 = vst [vmem:[%s3949 + $0x948] sm:%s3941] %v4004
                  %v4006 = vld [vmem:[%s3948 + $0x380] sm:%s3941]
                  %4007 = vst [vmem:[%s3949 + $0x9a0] sm:%s3941] %v4006
                  %v4008 = vld [vmem:[%s3948 + $0x3a0] sm:%s3941]
                  %4009 = vst [vmem:[%s3949 + $0x9f8] sm:%s3941] %v4008
                  %v4010 = vld [vmem:[%s3948 + $0x3c0] sm:%s3941]
                  %4011 = vst [vmem:[%s3949 + $0xa50] sm:%s3941] %v4010
                  %v4012 = vld [vmem:[%s3948 + $0x3e0] sm:%s3941]
                  %4013 = vst [vmem:[%s3949 + $0xaa8] sm:%s3941] %v4012
                  %v4014 = vld [vmem:[%s3948 + $0x400] sm:%s3941]
                  %4015 = vst [vmem:[%s3949 + $0xb00] sm:%s3941] %v4014
                  %v4016 = vld [vmem:[%s3948 + $0x420] sm:%s3941]
                  %4017 = vst [vmem:[%s3949 + $0xb58] sm:%s3941] %v4016
                  %v4018 = vld [vmem:[%s3948 + $0x440] sm:%s3941]
                  %4019 = vst [vmem:[%s3949 + $0xbb0] sm:%s3941] %v4018
                  %v4020 = vld [vmem:[%s3948 + $0x460] sm:%s3941]
                  %4021 = vst [vmem:[%s3949 + $0xc08] sm:%s3941] %v4020
                  %v4022 = vld [vmem:[%s3948 + $0x480] sm:%s3941]
                  %4023 = vst [vmem:[%s3949 + $0xc60] sm:%s3941] %v4022
                  %v4024 = vld [vmem:[%s3948 + $0x4a0] sm:%s3941]
                  %4025 = vst [vmem:[%s3949 + $0xcb8] sm:%s3941] %v4024
                  %v4026 = vld [vmem:[%s3948 + $0x4c0] sm:%s3941]
                  %4027 = vst [vmem:[%s3949 + $0xd10] sm:%s3941] %v4026
                  %v4028 = vld [vmem:[%s3948 + $0x4e0] sm:%s3941]
                  %4029 = vst [vmem:[%s3949 + $0xd68] sm:%s3941] %v4028
                  %v4030 = vld [vmem:[%s3948 + $0x500] sm:%s3941]
                  %4031 = vst [vmem:[%s3949 + $0xdc0] sm:%s3941] %v4030
                  %v4032 = vld [vmem:[%s3948 + $0x520] sm:%s3941]
                  %4033 = vst [vmem:[%s3949 + $0xe18] sm:%s3941] %v4032
                  %v4034 = vld [vmem:[%s3948 + $0x540] sm:%s3941]
                  %4035 = vst [vmem:[%s3949 + $0xe70] sm:%s3941] %v4034
                  %v4036 = vld [vmem:[%s3948 + $0x560] sm:%s3941]
                  %4037 = vst [vmem:[%s3949 + $0xec8] sm:%s3941] %v4036
                  %v4038 = vld [vmem:[%s3948 + $0x580] sm:%s3941]
                  %4039 = vst [vmem:[%s3949 + $0xf20] sm:%s3941] %v4038
                  %v4040 = vld [vmem:[%s3948 + $0x5a0] sm:%s3941]
                  %4041 = vst [vmem:[%s3949 + $0xf78] sm:%s3941] %v4040
                  %v4042 = vld [vmem:[%s3948 + $0x5c0] sm:%s3941]
                  %4043 = vst [vmem:[%s3949 + $0xfd0] sm:%s3941] %v4042
                  %v4044 = vld [vmem:[%s3948 + $0x5e0] sm:%s3941]
                  %4045 = vst [vmem:[%s3949 + $0x1028] sm:%s3941] %v4044
                  %v4046 = vld [vmem:[%s3948 + $0x600] sm:%s3941]
                  %4047 = vst [vmem:[%s3949 + $0x1080] sm:%s3941] %v4046
                  %v4048 = vld [vmem:[%s3948 + $0x620] sm:%s3941]
                  %4049 = vst [vmem:[%s3949 + $0x10d8] sm:%s3941] %v4048
                  %v4050 = vld [vmem:[%s3948 + $0x640] sm:%s3941]
                  %4051 = vst [vmem:[%s3949 + $0x1130] sm:%s3941] %v4050
                  %v4052 = vld [vmem:[%s3948 + $0x660] sm:%s3941]
                  %4053 = vst [vmem:[%s3949 + $0x1188] sm:%s3941] %v4052
                  %v4054 = vld [vmem:[%s3948 + $0x680] sm:%s3941]
                  %4055 = vst [vmem:[%s3949 + $0x11e0] sm:%s3941] %v4054
                  %v4056 = vld [vmem:[%s3948 + $0x6a0] sm:%s3941]
                  %4057 = vst [vmem:[%s3949 + $0x1238] sm:%s3941] %v4056
                  %v4058 = vld [vmem:[%s3948 + $0x6c0] sm:%s3941]
                  %4059 = vst [vmem:[%s3949 + $0x1290] sm:%s3941] %v4058
                  %v4060 = vld [vmem:[%s3948 + $0x6e0] sm:%s3941]
                  %4061 = vst [vmem:[%s3949 + $0x12e8] sm:%s3941] %v4060
                $region166: #{_preprocess.3} parent=146 // loop_footer
                  %s3947 = sadd.s32 1, %s3943
                $region167: #{_preprocess.3} parent=146 // loop_footer_branch
                  %3942 = sbr.rel target = $region163
                $region168: #{_preprocess.3} parent=146 // loop_exit
                  _
              $region147: #{_preprocess.3} parent=113 // pred_fallthru
                _
            $region114: #{_preprocess.3} parent=109 // pred_fallthru
              _
            // Predicated region
            $region115: #{_preprocess.3} parent=109 // pred_check
              %p3038 = pneg %p3034
            $region116: #{_preprocess.3} parent=109 // pred_check_branch
              %3040 = sbr.rel (%p3038) target = $region118
            $region117: #{_preprocess.3} parent=109 // pred_region
              %s3041 = sshllo.u32 0, %s3030
              loop: start=0, step=1, limit=1
              $region119: #{_preprocess.3} parent=117 // loop_pre_header
                _
              $region120: #{_preprocess.3} parent=117 // loop_header
                %s3043 = sphi 0, %s3047
                %p3044 = scmp.ge.s32.totalorder %s3043, 1
                %s3048 = sphi %s3015, %s3015
                %s3049 = sphi %s3029, %s3029
              $region121: #{_preprocess.3} parent=117 // loop_header_branch
                %3046 = sbr.rel (%p3044) target = $region125
              $region122: #{_preprocess.3} parent=117 // loop_body
                %v3050 = vld [vmem:[%s3048] sm:%s3041]
                %3051 = vst [vmem:[%s3049] sm:%s3041] %v3050
                %v3052 = vld [vmem:[%s3048 + $0x20] sm:%s3041]
                %3053 = vst [vmem:[%s3049 + $0x58] sm:%s3041] %v3052
                %v3054 = vld [vmem:[%s3048 + $0x40] sm:%s3041]
                %3055 = vst [vmem:[%s3049 + $0xb0] sm:%s3041] %v3054
                %v3056 = vld [vmem:[%s3048 + $0x60] sm:%s3041]
                %3057 = vst [vmem:[%s3049 + $0x108] sm:%s3041] %v3056
                %v3058 = vld [vmem:[%s3048 + $0x80] sm:%s3041]
                %3059 = vst [vmem:[%s3049 + $0x160] sm:%s3041] %v3058
                %v3060 = vld [vmem:[%s3048 + $0xa0] sm:%s3041]
                %3061 = vst [vmem:[%s3049 + $0x1b8] sm:%s3041] %v3060
                %v3062 = vld [vmem:[%s3048 + $0xc0] sm:%s3041]
                %3063 = vst [vmem:[%s3049 + $0x210] sm:%s3041] %v3062
                %v3064 = vld [vmem:[%s3048 + $0xe0] sm:%s3041]
                %3065 = vst [vmem:[%s3049 + $0x268] sm:%s3041] %v3064
                %v3066 = vld [vmem:[%s3048 + $0x100] sm:%s3041]
                %3067 = vst [vmem:[%s3049 + $0x2c0] sm:%s3041] %v3066
                %v3068 = vld [vmem:[%s3048 + $0x120] sm:%s3041]
                %3069 = vst [vmem:[%s3049 + $0x318] sm:%s3041] %v3068
                %v3070 = vld [vmem:[%s3048 + $0x140] sm:%s3041]
                %3071 = vst [vmem:[%s3049 + $0x370] sm:%s3041] %v3070
                %v3072 = vld [vmem:[%s3048 + $0x160] sm:%s3041]
                %3073 = vst [vmem:[%s3049 + $0x3c8] sm:%s3041] %v3072
                %v3074 = vld [vmem:[%s3048 + $0x180] sm:%s3041]
                %3075 = vst [vmem:[%s3049 + $0x420] sm:%s3041] %v3074
                %v3076 = vld [vmem:[%s3048 + $0x1a0] sm:%s3041]
                %3077 = vst [vmem:[%s3049 + $0x478] sm:%s3041] %v3076
                %v3078 = vld [vmem:[%s3048 + $0x1c0] sm:%s3041]
                %3079 = vst [vmem:[%s3049 + $0x4d0] sm:%s3041] %v3078
                %v3080 = vld [vmem:[%s3048 + $0x1e0] sm:%s3041]
                %3081 = vst [vmem:[%s3049 + $0x528] sm:%s3041] %v3080
                %v3082 = vld [vmem:[%s3048 + $0x200] sm:%s3041]
                %3083 = vst [vmem:[%s3049 + $0x580] sm:%s3041] %v3082
                %v3084 = vld [vmem:[%s3048 + $0x220] sm:%s3041]
                %3085 = vst [vmem:[%s3049 + $0x5d8] sm:%s3041] %v3084
                %v3086 = vld [vmem:[%s3048 + $0x240] sm:%s3041]
                %3087 = vst [vmem:[%s3049 + $0x630] sm:%s3041] %v3086
                %v3088 = vld [vmem:[%s3048 + $0x260] sm:%s3041]
                %3089 = vst [vmem:[%s3049 + $0x688] sm:%s3041] %v3088
                %v3090 = vld [vmem:[%s3048 + $0x280] sm:%s3041]
                %3091 = vst [vmem:[%s3049 + $0x6e0] sm:%s3041] %v3090
                %v3092 = vld [vmem:[%s3048 + $0x2a0] sm:%s3041]
                %3093 = vst [vmem:[%s3049 + $0x738] sm:%s3041] %v3092
                %v3094 = vld [vmem:[%s3048 + $0x2c0] sm:%s3041]
                %3095 = vst [vmem:[%s3049 + $0x790] sm:%s3041] %v3094
                %v3096 = vld [vmem:[%s3048 + $0x2e0] sm:%s3041]
                %3097 = vst [vmem:[%s3049 + $0x7e8] sm:%s3041] %v3096
                %v3098 = vld [vmem:[%s3048 + $0x300] sm:%s3041]
                %3099 = vst [vmem:[%s3049 + $0x840] sm:%s3041] %v3098
                %v3100 = vld [vmem:[%s3048 + $0x320] sm:%s3041]
                %3101 = vst [vmem:[%s3049 + $0x898] sm:%s3041] %v3100
                %v3102 = vld [vmem:[%s3048 + $0x340] sm:%s3041]
                %3103 = vst [vmem:[%s3049 + $0x8f0] sm:%s3041] %v3102
                %v3104 = vld [vmem:[%s3048 + $0x360] sm:%s3041]
                %3105 = vst [vmem:[%s3049 + $0x948] sm:%s3041] %v3104
                %v3106 = vld [vmem:[%s3048 + $0x380] sm:%s3041]
                %3107 = vst [vmem:[%s3049 + $0x9a0] sm:%s3041] %v3106
                %v3108 = vld [vmem:[%s3048 + $0x3a0] sm:%s3041]
                %3109 = vst [vmem:[%s3049 + $0x9f8] sm:%s3041] %v3108
                %v3110 = vld [vmem:[%s3048 + $0x3c0] sm:%s3041]
                %3111 = vst [vmem:[%s3049 + $0xa50] sm:%s3041] %v3110
                %v3112 = vld [vmem:[%s3048 + $0x3e0] sm:%s3041]
                %3113 = vst [vmem:[%s3049 + $0xaa8] sm:%s3041] %v3112
                %v3114 = vld [vmem:[%s3048 + $0x400] sm:%s3041]
                %3115 = vst [vmem:[%s3049 + $0xb00] sm:%s3041] %v3114
                %v3116 = vld [vmem:[%s3048 + $0x420] sm:%s3041]
                %3117 = vst [vmem:[%s3049 + $0xb58] sm:%s3041] %v3116
                %v3118 = vld [vmem:[%s3048 + $0x440] sm:%s3041]
                %3119 = vst [vmem:[%s3049 + $0xbb0] sm:%s3041] %v3118
                %v3120 = vld [vmem:[%s3048 + $0x460] sm:%s3041]
                %3121 = vst [vmem:[%s3049 + $0xc08] sm:%s3041] %v3120
                %v3122 = vld [vmem:[%s3048 + $0x480] sm:%s3041]
                %3123 = vst [vmem:[%s3049 + $0xc60] sm:%s3041] %v3122
                %v3124 = vld [vmem:[%s3048 + $0x4a0] sm:%s3041]
                %3125 = vst [vmem:[%s3049 + $0xcb8] sm:%s3041] %v3124
                %v3126 = vld [vmem:[%s3048 + $0x4c0] sm:%s3041]
                %3127 = vst [vmem:[%s3049 + $0xd10] sm:%s3041] %v3126
                %v3128 = vld [vmem:[%s3048 + $0x4e0] sm:%s3041]
                %3129 = vst [vmem:[%s3049 + $0xd68] sm:%s3041] %v3128
                %v3130 = vld [vmem:[%s3048 + $0x500] sm:%s3041]
                %3131 = vst [vmem:[%s3049 + $0xdc0] sm:%s3041] %v3130
                %v3132 = vld [vmem:[%s3048 + $0x520] sm:%s3041]
                %3133 = vst [vmem:[%s3049 + $0xe18] sm:%s3041] %v3132
                %v3134 = vld [vmem:[%s3048 + $0x540] sm:%s3041]
                %3135 = vst [vmem:[%s3049 + $0xe70] sm:%s3041] %v3134
                %v3136 = vld [vmem:[%s3048 + $0x560] sm:%s3041]
                %3137 = vst [vmem:[%s3049 + $0xec8] sm:%s3041] %v3136
                %v3138 = vld [vmem:[%s3048 + $0x580] sm:%s3041]
                %3139 = vst [vmem:[%s3049 + $0xf20] sm:%s3041] %v3138
                %v3140 = vld [vmem:[%s3048 + $0x5a0] sm:%s3041]
                %3141 = vst [vmem:[%s3049 + $0xf78] sm:%s3041] %v3140
                %v3142 = vld [vmem:[%s3048 + $0x5c0] sm:%s3041]
                %3143 = vst [vmem:[%s3049 + $0xfd0] sm:%s3041] %v3142
                %v3144 = vld [vmem:[%s3048 + $0x5e0] sm:%s3041]
                %3145 = vst [vmem:[%s3049 + $0x1028] sm:%s3041] %v3144
                %v3146 = vld [vmem:[%s3048 + $0x600] sm:%s3041]
                %3147 = vst [vmem:[%s3049 + $0x1080] sm:%s3041] %v3146
                %v3148 = vld [vmem:[%s3048 + $0x620] sm:%s3041]
                %3149 = vst [vmem:[%s3049 + $0x10d8] sm:%s3041] %v3148
                %v3150 = vld [vmem:[%s3048 + $0x640] sm:%s3041]
                %3151 = vst [vmem:[%s3049 + $0x1130] sm:%s3041] %v3150
                %v3152 = vld [vmem:[%s3048 + $0x660] sm:%s3041]
                %3153 = vst [vmem:[%s3049 + $0x1188] sm:%s3041] %v3152
                %v3154 = vld [vmem:[%s3048 + $0x680] sm:%s3041]
                %3155 = vst [vmem:[%s3049 + $0x11e0] sm:%s3041] %v3154
                %v3156 = vld [vmem:[%s3048 + $0x6a0] sm:%s3041]
                %3157 = vst [vmem:[%s3049 + $0x1238] sm:%s3041] %v3156
                %v3158 = vld [vmem:[%s3048 + $0x6c0] sm:%s3041]
                %3159 = vst [vmem:[%s3049 + $0x1290] sm:%s3041] %v3158
                %v3160 = vld [vmem:[%s3048 + $0x6e0] sm:%s3041]
                %3161 = vst [vmem:[%s3049 + $0x12e8] sm:%s3041] %v3160
              $region123: #{_preprocess.3} parent=117 // loop_footer
                %s3047 = sadd.s32 1, %s3043
              $region124: #{_preprocess.3} parent=117 // loop_footer_branch
                %3042 = sbr.rel target = $region120
              $region125: #{_preprocess.3} parent=117 // loop_exit
                _
            $region118: #{_preprocess.3} parent=109 // pred_fallthru
              _
          $region110: #{_preprocess.3} parent=105 // pred_fallthru
            _
          %4062 = vnop
        $region106: #{_preprocess.3} parent=89 // pred_fallthru
          _
      $region90: #{_preprocess.3} parent=5 // pred_fallthru
        _
      %p4063 = scmp.le.s32.totalorder 2, %s8
      // Predicated region
      $region169: #{_preprocess.3} parent=5 // pred_check
        %p4064 = pneg %p4063
      $region170: #{_preprocess.3} parent=5 // pred_check_branch
        %4066 = sbr.rel (%p4064) target = $region172
      $region171: #{_preprocess.3} parent=5 // pred_region
        %s4067 = ssub.s32 %s8, 2
        // Predicated region
        $region173: #{_preprocess.3} parent=171 // pred_check
          %p4068 = pneg %p114
        $region174: #{_preprocess.3} parent=171 // pred_check_branch
          %4070 = sbr.rel (%p4068) target = $region176
        $region175: #{_preprocess.3} parent=171 // pred_region
          %s4071 = sand.u32 %s99, 1
          %s4072 = sand.u32 %s99, 1
          %s4073 = smul.addr %s4072, 1792
          %s4074 = scalar_lea.vmem [#allocation4], %s4073
        $region176: #{_preprocess.3} parent=171 // pred_fallthru
          _
      $region172: #{_preprocess.3} parent=5 // pred_fallthru
        _
    $region6: #{_preprocess.3} parent=1 // loop_footer
      %s12 = sadd.s32 1, %s8
    $region7: #{_preprocess.3} parent=1 // loop_footer_branch
      %7 = sbr.rel target = $region3
    $region8: #{_preprocess.3} parent=1 // loop_exit
      _

</llo_original>
